<compile_context>
chip_gen: v7x
topology: tpu7x:2x2x1
jax: 0.10.0
libtpu: 0.0.40
codegen_flags: <defaults>
</compile_context>

<pallas_src>
import jax
import jax.numpy as jnp
from jax.experimental import pallas as pl
from jax.experimental.pallas import tpu as pltpu


def w2v_kernel(ids_ref, e_hbm, ww_ref, b_ref, out_ref, ze_buf, sem):
    g = pl.program_id(0)          # megacore-parallel batch-group axis
    j = pl.program_id(1)          # sequential tile axis within the group
    nj = pl.num_programs(1)
    tb = ze_buf.shape[1]

    def start_gather(tile_idx, slot):
        """Issue tb single-row DMAs  E_w[ids[tile_idx*tb + r]] -> ze_buf[slot, r]."""
        base = tile_idx * tb

        @pl.loop(0, tb)
        def _(r):
            tok = ids_ref[base + r]
            pltpu.make_async_copy(
                e_hbm.at[pl.ds(tok, 1), :],
                ze_buf.at[slot, pl.ds(r, 1), :],
                sem.at[slot],
            ).start()

    # Prime: the first tile of this group has nothing to hide behind.
    @pl.when(j == 0)
    def _():
        start_gather(g * nj, 0)

    # Cross-step prefetch: start the NEXT tile's gather into the other slot so
    # its row DMAs overlap with this step's matmul + log-softmax.
    @pl.when(j + 1 < nj)
    def _():
        start_gather(g * nj + j + 1, (j + 1) % 2)

    # One aggregate wait for the tile we are about to consume.  DMA semaphores
    # count bytes, so a single (tb, E) f32 descriptor into ze_buf[slot] waits
    # for exactly the bytes signalled by the tb (1, E) f32 row copies.
    # (Source slice only sizes the wait; requires V >= tb, asserted below.)
    slot = j % 2
    pltpu.make_async_copy(
        e_hbm.at[pl.ds(0, tb), :],
        ze_buf.at[slot],
        sem.at[slot],
    ).wait()

    # ---- Output projection: [tb, E] @ [E, V] + [1, V]  (bf16 MXU, f32 acc). ----
    z_e = ze_buf[slot].astype(jnp.bfloat16)
    z_w = jnp.dot(z_e, ww_ref[...], preferred_element_type=jnp.float32)
    z_w = z_w + b_ref[...]

    # ---- log_softmax over the vocab axis (dim=1 in the PyTorch module). ----
    m = jnp.max(z_w, axis=-1, keepdims=True)
    shifted = z_w - m
    lse = jnp.log(jnp.sum(jnp.exp(shifted), axis=-1, keepdims=True))
    out_ref[...] = (shifted - lse).astype(out_ref.dtype)


def _build_call(B, V, E, tb, groups, per_group, *, single_buffer_weights):
    def const_spec(shape):
        # Grid-invariant blocks (index_map always (0, 0)); single-buffer them
        # when the jax version supports buffer_count=1.
        if single_buffer_weights:
            return pl.BlockSpec(shape, lambda g, j, ids: (0, 0),
                                pipeline_mode=pl.Buffered(1))
        return pl.BlockSpec(shape, lambda g, j, ids: (0, 0))

    grid_spec = pltpu.PrefetchScalarGridSpec(
        num_scalar_prefetch=1,                           # tok_ids -> SMEM
        grid=(groups, per_group),
        in_specs=[
            pl.BlockSpec(memory_space=pl.ANY),           # E_w stays in HBM (manual gather)
            const_spec((E, V)),                          # W weights (full V, bf16)
            const_spec((1, V)),                          # W bias (full V, f32)
        ],
        out_specs=pl.BlockSpec((tb, V), lambda g, j, ids: (g * per_group + j, 0)),
        scratch_shapes=[
            pltpu.VMEM((2, tb, E), jnp.float32),         # double-buffered gathered rows
            pltpu.SemaphoreType.DMA((2,)),               # one gather sem per slot
        ],
    )
    return pl.pallas_call(
        w2v_kernel,
        out_shape=jax.ShapeDtypeStruct((B, V), jnp.float32),
        grid_spec=grid_spec,
        compiler_params=pltpu.CompilerParams(
            dimension_semantics=("parallel", "arbitrary"),
            vmem_limit_bytes=40 * 1024 * 1024,           # > v5e 16 MiB default, < v7x 64 MiB physical
        ),
    )


def word2vec_forward(tok_ids, e_w, w_w, w_b, *, tb=128):
    """Word2Vec forward.

    tok_ids: [B]    int32 token ids (the hot index of each one-hot row)
    e_w:     [V, E] float32          (== E.weight.T of the PyTorch module)
    w_w:     [E, V] bf16 (or f32)    (== W.weight.T)
    w_b:     [1, V] float32          (== W.bias)
    returns: [B, V] float32 log-probabilities.
    """
    B = tok_ids.shape[0]
    V, E = e_w.shape
    assert w_w.shape == (E, V) and w_b.shape == (1, V)
    tb = min(tb, B)
    assert B % tb == 0, "batch must be a multiple of the batch tile"
    assert tb % 8 == 0, "batch tile must be sublane aligned"
    assert V >= tb, "aggregate-wait descriptor borrows tb rows of E_w"

    num_tiles = B // tb
    # v7x has 2 TensorCores: keep the parallel axis a multiple of 2 when possible.
    groups = 2 if num_tiles % 2 == 0 else 1
    per_group = num_tiles // groups

    args = (tok_ids.astype(jnp.int32),
            e_w.astype(jnp.float32),
            w_w.astype(jnp.bfloat16),
            w_b.astype(jnp.float32))
    try:
        return _build_call(B, V, E, tb, groups, per_group,
                           single_buffer_weights=True)(*args)
    except Exception:
        # pl.Buffered(1) not accepted on this jax version -> default buffering.
        return _build_call(B, V, E, tb, groups, per_group,
                           single_buffer_weights=False)(*args)


def word2vec_forward_onehot(one_hot, e_w, w_w, w_b, *, tb=128):
    """Matches the PyTorch forward(one_hot) signature.

    NOTE: not a hot-path API — the argmax re-reads the full (B, V) one-hot
    stream the kernel is designed to avoid.  Pass int32 ids directly instead.
    """
    tok_ids = jnp.argmax(one_hot, axis=1).astype(jnp.int32)
    return word2vec_forward(tok_ids, e_w, w_w, w_b, tb=tb)


if __name__ == "__main__":
    # Small, tile-aligned demo shapes (real word2vec would be V~50k, E~300).
    # B=512 with tb=128 gives 4 tiles -> (2 parallel groups) x (2 sequential
    # tiles), exercising both the megacore split and the cross-step prefetch.
    batch, vocab_size, embedding_size = 512, 512, 256

    key = jax.random.PRNGKey(0)
    k_tok, k_e, k_w, k_b = jax.random.split(key, 4)

    tok_ids = jax.random.randint(k_tok, (batch,), 0, vocab_size, dtype=jnp.int32)

    # Parameters pre-transposed to the matmul-friendly layout documented above.
    e_w = jax.random.normal(k_e, (vocab_size, embedding_size), jnp.float32) * 0.02
    w_w = (jax.random.normal(k_w, (embedding_size, vocab_size), jnp.float32) * 0.02
           ).astype(jnp.bfloat16)
    w_b = jax.random.normal(k_b, (1, vocab_size), jnp.float32) * 0.02

    out = word2vec_forward(tok_ids, e_w, w_w, w_b, tb=128)
    out = jax.block_until_ready(out)

    # Pure-JAX reference following the original dense formulation of the module.
    one_hot = jax.nn.one_hot(tok_ids, vocab_size, dtype=jnp.float32)
    ref = jax.nn.log_softmax(one_hot @ e_w @ w_w.astype(jnp.float32) + w_b, axis=1)
    assert out.shape == (batch, vocab_size)
    max_err = float(jnp.abs(out - ref).max())
    assert jnp.allclose(out, ref, atol=5e-3, rtol=5e-3), max_err

    print("KERNEL_OK")
</pallas_src>

<mosaic_0001>
module attributes {stable_mosaic.version = 11 : i64} {
  func.func @w2v_kernel(%arg0: i32, %arg1: i32, %arg2: memref<512xi32, #tpu.memory_space<smem>>, %arg3: memref<512x256xf32, #tpu.memory_space<any>>, %arg4: memref<256x512xbf16, #tpu.memory_space<vmem>>, %arg5: memref<1x512xf32, #tpu.memory_space<vmem>>, %arg6: memref<128x512xf32, #tpu.memory_space<vmem>>, %arg7: memref<2x128x256xf32, #tpu.memory_space<vmem>>, %arg8: memref<2x!tpu.dma_semaphore, #tpu.memory_space<semaphore_mem>>) attributes {dimension_semantics = [#tpu.dimension_semantics<parallel>, #tpu.dimension_semantics<arbitrary>], iteration_bounds = array<i64: 2, 2>, scalar_prefetch = 1 : i64, scratch_operands = 2 : i64, tpu.core_type = #tpu.core_type<tc>, window_params = [{}, {pipeline_mode = #tpu.pipeline_mode<synchronous>, transform_indices = @transform_1, window_bounds = array<i64: 256, 512>}, {pipeline_mode = #tpu.pipeline_mode<synchronous>, transform_indices = @transform_2, window_bounds = array<i64: 1, 512>}, {transform_indices = @transform_3, window_bounds = array<i64: 128, 512>}]} {
    %c0_i32 = arith.constant 0 : i32
    %0 = arith.cmpi eq, %arg1, %c0_i32 : i32
    %1 = arith.extui %0 : i1 to i32
    %c0_i32_0 = arith.constant 0 : i32
    %2 = arith.cmpi ne, %1, %c0_i32_0 : i32
    scf.if %2 {
      %c2_i32_21 = arith.constant 2 : i32
      %42 = arith.muli %arg0, %c2_i32_21 : i32
      %c128_i32 = arith.constant 128 : i32
      %43 = arith.muli %42, %c128_i32 : i32
      %c0_i32_22 = arith.constant 0 : i32
      %c128_i32_23 = arith.constant 128 : i32
      %44 = arith.addi %c0_i32_22, %c128_i32_23 : i32
      %c1_i32_24 = arith.constant 1 : i32
      scf.for %arg9 = %c0_i32_22 to %44 step %c1_i32_24  : i32 {
        %c1_i32_26 = arith.constant 1 : i32
        %45 = arith.muli %arg9, %c1_i32_26 : i32
        %c0_i32_27 = arith.constant 0 : i32
        %46 = arith.addi %c0_i32_27, %45 : i32
        %47 = arith.addi %43, %46 : i32
        %48 = arith.index_cast %47 : i32 to index
        %49 = memref.load %arg2[%48] : memref<512xi32, #tpu.memory_space<smem>>
        %c0_i32_28 = arith.constant 0 : i32
        %c0_i32_29 = arith.constant 0 : i32
        %c0_i32_30 = arith.constant 0 : i32
        %50 = tpu.memref_slice %arg3[%49, %c0_i32_30] : memref<512x256xf32, #tpu.memory_space<any>> -> memref<1x256xf32, #tpu.memory_space<any>>
        %c0_i32_31 = arith.constant 0 : i32
        %51 = tpu.memref_slice %arg7[%c0_i32_28, %46, %c0_i32_31] : memref<2x128x256xf32, #tpu.memory_space<vmem>> -> memref<1x1x256xf32, #tpu.memory_space<vmem>>
        %52 = tpu.memref_squeeze %51 : memref<1x1x256xf32, #tpu.memory_space<vmem>> -> memref<1x256xf32, #tpu.memory_space<vmem>>
        %53 = tpu.memref_slice %arg8[%c0_i32_29] : memref<2x!tpu.dma_semaphore, #tpu.memory_space<semaphore_mem>> -> memref<1x!tpu.dma_semaphore, #tpu.memory_space<semaphore_mem>>
        %54 = tpu.memref_squeeze %53 : memref<1x!tpu.dma_semaphore, #tpu.memory_space<semaphore_mem>> -> memref<!tpu.dma_semaphore, #tpu.memory_space<semaphore_mem>>
        tpu.enqueue_dma source(%50 : memref<1x256xf32, #tpu.memory_space<any>>) target(%52 : memref<1x256xf32, #tpu.memory_space<vmem>>) target_semaphore(%54 : memref<!tpu.dma_semaphore, #tpu.memory_space<semaphore_mem>>)
      }
      %c128_i32_25 = arith.constant 128 : i32
    } else {
    }
    %c1_i32 = arith.constant 1 : i32
    %3 = arith.addi %arg1, %c1_i32 : i32
    %c2_i32 = arith.constant 2 : i32
    %4 = arith.cmpi slt, %3, %c2_i32 : i32
    %5 = arith.extui %4 : i1 to i32
    %c0_i32_1 = arith.constant 0 : i32
    %6 = arith.cmpi ne, %5, %c0_i32_1 : i32
    scf.if %6 {
      %c2_i32_21 = arith.constant 2 : i32
      %42 = arith.muli %arg0, %c2_i32_21 : i32
      %43 = arith.addi %42, %arg1 : i32
      %c1_i32_22 = arith.constant 1 : i32
      %44 = arith.addi %43, %c1_i32_22 : i32
      %c1_i32_23 = arith.constant 1 : i32
      %45 = arith.addi %arg1, %c1_i32_23 : i32
      %c2_i32_24 = arith.constant 2 : i32
      %c0_i32_25 = arith.constant 0 : i32
      %46 = arith.cmpi eq, %c2_i32_24, %c0_i32_25 : i32
      %c1_i32_26 = arith.constant 1 : i32
      %47 = arith.select %46, %c1_i32_26, %c2_i32_24 : i32
      %48 = arith.remsi %45, %47 : i32
      %c0_i32_27 = arith.constant 0 : i32
      %49 = arith.cmpi ne, %48, %c0_i32_27 : i32
      %c0_i32_28 = arith.constant 0 : i32
      %50 = arith.cmpi slt, %48, %c0_i32_28 : i32
      %c0_i32_29 = arith.constant 0 : i32
      %51 = arith.cmpi slt, %47, %c0_i32_29 : i32
      %52 = arith.xori %50, %51 : i1
      %53 = arith.andi %52, %49 : i1
      %54 = arith.addi %48, %47 : i32
      %55 = arith.select %53, %54, %48 : i32
      %c128_i32 = arith.constant 128 : i32
      %56 = arith.muli %44, %c128_i32 : i32
      %c0_i32_30 = arith.constant 0 : i32
      %c128_i32_31 = arith.constant 128 : i32
      %57 = arith.addi %c0_i32_30, %c128_i32_31 : i32
      %c1_i32_32 = arith.constant 1 : i32
      scf.for %arg9 = %c0_i32_30 to %57 step %c1_i32_32  : i32 {
        %c1_i32_34 = arith.constant 1 : i32
        %58 = arith.muli %arg9, %c1_i32_34 : i32
        %c0_i32_35 = arith.constant 0 : i32
        %59 = arith.addi %c0_i32_35, %58 : i32
        %60 = arith.addi %56, %59 : i32
        %61 = arith.index_cast %60 : i32 to index
        %62 = memref.load %arg2[%61] : memref<512xi32, #tpu.memory_space<smem>>
        %c0_i32_36 = arith.constant 0 : i32
        %63 = tpu.memref_slice %arg3[%62, %c0_i32_36] : memref<512x256xf32, #tpu.memory_space<any>> -> memref<1x256xf32, #tpu.memory_space<any>>
        %c0_i32_37 = arith.constant 0 : i32
        %64 = tpu.memref_slice %arg7[%55, %59, %c0_i32_37] : memref<2x128x256xf32, #tpu.memory_space<vmem>> -> memref<1x1x256xf32, #tpu.memory_space<vmem>>
        %65 = tpu.memref_squeeze %64 : memref<1x1x256xf32, #tpu.memory_space<vmem>> -> memref<1x256xf32, #tpu.memory_space<vmem>>
        %66 = tpu.memref_slice %arg8[%55] : memref<2x!tpu.dma_semaphore, #tpu.memory_space<semaphore_mem>> -> memref<1x!tpu.dma_semaphore, #tpu.memory_space<semaphore_mem>>
        %67 = tpu.memref_squeeze %66 : memref<1x!tpu.dma_semaphore, #tpu.memory_space<semaphore_mem>> -> memref<!tpu.dma_semaphore, #tpu.memory_space<semaphore_mem>>
        tpu.enqueue_dma source(%63 : memref<1x256xf32, #tpu.memory_space<any>>) target(%65 : memref<1x256xf32, #tpu.memory_space<vmem>>) target_semaphore(%67 : memref<!tpu.dma_semaphore, #tpu.memory_space<semaphore_mem>>)
      }
      %c128_i32_33 = arith.constant 128 : i32
    } else {
    }
    %c2_i32_2 = arith.constant 2 : i32
    %c0_i32_3 = arith.constant 0 : i32
    %7 = arith.cmpi eq, %c2_i32_2, %c0_i32_3 : i32
    %c1_i32_4 = arith.constant 1 : i32
    %8 = arith.select %7, %c1_i32_4, %c2_i32_2 : i32
    %9 = arith.remsi %arg1, %8 : i32
    %c0_i32_5 = arith.constant 0 : i32
    %10 = arith.cmpi ne, %9, %c0_i32_5 : i32
    %c0_i32_6 = arith.constant 0 : i32
    %11 = arith.cmpi slt, %9, %c0_i32_6 : i32
    %c0_i32_7 = arith.constant 0 : i32
    %12 = arith.cmpi slt, %8, %c0_i32_7 : i32
    %13 = arith.xori %11, %12 : i1
    %14 = arith.andi %13, %10 : i1
    %15 = arith.addi %9, %8 : i32
    %16 = arith.select %14, %15, %9 : i32
    %c0_i32_8 = arith.constant 0 : i32
    %c0_i32_9 = arith.constant 0 : i32
    %17 = tpu.memref_slice %arg3[%c0_i32_8, %c0_i32_9] : memref<512x256xf32, #tpu.memory_space<any>> -> memref<128x256xf32, #tpu.memory_space<any>>
    %c0_i32_10 = arith.constant 0 : i32
    %c0_i32_11 = arith.constant 0 : i32
    %18 = tpu.memref_slice %arg7[%16, %c0_i32_10, %c0_i32_11] : memref<2x128x256xf32, #tpu.memory_space<vmem>> -> memref<1x128x256xf32, #tpu.memory_space<vmem>>
    %19 = tpu.memref_squeeze %18 : memref<1x128x256xf32, #tpu.memory_space<vmem>> -> memref<128x256xf32, #tpu.memory_space<vmem>>
    %20 = tpu.memref_slice %arg8[%16] : memref<2x!tpu.dma_semaphore, #tpu.memory_space<semaphore_mem>> -> memref<1x!tpu.dma_semaphore, #tpu.memory_space<semaphore_mem>>
    %21 = tpu.memref_squeeze %20 : memref<1x!tpu.dma_semaphore, #tpu.memory_space<semaphore_mem>> -> memref<!tpu.dma_semaphore, #tpu.memory_space<semaphore_mem>>
    tpu.wait_dma2 semaphore(%21 : memref<!tpu.dma_semaphore, #tpu.memory_space<semaphore_mem>>) src(%17 : memref<128x256xf32, #tpu.memory_space<any>>) dst(%19 : memref<128x256xf32, #tpu.memory_space<vmem>>)
    %22 = arith.index_cast %16 : i32 to index
    %c0 = arith.constant 0 : index
    %c0_12 = arith.constant 0 : index
    %23 = vector.load %arg7[%22, %c0, %c0_12] : memref<2x128x256xf32, #tpu.memory_space<vmem>>, vector<1x128x256xf32>
    %24 = vector.shape_cast %23 : vector<1x128x256xf32> to vector<128x256xf32>
    %25 = arith.truncf %24 : vector<128x256xf32> to vector<128x256xbf16>
    %c0_13 = arith.constant 0 : index
    %c0_14 = arith.constant 0 : index
    %26 = vector.load %arg4[%c0_13, %c0_14] : memref<256x512xbf16, #tpu.memory_space<vmem>>, vector<256x512xbf16>
    %cst = arith.constant dense<0.000000e+00> : vector<128x512xf32>
    %27 = tpu.matmul %25, %26, %cst {dimension_numbers = #tpu.dot_dimension_numbers<[1], [0], [0], [1], [0, 0, 1, 1], [], []>} : vector<128x256xbf16>, vector<256x512xbf16>, vector<128x512xf32> -> vector<128x512xf32>
    %c0_15 = arith.constant 0 : index
    %c0_16 = arith.constant 0 : index
    %28 = vector.load %arg5[%c0_15, %c0_16] : memref<1x512xf32, #tpu.memory_space<vmem>>, vector<1x512xf32>
    %29 = vector.broadcast %28 : vector<1x512xf32> to vector<128x512xf32>
    %30 = arith.addf %27, %29 : vector<128x512xf32>
    %cst_17 = arith.constant dense<0xFF800000> : vector<128xf32>
    %31 = vector.multi_reduction <maximumf>, %30, %cst_17 [1] : vector<128x512xf32> to vector<128xf32>
    %32 = vector.shape_cast %31 : vector<128xf32> to vector<128x1xf32>
    %33 = vector.broadcast %32 : vector<128x1xf32> to vector<128x512xf32>
    %34 = arith.subf %30, %33 : vector<128x512xf32>
    %35 = math.exp %34 : vector<128x512xf32>
    %cst_18 = arith.constant dense<0.000000e+00> : vector<128xf32>
    %36 = vector.multi_reduction <add>, %35, %cst_18 [1] : vector<128x512xf32> to vector<128xf32>
    %37 = vector.shape_cast %36 : vector<128xf32> to vector<128x1xf32>
    %38 = math.log %37 : vector<128x1xf32>
    %39 = vector.broadcast %38 : vector<128x1xf32> to vector<128x512xf32>
    %40 = arith.subf %34, %39 : vector<128x512xf32>
    %c0_19 = arith.constant 0 : index
    %c0_20 = arith.constant 0 : index
    %41 = vector.load %arg6[%c0_19, %c0_20] : memref<128x512xf32, #tpu.memory_space<vmem>>, vector<128x512xf32>
    tpu.vector_store %arg6[%c0_19, %c0_20], %40 {strides = array<i32>} : memref<128x512xf32, #tpu.memory_space<vmem>>, vector<128x512xf32>,
    return
  }
  func.func @transform_1(%arg0: i32, %arg1: i32, %arg2: memref<512xi32, #tpu.memory_space<smem>>) -> (i32, i32) {
    %c0_i32 = arith.constant 0 : i32
    %c0_i32_0 = arith.constant 0 : i32
    %c0_i32_1 = arith.constant 0 : i32
    return %c0_i32, %c0_i32_0 : i32, i32
  }
  func.func @transform_2(%arg0: i32, %arg1: i32, %arg2: memref<512xi32, #tpu.memory_space<smem>>) -> (i32, i32) {
    %c0_i32 = arith.constant 0 : i32
    %c0_i32_0 = arith.constant 0 : i32
    %c0_i32_1 = arith.constant 0 : i32
    return %c0_i32, %c0_i32_0 : i32, i32
  }
  func.func @transform_3(%arg0: i32, %arg1: i32, %arg2: memref<512xi32, #tpu.memory_space<smem>>) -> (i32, i32) {
    %c2_i32 = arith.constant 2 : i32
    %0 = arith.muli %arg0, %c2_i32 : i32
    %1 = arith.addi %0, %arg1 : i32
    %c0_i32 = arith.constant 0 : i32
    %c0_i32_0 = arith.constant 0 : i32
    return %1, %c0_i32 : i32, i32
  }
}

module attributes {stable_mosaic.version = 11 : i64} {
  func.func @w2v_kernel(%arg0: i32, %arg1: i32, %arg2: memref<512xi32, #tpu.memory_space<smem>>, %arg3: memref<512x256xf32, #tpu.memory_space<any>>, %arg4: memref<256x512xbf16, #tpu.memory_space<vmem>>, %arg5: memref<1x512xf32, #tpu.memory_space<vmem>>, %arg6: memref<128x512xf32, #tpu.memory_space<vmem>>, %arg7: memref<2x128x256xf32, #tpu.memory_space<vmem>>, %arg8: memref<2x!tpu.dma_semaphore, #tpu.memory_space<semaphore_mem>>) attributes {dimension_semantics = [#tpu.dimension_semantics<parallel>, #tpu.dimension_semantics<arbitrary>], iteration_bounds = array<i64: 2, 2>, scalar_prefetch = 1 : i64, scratch_operands = 2 : i64, tpu.core_type = #tpu.core_type<tc>, window_params = [{}, {pipeline_mode = #tpu.pipeline_mode<synchronous>, transform_indices = @transform_1, window_bounds = array<i64: 256, 512>}, {pipeline_mode = #tpu.pipeline_mode<synchronous>, transform_indices = @transform_2, window_bounds = array<i64: 1, 512>}, {transform_indices = @transform_3, window_bounds = array<i64: 128, 512>}]} {
    %c0_i32 = arith.constant 0 : i32
    %0 = arith.cmpi eq, %arg1, %c0_i32 : i32
    %1 = arith.extui %0 : i1 to i32
    %c0_i32_0 = arith.constant 0 : i32
    %2 = arith.cmpi ne, %1, %c0_i32_0 : i32
    scf.if %2 {
      %c2_i32_21 = arith.constant 2 : i32
      %42 = arith.muli %arg0, %c2_i32_21 : i32
      %c128_i32 = arith.constant 128 : i32
      %43 = arith.muli %42, %c128_i32 : i32
      %c0_i32_22 = arith.constant 0 : i32
      %c128_i32_23 = arith.constant 128 : i32
      %44 = arith.addi %c0_i32_22, %c128_i32_23 : i32
      %c1_i32_24 = arith.constant 1 : i32
      scf.for %arg9 = %c0_i32_22 to %44 step %c1_i32_24  : i32 {
        %c1_i32_26 = arith.constant 1 : i32
        %45 = arith.muli %arg9, %c1_i32_26 : i32
        %c0_i32_27 = arith.constant 0 : i32
        %46 = arith.addi %c0_i32_27, %45 : i32
        %47 = arith.addi %43, %46 : i32
        %48 = arith.index_cast %47 : i32 to index
        %49 = memref.load %arg2[%48] : memref<512xi32, #tpu.memory_space<smem>>
        %c0_i32_28 = arith.constant 0 : i32
        %c0_i32_29 = arith.constant 0 : i32
        %c0_i32_30 = arith.constant 0 : i32
        %50 = tpu.memref_slice %arg3[%49, %c0_i32_30] : memref<512x256xf32, #tpu.memory_space<any>> -> memref<1x256xf32, #tpu.memory_space<any>>
        %c0_i32_31 = arith.constant 0 : i32
        %51 = tpu.memref_slice %arg7[%c0_i32_28, %46, %c0_i32_31] : memref<2x128x256xf32, #tpu.memory_space<vmem>> -> memref<1x1x256xf32, #tpu.memory_space<vmem>>
        %52 = tpu.memref_squeeze %51 : memref<1x1x256xf32, #tpu.memory_space<vmem>> -> memref<1x256xf32, #tpu.memory_space<vmem>>
        %53 = tpu.memref_slice %arg8[%c0_i32_29] : memref<2x!tpu.dma_semaphore, #tpu.memory_space<semaphore_mem>> -> memref<1x!tpu.dma_semaphore, #tpu.memory_space<semaphore_mem>>
        %54 = tpu.memref_squeeze %53 : memref<1x!tpu.dma_semaphore, #tpu.memory_space<semaphore_mem>> -> memref<!tpu.dma_semaphore, #tpu.memory_space<semaphore_mem>>
        tpu.enqueue_dma source(%50 : memref<1x256xf32, #tpu.memory_space<any>>) target(%52 : memref<1x256xf32, #tpu.memory_space<vmem>>) target_semaphore(%54 : memref<!tpu.dma_semaphore, #tpu.memory_space<semaphore_mem>>)
      }
      %c128_i32_25 = arith.constant 128 : i32
    } else {
    }
    %c1_i32 = arith.constant 1 : i32
    %3 = arith.addi %arg1, %c1_i32 : i32
    %c2_i32 = arith.constant 2 : i32
    %4 = arith.cmpi slt, %3, %c2_i32 : i32
    %5 = arith.extui %4 : i1 to i32
    %c0_i32_1 = arith.constant 0 : i32
    %6 = arith.cmpi ne, %5, %c0_i32_1 : i32
    scf.if %6 {
      %c2_i32_21 = arith.constant 2 : i32
      %42 = arith.muli %arg0, %c2_i32_21 : i32
      %43 = arith.addi %42, %arg1 : i32
      %c1_i32_22 = arith.constant 1 : i32
      %44 = arith.addi %43, %c1_i32_22 : i32
      %c1_i32_23 = arith.constant 1 : i32
      %45 = arith.addi %arg1, %c1_i32_23 : i32
      %c2_i32_24 = arith.constant 2 : i32
      %c0_i32_25 = arith.constant 0 : i32
      %46 = arith.cmpi eq, %c2_i32_24, %c0_i32_25 : i32
      %c1_i32_26 = arith.constant 1 : i32
      %47 = arith.select %46, %c1_i32_26, %c2_i32_24 : i32
      %48 = arith.remsi %45, %47 : i32
      %c0_i32_27 = arith.constant 0 : i32
      %49 = arith.cmpi ne, %48, %c0_i32_27 : i32
      %c0_i32_28 = arith.constant 0 : i32
      %50 = arith.cmpi slt, %48, %c0_i32_28 : i32
      %c0_i32_29 = arith.constant 0 : i32
      %51 = arith.cmpi slt, %47, %c0_i32_29 : i32
      %52 = arith.xori %50, %51 : i1
      %53 = arith.andi %52, %49 : i1
      %54 = arith.addi %48, %47 : i32
      %55 = arith.select %53, %54, %48 : i32
      %c128_i32 = arith.constant 128 : i32
      %56 = arith.muli %44, %c128_i32 : i32
      %c0_i32_30 = arith.constant 0 : i32
      %c128_i32_31 = arith.constant 128 : i32
      %57 = arith.addi %c0_i32_30, %c128_i32_31 : i32
      %c1_i32_32 = arith.constant 1 : i32
      scf.for %arg9 = %c0_i32_30 to %57 step %c1_i32_32  : i32 {
        %c1_i32_34 = arith.constant 1 : i32
        %58 = arith.muli %arg9, %c1_i32_34 : i32
        %c0_i32_35 = arith.constant 0 : i32
        %59 = arith.addi %c0_i32_35, %58 : i32
        %60 = arith.addi %56, %59 : i32
        %61 = arith.index_cast %60 : i32 to index
        %62 = memref.load %arg2[%61] : memref<512xi32, #tpu.memory_space<smem>>
        %c0_i32_36 = arith.constant 0 : i32
        %63 = tpu.memref_slice %arg3[%62, %c0_i32_36] : memref<512x256xf32, #tpu.memory_space<any>> -> memref<1x256xf32, #tpu.memory_space<any>>
        %c0_i32_37 = arith.constant 0 : i32
        %64 = tpu.memref_slice %arg7[%55, %59, %c0_i32_37] : memref<2x128x256xf32, #tpu.memory_space<vmem>> -> memref<1x1x256xf32, #tpu.memory_space<vmem>>
        %65 = tpu.memref_squeeze %64 : memref<1x1x256xf32, #tpu.memory_space<vmem>> -> memref<1x256xf32, #tpu.memory_space<vmem>>
        %66 = tpu.memref_slice %arg8[%55] : memref<2x!tpu.dma_semaphore, #tpu.memory_space<semaphore_mem>> -> memref<1x!tpu.dma_semaphore, #tpu.memory_space<semaphore_mem>>
        %67 = tpu.memref_squeeze %66 : memref<1x!tpu.dma_semaphore, #tpu.memory_space<semaphore_mem>> -> memref<!tpu.dma_semaphore, #tpu.memory_space<semaphore_mem>>
        tpu.enqueue_dma source(%63 : memref<1x256xf32, #tpu.memory_space<any>>) target(%65 : memref<1x256xf32, #tpu.memory_space<vmem>>) target_semaphore(%67 : memref<!tpu.dma_semaphore, #tpu.memory_space<semaphore_mem>>)
      }
      %c128_i32_33 = arith.constant 128 : i32
    } else {
    }
    %c2_i32_2 = arith.constant 2 : i32
    %c0_i32_3 = arith.constant 0 : i32
    %7 = arith.cmpi eq, %c2_i32_2, %c0_i32_3 : i32
    %c1_i32_4 = arith.constant 1 : i32
    %8 = arith.select %7, %c1_i32_4, %c2_i32_2 : i32
    %9 = arith.remsi %arg1, %8 : i32
    %c0_i32_5 = arith.constant 0 : i32
    %10 = arith.cmpi ne, %9, %c0_i32_5 : i32
    %c0_i32_6 = arith.constant 0 : i32
    %11 = arith.cmpi slt, %9, %c0_i32_6 : i32
    %c0_i32_7 = arith.constant 0 : i32
    %12 = arith.cmpi slt, %8, %c0_i32_7 : i32
    %13 = arith.xori %11, %12 : i1
    %14 = arith.andi %13, %10 : i1
    %15 = arith.addi %9, %8 : i32
    %16 = arith.select %14, %15, %9 : i32
    %c0_i32_8 = arith.constant 0 : i32
    %c0_i32_9 = arith.constant 0 : i32
    %17 = tpu.memref_slice %arg3[%c0_i32_8, %c0_i32_9] : memref<512x256xf32, #tpu.memory_space<any>> -> memref<128x256xf32, #tpu.memory_space<any>>
    %c0_i32_10 = arith.constant 0 : i32
    %c0_i32_11 = arith.constant 0 : i32
    %18 = tpu.memref_slice %arg7[%16, %c0_i32_10, %c0_i32_11] : memref<2x128x256xf32, #tpu.memory_space<vmem>> -> memref<1x128x256xf32, #tpu.memory_space<vmem>>
    %19 = tpu.memref_squeeze %18 : memref<1x128x256xf32, #tpu.memory_space<vmem>> -> memref<128x256xf32, #tpu.memory_space<vmem>>
    %20 = tpu.memref_slice %arg8[%16] : memref<2x!tpu.dma_semaphore, #tpu.memory_space<semaphore_mem>> -> memref<1x!tpu.dma_semaphore, #tpu.memory_space<semaphore_mem>>
    %21 = tpu.memref_squeeze %20 : memref<1x!tpu.dma_semaphore, #tpu.memory_space<semaphore_mem>> -> memref<!tpu.dma_semaphore, #tpu.memory_space<semaphore_mem>>
    tpu.wait_dma2 semaphore(%21 : memref<!tpu.dma_semaphore, #tpu.memory_space<semaphore_mem>>) src(%17 : memref<128x256xf32, #tpu.memory_space<any>>) dst(%19 : memref<128x256xf32, #tpu.memory_space<vmem>>)
    %22 = arith.index_cast %16 : i32 to index
    %c0 = arith.constant 0 : index
    %c0_12 = arith.constant 0 : index
    %23 = vector.load %arg7[%22, %c0, %c0_12] : memref<2x128x256xf32, #tpu.memory_space<vmem>>, vector<1x128x256xf32>
    %24 = vector.shape_cast %23 : vector<1x128x256xf32> to vector<128x256xf32>
    %25 = arith.truncf %24 : vector<128x256xf32> to vector<128x256xbf16>
    %c0_13 = arith.constant 0 : index
    %c0_14 = arith.constant 0 : index
    %26 = vector.load %arg4[%c0_13, %c0_14] : memref<256x512xbf16, #tpu.memory_space<vmem>>, vector<256x512xbf16>
    %cst = arith.constant dense<0.000000e+00> : vector<128x512xf32>
    %27 = tpu.matmul %25, %26, %cst {dimension_numbers = #tpu.dot_dimension_numbers<[1], [0], [0], [1], [0, 0, 1, 1], [], []>} : vector<128x256xbf16>, vector<256x512xbf16>, vector<128x512xf32> -> vector<128x512xf32>
    %c0_15 = arith.constant 0 : index
    %c0_16 = arith.constant 0 : index
    %28 = vector.load %arg5[%c0_15, %c0_16] : memref<1x512xf32, #tpu.memory_space<vmem>>, vector<1x512xf32>
    %29 = vector.broadcast %28 : vector<1x512xf32> to vector<128x512xf32>
    %30 = arith.addf %27, %29 : vector<128x512xf32>
    %cst_17 = arith.constant dense<0xFF800000> : vector<128xf32>
    %31 = vector.multi_reduction <maximumf>, %30, %cst_17 [1] : vector<128x512xf32> to vector<128xf32>
    %32 = vector.shape_cast %31 : vector<128xf32> to vector<128x1xf32>
    %33 = vector.broadcast %32 : vector<128x1xf32> to vector<128x512xf32>
    %34 = arith.subf %30, %33 : vector<128x512xf32>
    %35 = math.exp %34 : vector<128x512xf32>
    %cst_18 = arith.constant dense<0.000000e+00> : vector<128xf32>
    %36 = vector.multi_reduction <add>, %35, %cst_18 [1] : vector<128x512xf32> to vector<128xf32>
    %37 = vector.shape_cast %36 : vector<128xf32> to vector<128x1xf32>
    %38 = math.log %37 : vector<128x1xf32>
    %39 = vector.broadcast %38 : vector<128x1xf32> to vector<128x512xf32>
    %40 = arith.subf %34, %39 : vector<128x512xf32>
    %c0_19 = arith.constant 0 : index
    %c0_20 = arith.constant 0 : index
    %41 = vector.load %arg6[%c0_19, %c0_20] : memref<128x512xf32, #tpu.memory_space<vmem>>, vector<128x512xf32>
    tpu.vector_store %arg6[%c0_19, %c0_20], %40 {strides = array<i32>} : memref<128x512xf32, #tpu.memory_space<vmem>>, vector<128x512xf32>,
    return
  }
  func.func @transform_1(%arg0: i32, %arg1: i32, %arg2: memref<512xi32, #tpu.memory_space<smem>>) -> (i32, i32) {
    %c0_i32 = arith.constant 0 : i32
    %c0_i32_0 = arith.constant 0 : i32
    %c0_i32_1 = arith.constant 0 : i32
    return %c0_i32, %c0_i32_0 : i32, i32
  }
  func.func @transform_2(%arg0: i32, %arg1: i32, %arg2: memref<512xi32, #tpu.memory_space<smem>>) -> (i32, i32) {
    %c0_i32 = arith.constant 0 : i32
    %c0_i32_0 = arith.constant 0 : i32
    %c0_i32_1 = arith.constant 0 : i32
    return %c0_i32, %c0_i32_0 : i32, i32
  }
  func.func @transform_3(%arg0: i32, %arg1: i32, %arg2: memref<512xi32, #tpu.memory_space<smem>>) -> (i32, i32) {
    %c2_i32 = arith.constant 2 : i32
    %0 = arith.muli %arg0, %c2_i32 : i32
    %1 = arith.addi %0, %arg1 : i32
    %c0_i32 = arith.constant 0 : i32
    %c0_i32_0 = arith.constant 0 : i32
    return %1, %c0_i32 : i32, i32
  }
}

</mosaic_0001>

<llo_original>
// kernel: tpu_custom_call.1
$region0: #{tpu_custom_call.1}
  #allocation0 [shape = 'u32[]', space=smem, size = 0x4, offset = 0x4, fixed_abs, tag = 'smem constant byte address 0x4 - core index']
  #allocation1 [shape = 'u32[144,128]{1,0:T(1,128)}', space=vmem, size = 0x12000, scoped, tag = 'internal scratch']
  #allocation2 [shape = 'f32[2,128,256]{2,1,0:T(8,128)}', space=vmem, size = 0x40000, scoped, tag = 'scratch operand']
  #allocation3 [shape = 's32[2]{0}', space=sflag, size = 0x8, scoped, tag = 'scratch operand']
  #allocation4 [shape = 's32[1]{0}', space=sflag, size = 0x4, scoped, tag = 'scoped memory for tpu_custom_call.1']
  #allocation5 [shape = 'u8[2048]{0}', space=smem, size = 0x800, scoped, tag = 'prefetched SMEM operand 0']
  #allocation10 [shape = 's32[]', space=sflag, size = 0x4, offset = 0, fixed_abs, tag = 'sflag constant byte address 0x0 - dummy sync flag']
  #allocation11 [shape = 's32[]', space=sflag, size = 0x4, offset = 0, fixed_abs, tag = 'sflag constant byte address 0x0 - dummy sync flag']
  %s0 = inlined_call_operand.hbm [shape: s32[512], index: 0, kind: input, shape index: {}]
  %s1 = inlined_call_operand.hbm [shape: f32[512,256], index: 1, kind: input, shape index: {}]
  %s2 = inlined_call_operand.hbm [shape: bf16[256,512], index: 2, kind: input, shape index: {}]
  %s3 = inlined_call_operand.vmem [shape: f32[1,512], index: 3, kind: input, shape index: {}]
  %s4 = inlined_call_operand.hbm [shape: f32[512,512], index: 4, kind: output, shape index: {}]
  %s5 = sld [smem:[#allocation0]]
  $region67: #{tpu_custom_call.1} parent=0
    _
  %s7 = ssub.s32 1, %s5
  %s8 = scalar_select 0, %s7, %s5
  %10 = dma.hbm_to_smem %s0, 64, [#allocation5], [#allocation4]
  %11 = dma.done [#allocation4], 64
  %12 = sfence
  $region1: #{tpu_custom_call.1} parent=0
    #allocation6 [shape = 'u8[262144]{0}', space=vmem, size = 0x40000, scoped, tag = 'input window, operand 2, single buffered']
    #allocation7 [shape = 's32[2]{0}', space=sflag, size = 0x8, scoped, tag = 'scoped memory for tpu_custom_call.1']
    #allocation8 [shape = 's32[2]{0}', space=sflag, size = 0x8, scoped, tag = 'scoped memory for tpu_custom_call.1']
    #allocation9 [shape = 'u8[524288]{0}', space=vmem, size = 0x80000, scoped, tag = 'output window, operand 0']
    %13 = vsyncpa [#allocation7], 0
    %14 = vsyncpa [#allocation8], 0
    %s15 = scalar_lea.sflag [#allocation8], 1
    %16 = vsyncpa %s15, 0
    loop: start=0, step=1, limit=6
    $region2: #{tpu_custom_call.1} parent=1 // loop_pre_header
      _
    $region3: #{tpu_custom_call.1} parent=1 // loop_header
      %s18 = sphi 0, %s22
      %p19 = scmp.ge.s32.totalorder %s18, 6
      %s25 = sphi 0, %s37
      %s26 = sphi 0, %s33
      %s27 = sphi 0, %s25
      %s28 = sphi 0, %s26
      %s29 = sphi 0, %s27
      %s30 = sphi 0, %s28
      %s38 = sphi 0, %s38
      %s40 = sphi 0, %s38
      %s41 = sphi 0, %s40
      %s55 = sphi 0, %s41
      %s59 = sphi 0, %s59
      %s61 = sphi 0, %s59
      %s62 = sphi 0, %s61
      %s76 = sphi 0, %s62
      %s86 = sphi 0, %s88
      %s89 = sphi 0, %s86
      %s90 = sphi 0, %s89
      %s106 = sphi 0, %s90
    $region4: #{tpu_custom_call.1} parent=1 // loop_header_branch
      %21 = sbr.rel (%p19) target = $region8
    $region5: #{tpu_custom_call.1} parent=1 // loop_body
      %s23 = ssub.s32 %s18, 1
      %s24 = ssub.s32 %s18, 2
      %s31 = sadd.s32 1, %s26
      %p32 = scmp.ge.s32.totalorder %s31, 2
      %s33 = scalar_select %p32, 0, %s31
      %s34 = sadd.s32 1, %s25
      %s35 = scalar_select %p32, %s34, %s25
      %p36 = scmp.ge.s32.totalorder %s35, 2
      %s37 = scalar_select %p36, 0, %s35
      %s39 = sadd.s32 %s38, 1
      %p42 = scmp.eq.s32.totalorder %s18, 3
      %p43 = scmp.ne.s32.totalorder %s38, %s40
      %p44 = scmp.eq.s32.totalorder %s18, 0
      %p45 = por %p43, %p44
      %p46 = scmp.ne.s32.totalorder %s38, %s40
      %p47 = scmp.eq.s32.totalorder %s23, 3
      %p48 = por %p46, %p47
      %p49 = scmp.ne.s32.totalorder %s40, %s41
      %p50 = scmp.eq.s32.totalorder %s23, 0
      %p51 = por %p49, %p50
      %p52 = scmp.ne.s32.totalorder %s40, %s41
      %p53 = scmp.eq.s32.totalorder %s24, 3
      %p54 = por %p52, %p53
      %p56 = scmp.ne.s32.totalorder %s41, %s55
      %p57 = scmp.eq.s32.totalorder %s24, 0
      %p58 = por %p56, %p57
      %s60 = sadd.s32 %s59, 1
      %p63 = scmp.eq.s32.totalorder %s18, 3
      %p64 = scmp.ne.s32.totalorder %s59, %s61
      %p65 = scmp.eq.s32.totalorder %s18, 0
      %p66 = por %p64, %p65
      %p67 = scmp.ne.s32.totalorder %s59, %s61
      %p68 = scmp.eq.s32.totalorder %s23, 3
      %p69 = por %p67, %p68
      %p70 = scmp.ne.s32.totalorder %s61, %s62
      %p71 = scmp.eq.s32.totalorder %s23, 0
      %p72 = por %p70, %p71
      %p73 = scmp.ne.s32.totalorder %s61, %s62
      %p74 = scmp.eq.s32.totalorder %s24, 3
      %p75 = por %p73, %p74
      %p77 = scmp.ne.s32.totalorder %s62, %s76
      %p78 = scmp.eq.s32.totalorder %s24, 0
      %p79 = por %p77, %p78
      %s80 = smul.u32 %s25, 2
      %s81 = sadd.s32 %s80, %s26
      %s82 = smul.u32 %s37, 2
      %s83 = sadd.s32 %s82, %s33
      %s84 = ssub.s32 %s81, %s83
      %p85 = scmp.eq.s32.totalorder %s84, 0
      %s87 = sadd.s32 %s86, 1
      %s88 = scalar_select %p85, %s86, %s87
      %p91 = pneg %p85
      %p92 = scmp.eq.s32.totalorder %s18, 3
      %p93 = por %p91, %p92
      %p94 = scmp.ne.s32.totalorder %s86, %s89
      %p95 = scmp.eq.s32.totalorder %s18, 0
      %p96 = por %p94, %p95
      %p97 = scmp.ne.s32.totalorder %s86, %s89
      %p98 = scmp.eq.s32.totalorder %s23, 3
      %p99 = por %p97, %p98
      %p100 = scmp.ne.s32.totalorder %s89, %s90
      %p101 = scmp.eq.s32.totalorder %s23, 0
      %p102 = por %p100, %p101
      %p103 = scmp.ne.s32.totalorder %s89, %s90
      %p104 = scmp.eq.s32.totalorder %s24, 3
      %p105 = por %p103, %p104
      %p107 = scmp.ne.s32.totalorder %s90, %s106
      %p108 = scmp.eq.s32.totalorder %s24, 0
      %p109 = por %p107, %p108
      %p110 = scmp.le.s32.totalorder 1, %s18
      %p111 = scmp.lt.s32.totalorder %s18, 5
      %p112 = pnand %p110, %p111
      %p113 = pneg %p112
      // Predicated region
      $region9: #{tpu_custom_call.1} parent=5 // pred_check
        _
      $region10: #{tpu_custom_call.1} parent=5 // pred_check_branch
        %115 = sbr.rel (%p112) target = $region12
      $region11: #{tpu_custom_call.1} parent=5 // pred_region
        %s116 = ssub.s32 %s18, 1
        // Predicated region
        $region13: #{tpu_custom_call.1} parent=11 // pred_check
          %p117 = pneg %p51
        $region14: #{tpu_custom_call.1} parent=11 // pred_check_branch
          %119 = sbr.rel (%p117) target = $region16
        $region15: #{tpu_custom_call.1} parent=11 // pred_region
          %s121 = ssub.s32 8192, 8192
          %122 = vsyncadd [#allocation7], %s121
          %s123 = sshll.u32 [#allocation6], 4
          %s124 = int_to_ptr.vmem [resolvable:$true] %s123
          %129 = dma.hbm_to_vmem [thread:$0]  %s2, 8192, %s124, [#allocation7], 256, 256, 16
        $region16: #{tpu_custom_call.1} parent=11 // pred_fallthru
          _
        // Predicated region
        $region17: #{tpu_custom_call.1} parent=11 // pred_check
          %p130 = pneg %p72
        $region18: #{tpu_custom_call.1} parent=11 // pred_check_branch
          %132 = sbr.rel (%p130) target = $region20
        $region19: #{tpu_custom_call.1} parent=11 // pred_region
          _
        $region20: #{tpu_custom_call.1} parent=11 // pred_fallthru
          _
      $region12: #{tpu_custom_call.1} parent=5 // pred_fallthru
        _
      %p133 = scmp.lt.s32.totalorder %s18, 4
      // Predicated region
      $region21: #{tpu_custom_call.1} parent=5 // pred_check
        %p134 = pneg %p133
      $region22: #{tpu_custom_call.1} parent=5 // pred_check_branch
        %136 = sbr.rel (%p134) target = $region24
      $region23: #{tpu_custom_call.1} parent=5 // pred_region
        _
      $region24: #{tpu_custom_call.1} parent=5 // pred_fallthru
        _
      %p137 = scmp.le.s32.totalorder 1, %s18
      %p138 = scmp.lt.s32.totalorder %s18, 5
      %p139 = pnand %p137, %p138
      %p140 = pneg %p139
      // Predicated region
      $region25: #{tpu_custom_call.1} parent=5 // pred_check
        _
      $region26: #{tpu_custom_call.1} parent=5 // pred_check_branch
        %142 = sbr.rel (%p139) target = $region28
      $region27: #{tpu_custom_call.1} parent=5 // pred_region
        %s143 = ssub.s32 %s18, 1
        // Predicated region
        $region29: #{tpu_custom_call.1} parent=27 // pred_check
          %p144 = pneg %p51
        $region30: #{tpu_custom_call.1} parent=27 // pred_check_branch
          %146 = sbr.rel (%p144) target = $region32
        $region31: #{tpu_custom_call.1} parent=27 // pred_region
          %147 = dma.done [#allocation7], 8192
        $region32: #{tpu_custom_call.1} parent=27 // pred_fallthru
          _
        %p148 = pneg %p51
        %p149 = pneg %p48
        %p150 = pneg %p72
        %p151 = pneg %p69
        %p152 = pneg %p102
        %p153 = pneg %p99
        %s154 = sand.u32 %s89, 1
        %s155 = scalar_lea.sflag [#allocation8], %s154
        %s156 = sand.u32 %s89, 1
        %s157 = smul.addr %s156, 512
        %s158 = scalar_lea.vmem [#allocation9], %s157
        %s159 = smul.u32 %s27, 2
        %s160 = sadd.s32 %s159, %s28
        %s161 = smul.u32 16, %s160
        %p162 = scmp.eq.s32.totalorder %s28, 0
        // Predicated region
        $region33: #{tpu_custom_call.1} parent=27 // pred_check
          %p163 = pneg %p162
        $region34: #{tpu_custom_call.1} parent=27 // pred_check_branch
          %165 = sbr.rel (%p163) target = $region36
        $region35: #{tpu_custom_call.1} parent=27 // pred_region
          %s166 = smul.u32 %s27, 256
          loop: start=0, step=1, limit=128
          $region37: #{tpu_custom_call.1} parent=35 // loop_pre_header
            _
          $region38: #{tpu_custom_call.1} parent=35 // loop_header
            %s168 = sphi 0, %s172
            %p169 = scmp.ge.s32.totalorder %s168, 128
          $region39: #{tpu_custom_call.1} parent=35 // loop_header_branch
            %171 = sbr.rel (%p169) target = $region43
          $region40: #{tpu_custom_call.1} parent=35 // loop_body
            %s173 = sadd.s32 %s166, %s168
            %s174 = sld [smem:[#allocation5 + %s173]]
            %s175 = sshrl.u32 %s174, 3
            %s176 = sand.u32 %s174, 7
            %s177 = smul.u32 %s175, 16
            %s178 = sadd.s32 %s176, %s177
            %s179 = smul.addr %s178, 16
            %s180 = scalar_lea.hbm %s1, %s179
            %s181 = sshrl.u32 %s168, 3
            %s182 = sand.u32 %s168, 7
            %s183 = smul.u32 %s181, 16
            %s184 = sadd.s32 %s182, %s183
            %s185 = scalar_lea.vmem [#allocation2], %s184
            %s187 = sshll.u32 %s185, 4
            %s188 = int_to_ptr.vmem [resolvable:$true] %s187
            %190 = dma.hbm_to_vmem [thread:$0]  %s180, 32, %s188, [#allocation3], 128, 128, 1
          $region41: #{tpu_custom_call.1} parent=35 // loop_footer
            %s172 = sadd.s32 1, %s168
          $region42: #{tpu_custom_call.1} parent=35 // loop_footer_branch
            %167 = sbr.rel target = $region38
          $region43: #{tpu_custom_call.1} parent=35 // loop_exit
            _
        $region36: #{tpu_custom_call.1} parent=27 // pred_fallthru
          _
        %s191 = sadd.s32 %s28, 1
        %p192 = scmp.lt.s32.totalorder %s191, 2
        // Predicated region
        $region44: #{tpu_custom_call.1} parent=27 // pred_check
          %p193 = pneg %p192
        $region45: #{tpu_custom_call.1} parent=27 // pred_check_branch
          %195 = sbr.rel (%p193) target = $region47
        $region46: #{tpu_custom_call.1} parent=27 // pred_region
          %s196 = smul.u32 %s27, 2
          %s197 = sadd.s32 %s196, %s28
          %s198 = sadd.s32 %s197, 1
          %p199 = scmp.lt.s32.totalorder %s191, 0
          %s200 = ssub.s32 0, %s191
          %s201 = scalar_select %p199, %s200, %s191
          %s202 = sand.u32 %s201, 1
          %s203 = ssub.s32 0, %s202
          %s204 = scalar_select %p199, %s203, %s202
          %p205 = scmp.ne.s32.totalorder %s204, 0
          %p206 = scmp.lt.s32.totalorder %s204, 0
          %p207 = pnand %p206, %p205
          %p208 = pneg %p207
          %s209 = sadd.s32 %s204, 2
          %s210 = scalar_select %p208, %s209, %s204
          %s211 = smul.u32 %s198, 128
          loop: start=0, step=1, limit=128
          $region48: #{tpu_custom_call.1} parent=46 // loop_pre_header
            _
          $region49: #{tpu_custom_call.1} parent=46 // loop_header
            %s213 = sphi 0, %s217
            %p214 = scmp.ge.s32.totalorder %s213, 128
          $region50: #{tpu_custom_call.1} parent=46 // loop_header_branch
            %216 = sbr.rel (%p214) target = $region54
          $region51: #{tpu_custom_call.1} parent=46 // loop_body
            %s218 = sadd.s32 %s211, %s213
            %s219 = sld [smem:[#allocation5 + %s218]]
            %s220 = sshrl.u32 %s219, 3
            %s221 = sand.u32 %s219, 7
            %s222 = smul.u32 %s220, 16
            %s223 = sadd.s32 %s221, %s222
            %s224 = smul.addr %s223, 16
            %s225 = scalar_lea.hbm %s1, %s224
            %s226 = sshrl.u32 %s213, 3
            %s227 = sand.u32 %s213, 7
            %s228 = smul.u32 %s226, 16
            %s229 = sadd.s32 %s227, %s228
            %s230 = smul.u32 %s210, 256
            %s231 = sadd.s32 %s229, %s230
            %s232 = scalar_lea.vmem [#allocation2], %s231
            %s233 = scalar_lea.sflag [#allocation3], %s210
            %s235 = sshll.u32 %s232, 4
            %s236 = int_to_ptr.vmem [resolvable:$true] %s235
            %238 = dma.hbm_to_vmem [thread:$0]  %s225, 32, %s236, %s233, 128, 128, 1
          $region52: #{tpu_custom_call.1} parent=46 // loop_footer
            %s217 = sadd.s32 1, %s213
          $region53: #{tpu_custom_call.1} parent=46 // loop_footer_branch
            %212 = sbr.rel target = $region49
          $region54: #{tpu_custom_call.1} parent=46 // loop_exit
            _
        $region47: #{tpu_custom_call.1} parent=27 // pred_fallthru
          _
        %p239 = scmp.lt.s32.totalorder %s28, 0
        %s240 = ssub.s32 0, %s28
        %s241 = scalar_select %p239, %s240, %s28
        %s242 = sand.u32 %s241, 1
        %s243 = ssub.s32 0, %s242
        %s244 = scalar_select %p239, %s243, %s242
        %p245 = scmp.ne.s32.totalorder %s244, 0
        %p246 = scmp.lt.s32.totalorder %s244, 0
        %p247 = pnand %p246, %p245
        %p248 = pneg %p247
        %s249 = sadd.s32 %s244, 2
        %s250 = scalar_select %p248, %s249, %s244
        %s251 = smul.u32 %s250, 32
        %s252 = smul.addr %s251, 8
        %s253 = scalar_lea.vmem [#allocation2], %s252
        %s254 = scalar_lea.sflag [#allocation3], %s250
        %s255 = smul.u32 8, 16
        %s256 = smul.u32 %s255, 2
        %s257 = sshll.u32 %s256, 4
        %258 = dma.done %s254, %s257
        %v259 = vld [vmem:[%s253] sm:$0xff]
        %v260 = vld [vmem:[%s253 + $0x8] sm:$0xff]
        %v261 = vld [vmem:[%s253 + $0x10] sm:$0xff]
        %v262 = vld [vmem:[%s253 + $0x18] sm:$0xff]
        %v263 = vld [vmem:[%s253 + $0x20] sm:$0xff]
        %v264 = vld [vmem:[%s253 + $0x28] sm:$0xff]
        %v265 = vld [vmem:[%s253 + $0x30] sm:$0xff]
        %v266 = vld [vmem:[%s253 + $0x38] sm:$0xff]
        %v267 = vld [vmem:[%s253 + $0x40] sm:$0xff]
        %v268 = vld [vmem:[%s253 + $0x48] sm:$0xff]
        %v269 = vld [vmem:[%s253 + $0x50] sm:$0xff]
        %v270 = vld [vmem:[%s253 + $0x58] sm:$0xff]
        %v271 = vld [vmem:[%s253 + $0x60] sm:$0xff]
        %v272 = vld [vmem:[%s253 + $0x68] sm:$0xff]
        %v273 = vld [vmem:[%s253 + $0x70] sm:$0xff]
        %v274 = vld [vmem:[%s253 + $0x78] sm:$0xff]
        %v275 = vld [vmem:[%s253 + $0x80] sm:$0xff]
        %v276 = vld [vmem:[%s253 + $0x88] sm:$0xff]
        %v277 = vld [vmem:[%s253 + $0x90] sm:$0xff]
        %v278 = vld [vmem:[%s253 + $0x98] sm:$0xff]
        %v279 = vld [vmem:[%s253 + $0xa0] sm:$0xff]
        %v280 = vld [vmem:[%s253 + $0xa8] sm:$0xff]
        %v281 = vld [vmem:[%s253 + $0xb0] sm:$0xff]
        %v282 = vld [vmem:[%s253 + $0xb8] sm:$0xff]
        %v283 = vld [vmem:[%s253 + $0xc0] sm:$0xff]
        %v284 = vld [vmem:[%s253 + $0xc8] sm:$0xff]
        %v285 = vld [vmem:[%s253 + $0xd0] sm:$0xff]
        %v286 = vld [vmem:[%s253 + $0xd8] sm:$0xff]
        %v287 = vld [vmem:[%s253 + $0xe0] sm:$0xff]
        %v288 = vld [vmem:[%s253 + $0xe8] sm:$0xff]
        %v289 = vld [vmem:[%s253 + $0xf0] sm:$0xff]
        %v290 = vld [vmem:[%s253 + $0xf8] sm:$0xff]
        %v291 = vpack.c.bf16 %v261, %v259
        %v292 = vpack.c.bf16 %v262, %v260
        %v293 = vpack.c.bf16 %v265, %v263
        %v294 = vpack.c.bf16 %v266, %v264
        %v295 = vpack.c.bf16 %v269, %v267
        %v296 = vpack.c.bf16 %v270, %v268
        %v297 = vpack.c.bf16 %v273, %v271
        %v298 = vpack.c.bf16 %v274, %v272
        %v299 = vpack.c.bf16 %v277, %v275
        %v300 = vpack.c.bf16 %v278, %v276
        %v301 = vpack.c.bf16 %v281, %v279
        %v302 = vpack.c.bf16 %v282, %v280
        %v303 = vpack.c.bf16 %v285, %v283
        %v304 = vpack.c.bf16 %v286, %v284
        %v305 = vpack.c.bf16 %v289, %v287
        %v306 = vpack.c.bf16 %v290, %v288
        %v307 = vld [vmem:[#allocation6] sm:$0xff]
        %v308 = vld [vmem:[#allocation6 + $0x8] sm:$0xff]
        %v309 = vld [vmem:[#allocation6 + $0x10] sm:$0xff]
        %v310 = vld [vmem:[#allocation6 + $0x18] sm:$0xff]
        %v311 = vld [vmem:[#allocation6 + $0x20] sm:$0xff]
        %v312 = vld [vmem:[#allocation6 + $0x28] sm:$0xff]
        %v313 = vld [vmem:[#allocation6 + $0x30] sm:$0xff]
        %v314 = vld [vmem:[#allocation6 + $0x38] sm:$0xff]
        %v315 = vld [vmem:[#allocation6 + $0x40] sm:$0xff]
        %v316 = vld [vmem:[#allocation6 + $0x48] sm:$0xff]
        %v317 = vld [vmem:[#allocation6 + $0x50] sm:$0xff]
        %v318 = vld [vmem:[#allocation6 + $0x58] sm:$0xff]
        %v319 = vld [vmem:[#allocation6 + $0x60] sm:$0xff]
        %v320 = vld [vmem:[#allocation6 + $0x68] sm:$0xff]
        %v321 = vld [vmem:[#allocation6 + $0x70] sm:$0xff]
        %v322 = vld [vmem:[#allocation6 + $0x78] sm:$0xff]
        %v323 = vld [vmem:[#allocation6 + $0x80] sm:$0xff]
        %v324 = vld [vmem:[#allocation6 + $0x88] sm:$0xff]
        %v325 = vld [vmem:[#allocation6 + $0x90] sm:$0xff]
        %v326 = vld [vmem:[#allocation6 + $0x98] sm:$0xff]
        %v327 = vld [vmem:[#allocation6 + $0xa0] sm:$0xff]
        %v328 = vld [vmem:[#allocation6 + $0xa8] sm:$0xff]
        %v329 = vld [vmem:[#allocation6 + $0xb0] sm:$0xff]
        %v330 = vld [vmem:[#allocation6 + $0xb8] sm:$0xff]
        %v331 = vld [vmem:[#allocation6 + $0xc0] sm:$0xff]
        %v332 = vld [vmem:[#allocation6 + $0xc8] sm:$0xff]
        %v333 = vld [vmem:[#allocation6 + $0xd0] sm:$0xff]
        %v334 = vld [vmem:[#allocation6 + $0xd8] sm:$0xff]
        %v335 = vld [vmem:[#allocation6 + $0xe0] sm:$0xff]
        %v336 = vld [vmem:[#allocation6 + $0xe8] sm:$0xff]
        %v337 = vld [vmem:[#allocation6 + $0xf0] sm:$0xff]
        %v338 = vld [vmem:[#allocation6 + $0xf8] sm:$0xff]
        %v339 = vld [vmem:[#allocation6 + $0x100] sm:$0xff]
        %v340 = vld [vmem:[#allocation6 + $0x108] sm:$0xff]
        %v341 = vld [vmem:[#allocation6 + $0x110] sm:$0xff]
        %v342 = vld [vmem:[#allocation6 + $0x118] sm:$0xff]
        %v343 = vld [vmem:[#allocation6 + $0x120] sm:$0xff]
        %v344 = vld [vmem:[#allocation6 + $0x128] sm:$0xff]
        %v345 = vld [vmem:[#allocation6 + $0x130] sm:$0xff]
        %v346 = vld [vmem:[#allocation6 + $0x138] sm:$0xff]
        %v347 = vld [vmem:[#allocation6 + $0x140] sm:$0xff]
        %v348 = vld [vmem:[#allocation6 + $0x148] sm:$0xff]
        %v349 = vld [vmem:[#allocation6 + $0x150] sm:$0xff]
        %v350 = vld [vmem:[#allocation6 + $0x158] sm:$0xff]
        %v351 = vld [vmem:[#allocation6 + $0x160] sm:$0xff]
        %v352 = vld [vmem:[#allocation6 + $0x168] sm:$0xff]
        %v353 = vld [vmem:[#allocation6 + $0x170] sm:$0xff]
        %v354 = vld [vmem:[#allocation6 + $0x178] sm:$0xff]
        %v355 = vld [vmem:[#allocation6 + $0x180] sm:$0xff]
        %v356 = vld [vmem:[#allocation6 + $0x188] sm:$0xff]
        %v357 = vld [vmem:[#allocation6 + $0x190] sm:$0xff]
        %v358 = vld [vmem:[#allocation6 + $0x198] sm:$0xff]
        %v359 = vld [vmem:[#allocation6 + $0x1a0] sm:$0xff]
        %v360 = vld [vmem:[#allocation6 + $0x1a8] sm:$0xff]
        %v361 = vld [vmem:[#allocation6 + $0x1b0] sm:$0xff]
        %v362 = vld [vmem:[#allocation6 + $0x1b8] sm:$0xff]
        %v363 = vld [vmem:[#allocation6 + $0x1c0] sm:$0xff]
        %v364 = vld [vmem:[#allocation6 + $0x1c8] sm:$0xff]
        %v365 = vld [vmem:[#allocation6 + $0x1d0] sm:$0xff]
        %v366 = vld [vmem:[#allocation6 + $0x1d8] sm:$0xff]
        %v367 = vld [vmem:[#allocation6 + $0x1e0] sm:$0xff]
        %v368 = vld [vmem:[#allocation6 + $0x1e8] sm:$0xff]
        %v369 = vld [vmem:[#allocation6 + $0x1f0] sm:$0xff]
        %v370 = vld [vmem:[#allocation6 + $0x1f8] sm:$0xff]
        %v371 = vld [vmem:[%s3] sm:$0xf]
        %v373 = vlaneseq
        %v374 = vshrl.u32 %v373, 7
        %v375 = vsub.s32 0, %v374
        %v376 = vrot.slane %v371, %v375
        %v377 = vlaneseq
        %v378 = vshrl.u32 %v377, 7
        %v379 = vsub.s32 1, %v378
        %v380 = vrot.slane %v371, %v379
        %v381 = vlaneseq
        %v382 = vshrl.u32 %v381, 7
        %v383 = vsub.s32 2, %v382
        %v384 = vrot.slane %v371, %v383
        %v385 = vlaneseq
        %v386 = vshrl.u32 %v385, 7
        %v387 = vsub.s32 3, %v386
        %v388 = vrot.slane %v371, %v387
        %v457 = vunpack.c.l.b16 %v307
        %v458 = vunpack.c.h.b16 %v307
        %v459 = vunpack.c.l.b16 %v308
        %v460 = vunpack.c.h.b16 %v308
        %v461 = vunpack.c.l.b16 %v309
        %v462 = vunpack.c.h.b16 %v309
        %v463 = vunpack.c.l.b16 %v310
        %v464 = vunpack.c.h.b16 %v310
        %v465 = vunpack.c.l.b16 %v311
        %v466 = vunpack.c.h.b16 %v311
        %v467 = vunpack.c.l.b16 %v312
        %v468 = vunpack.c.h.b16 %v312
        %v469 = vunpack.c.l.b16 %v313
        %v470 = vunpack.c.h.b16 %v313
        %v471 = vunpack.c.l.b16 %v314
        %v472 = vunpack.c.h.b16 %v314
        %v473 = vunpack.c.l.b16 %v315
        %v474 = vunpack.c.h.b16 %v315
        %v475 = vunpack.c.l.b16 %v316
        %v476 = vunpack.c.h.b16 %v316
        %v477 = vunpack.c.l.b16 %v317
        %v478 = vunpack.c.h.b16 %v317
        %v479 = vunpack.c.l.b16 %v318
        %v480 = vunpack.c.h.b16 %v318
        %v481 = vunpack.c.l.b16 %v319
        %v482 = vunpack.c.h.b16 %v319
        %v483 = vunpack.c.l.b16 %v320
        %v484 = vunpack.c.h.b16 %v320
        %v485 = vunpack.c.l.b16 %v321
        %v486 = vunpack.c.h.b16 %v321
        %v487 = vunpack.c.l.b16 %v322
        %v488 = vunpack.c.h.b16 %v322
        %v489 = vunpack.c.l.b16 %v323
        %v490 = vunpack.c.h.b16 %v323
        %v491 = vunpack.c.l.b16 %v324
        %v492 = vunpack.c.h.b16 %v324
        %v493 = vunpack.c.l.b16 %v325
        %v494 = vunpack.c.h.b16 %v325
        %v495 = vunpack.c.l.b16 %v326
        %v496 = vunpack.c.h.b16 %v326
        %v497 = vunpack.c.l.b16 %v327
        %v498 = vunpack.c.h.b16 %v327
        %v499 = vunpack.c.l.b16 %v328
        %v500 = vunpack.c.h.b16 %v328
        %v501 = vunpack.c.l.b16 %v329
        %v502 = vunpack.c.h.b16 %v329
        %v503 = vunpack.c.l.b16 %v330
        %v504 = vunpack.c.h.b16 %v330
        %v505 = vunpack.c.l.b16 %v331
        %v506 = vunpack.c.h.b16 %v331
        %v507 = vunpack.c.l.b16 %v332
        %v508 = vunpack.c.h.b16 %v332
        %v509 = vunpack.c.l.b16 %v333
        %v510 = vunpack.c.h.b16 %v333
        %v511 = vunpack.c.l.b16 %v334
        %v512 = vunpack.c.h.b16 %v334
        %v513 = vunpack.c.l.b16 %v335
        %v514 = vunpack.c.h.b16 %v335
        %v515 = vunpack.c.l.b16 %v336
        %v516 = vunpack.c.h.b16 %v336
        %v517 = vunpack.c.l.b16 %v337
        %v518 = vunpack.c.h.b16 %v337
        %v519 = vunpack.c.l.b16 %v338
        %v520 = vunpack.c.h.b16 %v338
        %v521 = vunpack.c.l.b16 %v339
        %v522 = vunpack.c.h.b16 %v339
        %v523 = vunpack.c.l.b16 %v340
        %v524 = vunpack.c.h.b16 %v340
        %v525 = vunpack.c.l.b16 %v341
        %v526 = vunpack.c.h.b16 %v341
        %v527 = vunpack.c.l.b16 %v342
        %v528 = vunpack.c.h.b16 %v342
        %v529 = vunpack.c.l.b16 %v343
        %v530 = vunpack.c.h.b16 %v343
        %v531 = vunpack.c.l.b16 %v344
        %v532 = vunpack.c.h.b16 %v344
        %v533 = vunpack.c.l.b16 %v345
        %v534 = vunpack.c.h.b16 %v345
        %v535 = vunpack.c.l.b16 %v346
        %v536 = vunpack.c.h.b16 %v346
        %v537 = vunpack.c.l.b16 %v347
        %v538 = vunpack.c.h.b16 %v347
        %v539 = vunpack.c.l.b16 %v348
        %v540 = vunpack.c.h.b16 %v348
        %v541 = vunpack.c.l.b16 %v349
        %v542 = vunpack.c.h.b16 %v349
        %v543 = vunpack.c.l.b16 %v350
        %v544 = vunpack.c.h.b16 %v350
        %v545 = vunpack.c.l.b16 %v351
        %v546 = vunpack.c.h.b16 %v351
        %v547 = vunpack.c.l.b16 %v352
        %v548 = vunpack.c.h.b16 %v352
        %v549 = vunpack.c.l.b16 %v353
        %v550 = vunpack.c.h.b16 %v353
        %v551 = vunpack.c.l.b16 %v354
        %v552 = vunpack.c.h.b16 %v354
        %v553 = vunpack.c.l.b16 %v355
        %v554 = vunpack.c.h.b16 %v355
        %v555 = vunpack.c.l.b16 %v356
        %v556 = vunpack.c.h.b16 %v356
        %v557 = vunpack.c.l.b16 %v357
        %v558 = vunpack.c.h.b16 %v357
        %v559 = vunpack.c.l.b16 %v358
        %v560 = vunpack.c.h.b16 %v358
        %v561 = vunpack.c.l.b16 %v359
        %v562 = vunpack.c.h.b16 %v359
        %v563 = vunpack.c.l.b16 %v360
        %v564 = vunpack.c.h.b16 %v360
        %v565 = vunpack.c.l.b16 %v361
        %v566 = vunpack.c.h.b16 %v361
        %v567 = vunpack.c.l.b16 %v362
        %v568 = vunpack.c.h.b16 %v362
        %v569 = vunpack.c.l.b16 %v363
        %v570 = vunpack.c.h.b16 %v363
        %v571 = vunpack.c.l.b16 %v364
        %v572 = vunpack.c.h.b16 %v364
        %v573 = vunpack.c.l.b16 %v365
        %v574 = vunpack.c.h.b16 %v365
        %v575 = vunpack.c.l.b16 %v366
        %v576 = vunpack.c.h.b16 %v366
        %v577 = vunpack.c.l.b16 %v367
        %v578 = vunpack.c.h.b16 %v367
        %v579 = vunpack.c.l.b16 %v368
        %v580 = vunpack.c.h.b16 %v368
        %v581 = vunpack.c.l.b16 %v369
        %v582 = vunpack.c.h.b16 %v369
        %v583 = vunpack.c.l.b16 %v370
        %v584 = vunpack.c.h.b16 %v370
        %v585 = vpack.c.b16 %v461, %v457
        %v586 = vpack.c.b16 %v462, %v458
        %v587 = vpack.c.b16 %v463, %v459
        %v588 = vpack.c.b16 %v464, %v460
        %v589 = vpack.c.b16 %v469, %v465
        %v590 = vpack.c.b16 %v470, %v466
        %v591 = vpack.c.b16 %v471, %v467
        %v592 = vpack.c.b16 %v472, %v468
        %v593 = vpack.c.b16 %v477, %v473
        %v594 = vpack.c.b16 %v478, %v474
        %v595 = vpack.c.b16 %v479, %v475
        %v596 = vpack.c.b16 %v480, %v476
        %v597 = vpack.c.b16 %v485, %v481
        %v598 = vpack.c.b16 %v486, %v482
        %v599 = vpack.c.b16 %v487, %v483
        %v600 = vpack.c.b16 %v488, %v484
        %v601 = vpack.c.b16 %v493, %v489
        %v602 = vpack.c.b16 %v494, %v490
        %v603 = vpack.c.b16 %v495, %v491
        %v604 = vpack.c.b16 %v496, %v492
        %v605 = vpack.c.b16 %v501, %v497
        %v606 = vpack.c.b16 %v502, %v498
        %v607 = vpack.c.b16 %v503, %v499
        %v608 = vpack.c.b16 %v504, %v500
        %v609 = vpack.c.b16 %v509, %v505
        %v610 = vpack.c.b16 %v510, %v506
        %v611 = vpack.c.b16 %v511, %v507
        %v612 = vpack.c.b16 %v512, %v508
        %v613 = vpack.c.b16 %v517, %v513
        %v614 = vpack.c.b16 %v518, %v514
        %v615 = vpack.c.b16 %v519, %v515
        %v616 = vpack.c.b16 %v520, %v516
        %v617 = vpack.c.b16 %v525, %v521
        %v618 = vpack.c.b16 %v526, %v522
        %v619 = vpack.c.b16 %v527, %v523
        %v620 = vpack.c.b16 %v528, %v524
        %v621 = vpack.c.b16 %v533, %v529
        %v622 = vpack.c.b16 %v534, %v530
        %v623 = vpack.c.b16 %v535, %v531
        %v624 = vpack.c.b16 %v536, %v532
        %v625 = vpack.c.b16 %v541, %v537
        %v626 = vpack.c.b16 %v542, %v538
        %v627 = vpack.c.b16 %v543, %v539
        %v628 = vpack.c.b16 %v544, %v540
        %v629 = vpack.c.b16 %v549, %v545
        %v630 = vpack.c.b16 %v550, %v546
        %v631 = vpack.c.b16 %v551, %v547
        %v632 = vpack.c.b16 %v552, %v548
        %v633 = vpack.c.b16 %v557, %v553
        %v634 = vpack.c.b16 %v558, %v554
        %v635 = vpack.c.b16 %v559, %v555
        %v636 = vpack.c.b16 %v560, %v556
        %v637 = vpack.c.b16 %v565, %v561
        %v638 = vpack.c.b16 %v566, %v562
        %v639 = vpack.c.b16 %v567, %v563
        %v640 = vpack.c.b16 %v568, %v564
        %v641 = vpack.c.b16 %v573, %v569
        %v642 = vpack.c.b16 %v574, %v570
        %v643 = vpack.c.b16 %v575, %v571
        %v644 = vpack.c.b16 %v576, %v572
        %v645 = vpack.c.b16 %v581, %v577
        %v646 = vpack.c.b16 %v582, %v578
        %v647 = vpack.c.b16 %v583, %v579
        %v648 = vpack.c.b16 %v584, %v580
        %713 = vmatprep.subr.bf16.mxu0 %v586
        %714 = vmatpush1.bf16.msra.mxu0 %v585
        %715 = vmatprep.subr.bf16.mxu0 %v590
        %716 = vmatpush1.bf16.msra.mxu0 %v589
        %717 = vmatprep.subr.bf16.mxu0 %v594
        %718 = vmatpush1.bf16.msra.mxu0 %v593
        %719 = vmatprep.subr.bf16.mxu0 %v598
        %720 = vmatpush1.bf16.msra.mxu0 %v597
        %721 = vmatprep.subr.bf16.mxu0 %v602
        %722 = vmatpush1.bf16.msra.mxu0 %v601
        %723 = vmatprep.subr.bf16.mxu0 %v606
        %724 = vmatpush1.bf16.msra.mxu0 %v605
        %725 = vmatprep.subr.bf16.mxu0 %v610
        %726 = vmatpush1.bf16.msra.mxu0 %v609
        %727 = vmatprep.subr.bf16.mxu0 %v614
        %728 = vmatpush1.bf16.msra.mxu0 %v613
        %729 = vmatprep.subr.bf16.mxu0 %v618
        %730 = vmatpush1.bf16.msra.mxu0 %v617
        %731 = vmatprep.subr.bf16.mxu0 %v622
        %732 = vmatpush1.bf16.msra.mxu0 %v621
        %733 = vmatprep.subr.bf16.mxu0 %v626
        %734 = vmatpush1.bf16.msra.mxu0 %v625
        %735 = vmatprep.subr.bf16.mxu0 %v630
        %736 = vmatpush1.bf16.msra.mxu0 %v629
        %737 = vmatprep.subr.bf16.mxu0 %v634
        %738 = vmatpush1.bf16.msra.mxu0 %v633
        %739 = vmatprep.subr.bf16.mxu0 %v638
        %740 = vmatpush1.bf16.msra.mxu0 %v637
        %741 = vmatprep.subr.bf16.mxu0 %v642
        %742 = vmatpush1.bf16.msra.mxu0 %v641
        %743 = vmatprep.subr.bf16.mxu0 %v646
        %744 = vmatpush1.bf16.msra.mxu0 %v645
        %745 = vmatprep.mubr.bf16.mxu0 %v292
        %746 = vmatmul.mubr.bf16.gmra.mrb[0].mxu0 %v291
        %v747 = vpop.f32.mrb[0].mxu0
        %v748 = vadd.f32 %v376, %v747
        %v749 = vpop.f32.mrb[0].mxu0
        %v750 = vadd.f32 %v380, %v749
        %v751 = vpop.f32.mrb[0].mxu0
        %v752 = vadd.f32 %v376, %v751
        %v753 = vpop.f32.mrb[0].mxu0
        %v754 = vadd.f32 %v380, %v753
        %755 = vmatprep.mubr.bf16.mxu0 %v294
        %756 = vmatmul.mubr.bf16.gmra.mrb[0].mxu0 %v293
        %v757 = vpop.f32.mrb[0].mxu0
        %v758 = vadd.f32 %v376, %v757
        %v759 = vpop.f32.mrb[0].mxu0
        %v760 = vadd.f32 %v380, %v759
        %v761 = vpop.f32.mrb[0].mxu0
        %v762 = vadd.f32 %v376, %v761
        %v763 = vpop.f32.mrb[0].mxu0
        %v764 = vadd.f32 %v380, %v763
        %765 = vmatprep.mubr.bf16.mxu0 %v296
        %766 = vmatmul.mubr.bf16.gmra.mrb[0].mxu0 %v295
        %v767 = vpop.f32.mrb[0].mxu0
        %v768 = vadd.f32 %v376, %v767
        %v769 = vpop.f32.mrb[0].mxu0
        %v770 = vadd.f32 %v380, %v769
        %v771 = vpop.f32.mrb[0].mxu0
        %v772 = vadd.f32 %v376, %v771
        %v773 = vpop.f32.mrb[0].mxu0
        %v774 = vadd.f32 %v380, %v773
        %775 = vmatprep.mubr.bf16.mxu0 %v298
        %776 = vmatmul.mubr.bf16.gmra.mrb[0].mxu0 %v297
        %v777 = vpop.f32.mrb[0].mxu0
        %v778 = vadd.f32 %v376, %v777
        %v779 = vpop.f32.mrb[0].mxu0
        %v780 = vadd.f32 %v380, %v779
        %v781 = vpop.f32.mrb[0].mxu0
        %v782 = vadd.f32 %v376, %v781
        %v783 = vpop.f32.mrb[0].mxu0
        %v784 = vadd.f32 %v380, %v783
        %785 = vmatprep.mubr.bf16.mxu0 %v300
        %786 = vmatmul.mubr.bf16.gmra.mrb[0].mxu0 %v299
        %v787 = vpop.f32.mrb[0].mxu0
        %v788 = vadd.f32 %v376, %v787
        %v789 = vpop.f32.mrb[0].mxu0
        %v790 = vadd.f32 %v380, %v789
        %v791 = vpop.f32.mrb[0].mxu0
        %v792 = vadd.f32 %v376, %v791
        %v793 = vpop.f32.mrb[0].mxu0
        %v794 = vadd.f32 %v380, %v793
        %795 = vmatprep.mubr.bf16.mxu0 %v302
        %796 = vmatmul.mubr.bf16.gmra.mrb[0].mxu0 %v301
        %v797 = vpop.f32.mrb[0].mxu0
        %v798 = vadd.f32 %v376, %v797
        %v799 = vpop.f32.mrb[0].mxu0
        %v800 = vadd.f32 %v380, %v799
        %v801 = vpop.f32.mrb[0].mxu0
        %v802 = vadd.f32 %v376, %v801
        %v803 = vpop.f32.mrb[0].mxu0
        %v804 = vadd.f32 %v380, %v803
        %805 = vmatprep.mubr.bf16.mxu0 %v304
        %806 = vmatmul.mubr.bf16.gmra.mrb[0].mxu0 %v303
        %v807 = vpop.f32.mrb[0].mxu0
        %v808 = vadd.f32 %v376, %v807
        %v809 = vpop.f32.mrb[0].mxu0
        %v810 = vadd.f32 %v380, %v809
        %v811 = vpop.f32.mrb[0].mxu0
        %v812 = vadd.f32 %v376, %v811
        %v813 = vpop.f32.mrb[0].mxu0
        %v814 = vadd.f32 %v380, %v813
        %815 = vmatprep.mubr.bf16.mxu0 %v306
        %816 = vmatmul.mubr.bf16.gmra.mrb[0].mxu0 %v305
        %v817 = vpop.f32.mrb[0].mxu0
        %v818 = vadd.f32 %v376, %v817
        %v819 = vpop.f32.mrb[0].mxu0
        %v820 = vadd.f32 %v380, %v819
        %v821 = vpop.f32.mrb[0].mxu0
        %v822 = vadd.f32 %v376, %v821
        %v823 = vpop.f32.mrb[0].mxu0
        %v824 = vadd.f32 %v380, %v823
        %825 = vdwg.mxu0
        %826 = vmatprep.subr.bf16.mxu0 %v588
        %827 = vmatpush1.bf16.msra.mxu0 %v587
        %828 = vmatprep.subr.bf16.mxu0 %v592
        %829 = vmatpush1.bf16.msra.mxu0 %v591
        %830 = vmatprep.subr.bf16.mxu0 %v596
        %831 = vmatpush1.bf16.msra.mxu0 %v595
        %832 = vmatprep.subr.bf16.mxu0 %v600
        %833 = vmatpush1.bf16.msra.mxu0 %v599
        %834 = vmatprep.subr.bf16.mxu0 %v604
        %835 = vmatpush1.bf16.msra.mxu0 %v603
        %836 = vmatprep.subr.bf16.mxu0 %v608
        %837 = vmatpush1.bf16.msra.mxu0 %v607
        %838 = vmatprep.subr.bf16.mxu0 %v612
        %839 = vmatpush1.bf16.msra.mxu0 %v611
        %840 = vmatprep.subr.bf16.mxu0 %v616
        %841 = vmatpush1.bf16.msra.mxu0 %v615
        %842 = vmatprep.subr.bf16.mxu0 %v620
        %843 = vmatpush1.bf16.msra.mxu0 %v619
        %844 = vmatprep.subr.bf16.mxu0 %v624
        %845 = vmatpush1.bf16.msra.mxu0 %v623
        %846 = vmatprep.subr.bf16.mxu0 %v628
        %847 = vmatpush1.bf16.msra.mxu0 %v627
        %848 = vmatprep.subr.bf16.mxu0 %v632
        %849 = vmatpush1.bf16.msra.mxu0 %v631
        %850 = vmatprep.subr.bf16.mxu0 %v636
        %851 = vmatpush1.bf16.msra.mxu0 %v635
        %852 = vmatprep.subr.bf16.mxu0 %v640
        %853 = vmatpush1.bf16.msra.mxu0 %v639
        %854 = vmatprep.subr.bf16.mxu0 %v644
        %855 = vmatpush1.bf16.msra.mxu0 %v643
        %856 = vmatprep.subr.bf16.mxu0 %v648
        %857 = vmatpush1.bf16.msra.mxu0 %v647
        %858 = vmatprep.mubr.bf16.mxu0 %v292
        %859 = vmatmul.mubr.bf16.gmra.mrb[0].mxu0 %v291
        %v860 = vpop.f32.mrb[0].mxu0
        %v861 = vadd.f32 %v384, %v860
        %v862 = vpop.f32.mrb[0].mxu0
        %v863 = vadd.f32 %v388, %v862
        %v864 = vpop.f32.mrb[0].mxu0
        %v865 = vadd.f32 %v384, %v864
        %v866 = vpop.f32.mrb[0].mxu0
        %v867 = vadd.f32 %v388, %v866
        %868 = vmatprep.mubr.bf16.mxu0 %v294
        %869 = vmatmul.mubr.bf16.gmra.mrb[0].mxu0 %v293
        %v870 = vpop.f32.mrb[0].mxu0
        %v871 = vadd.f32 %v384, %v870
        %v872 = vpop.f32.mrb[0].mxu0
        %v873 = vadd.f32 %v388, %v872
        %v874 = vpop.f32.mrb[0].mxu0
        %v875 = vadd.f32 %v384, %v874
        %v876 = vpop.f32.mrb[0].mxu0
        %v877 = vadd.f32 %v388, %v876
        %878 = vmatprep.mubr.bf16.mxu0 %v296
        %879 = vmatmul.mubr.bf16.gmra.mrb[0].mxu0 %v295
        %v880 = vpop.f32.mrb[0].mxu0
        %v881 = vadd.f32 %v384, %v880
        %v882 = vpop.f32.mrb[0].mxu0
        %v883 = vadd.f32 %v388, %v882
        %v884 = vpop.f32.mrb[0].mxu0
        %v885 = vadd.f32 %v384, %v884
        %v886 = vpop.f32.mrb[0].mxu0
        %v887 = vadd.f32 %v388, %v886
        %888 = vmatprep.mubr.bf16.mxu0 %v298
        %889 = vmatmul.mubr.bf16.gmra.mrb[0].mxu0 %v297
        %v890 = vpop.f32.mrb[0].mxu0
        %v891 = vadd.f32 %v384, %v890
        %v892 = vpop.f32.mrb[0].mxu0
        %v893 = vadd.f32 %v388, %v892
        %v894 = vpop.f32.mrb[0].mxu0
        %v895 = vadd.f32 %v384, %v894
        %v896 = vpop.f32.mrb[0].mxu0
        %v897 = vadd.f32 %v388, %v896
        %898 = vmatprep.mubr.bf16.mxu0 %v300
        %899 = vmatmul.mubr.bf16.gmra.mrb[0].mxu0 %v299
        %v900 = vpop.f32.mrb[0].mxu0
        %v901 = vadd.f32 %v384, %v900
        %v902 = vpop.f32.mrb[0].mxu0
        %v903 = vadd.f32 %v388, %v902
        %v904 = vpop.f32.mrb[0].mxu0
        %v905 = vadd.f32 %v384, %v904
        %v906 = vpop.f32.mrb[0].mxu0
        %v907 = vadd.f32 %v388, %v906
        %908 = vmatprep.mubr.bf16.mxu0 %v302
        %909 = vmatmul.mubr.bf16.gmra.mrb[0].mxu0 %v301
        %v910 = vpop.f32.mrb[0].mxu0
        %v911 = vadd.f32 %v384, %v910
        %v912 = vpop.f32.mrb[0].mxu0
        %v913 = vadd.f32 %v388, %v912
        %v914 = vpop.f32.mrb[0].mxu0
        %v915 = vadd.f32 %v384, %v914
        %v916 = vpop.f32.mrb[0].mxu0
        %v917 = vadd.f32 %v388, %v916
        %918 = vmatprep.mubr.bf16.mxu0 %v304
        %919 = vmatmul.mubr.bf16.gmra.mrb[0].mxu0 %v303
        %v920 = vpop.f32.mrb[0].mxu0
        %v921 = vadd.f32 %v384, %v920
        %v922 = vpop.f32.mrb[0].mxu0
        %v923 = vadd.f32 %v388, %v922
        %v924 = vpop.f32.mrb[0].mxu0
        %v925 = vadd.f32 %v384, %v924
        %v926 = vpop.f32.mrb[0].mxu0
        %v927 = vadd.f32 %v388, %v926
        %928 = vmatprep.mubr.bf16.mxu0 %v306
        %929 = vmatmul.mubr.bf16.gmra.mrb[0].mxu0 %v305
        %v930 = vpop.f32.mrb[0].mxu0
        %v931 = vadd.f32 %v384, %v930
        %v932 = vpop.f32.mrb[0].mxu0
        %v933 = vadd.f32 %v388, %v932
        %v934 = vpop.f32.mrb[0].mxu0
        %v935 = vadd.f32 %v384, %v934
        %v936 = vpop.f32.mrb[0].mxu0
        %v937 = vadd.f32 %v388, %v936
        %938 = vdwg.mxu0
        %v939 = vmax.f32 %v748, %v750
        %v940 = vmax.f32 %v939, %v861
        %v941 = vmax.f32 %v940, %v863
        %942 = vmax.xlane.f32.xlu0 %v941
        %v943 = vpop.xlane.xlu0 %942
        %v944 = vmax.f32 %v752, %v754
        %v945 = vmax.f32 %v944, %v865
        %v946 = vmax.f32 %v945, %v867
        %947 = vmax.xlane.f32.xlu0 %v946
        %v948 = vpop.xlane.xlu0 %947
        %v949 = vmax.f32 %v758, %v760
        %v950 = vmax.f32 %v949, %v871
        %v951 = vmax.f32 %v950, %v873
        %952 = vmax.xlane.f32.xlu0 %v951
        %v953 = vpop.xlane.xlu0 %952
        %v954 = vmax.f32 %v762, %v764
        %v955 = vmax.f32 %v954, %v875
        %v956 = vmax.f32 %v955, %v877
        %957 = vmax.xlane.f32.xlu0 %v956
        %v958 = vpop.xlane.xlu0 %957
        %v959 = vmax.f32 %v768, %v770
        %v960 = vmax.f32 %v959, %v881
        %v961 = vmax.f32 %v960, %v883
        %962 = vmax.xlane.f32.xlu0 %v961
        %v963 = vpop.xlane.xlu0 %962
        %v964 = vmax.f32 %v772, %v774
        %v965 = vmax.f32 %v964, %v885
        %v966 = vmax.f32 %v965, %v887
        %967 = vmax.xlane.f32.xlu0 %v966
        %v968 = vpop.xlane.xlu0 %967
        %v969 = vmax.f32 %v778, %v780
        %v970 = vmax.f32 %v969, %v891
        %v971 = vmax.f32 %v970, %v893
        %972 = vmax.xlane.f32.xlu0 %v971
        %v973 = vpop.xlane.xlu0 %972
        %v974 = vmax.f32 %v782, %v784
        %v975 = vmax.f32 %v974, %v895
        %v976 = vmax.f32 %v975, %v897
        %977 = vmax.xlane.f32.xlu0 %v976
        %v978 = vpop.xlane.xlu0 %977
        %v979 = vmax.f32 %v788, %v790
        %v980 = vmax.f32 %v979, %v901
        %v981 = vmax.f32 %v980, %v903
        %982 = vmax.xlane.f32.xlu0 %v981
        %v983 = vpop.xlane.xlu0 %982
        %v984 = vmax.f32 %v792, %v794
        %v985 = vmax.f32 %v984, %v905
        %v986 = vmax.f32 %v985, %v907
        %987 = vmax.xlane.f32.xlu0 %v986
        %v988 = vpop.xlane.xlu0 %987
        %v989 = vmax.f32 %v798, %v800
        %v990 = vmax.f32 %v989, %v911
        %v991 = vmax.f32 %v990, %v913
        %992 = vmax.xlane.f32.xlu0 %v991
        %v993 = vpop.xlane.xlu0 %992
        %v994 = vmax.f32 %v802, %v804
        %v995 = vmax.f32 %v994, %v915
        %v996 = vmax.f32 %v995, %v917
        %997 = vmax.xlane.f32.xlu0 %v996
        %v998 = vpop.xlane.xlu0 %997
        %v999 = vmax.f32 %v808, %v810
        %v1000 = vmax.f32 %v999, %v921
        %v1001 = vmax.f32 %v1000, %v923
        %1002 = vmax.xlane.f32.xlu0 %v1001
        %v1003 = vpop.xlane.xlu0 %1002
        %v1004 = vmax.f32 %v812, %v814
        %v1005 = vmax.f32 %v1004, %v925
        %v1006 = vmax.f32 %v1005, %v927
        %1007 = vmax.xlane.f32.xlu0 %v1006
        %v1008 = vpop.xlane.xlu0 %1007
        %v1009 = vmax.f32 %v818, %v820
        %v1010 = vmax.f32 %v1009, %v931
        %v1011 = vmax.f32 %v1010, %v933
        %1012 = vmax.xlane.f32.xlu0 %v1011
        %v1013 = vpop.xlane.xlu0 %1012
        %v1014 = vmax.f32 %v822, %v824
        %v1015 = vmax.f32 %v1014, %v935
        %v1016 = vmax.f32 %v1015, %v937
        %1017 = vmax.xlane.f32.xlu0 %v1016
        %v1018 = vpop.xlane.xlu0 %1017
        %v1019 = vsub.f32 %v748, %v943
        %v1020 = vsub.f32 %v750, %v943
        %v1021 = vsub.f32 %v861, %v943
        %v1022 = vsub.f32 %v863, %v943
        %v1023 = vsub.f32 %v752, %v948
        %v1024 = vsub.f32 %v754, %v948
        %v1025 = vsub.f32 %v865, %v948
        %v1026 = vsub.f32 %v867, %v948
        %v1027 = vsub.f32 %v758, %v953
        %v1028 = vsub.f32 %v760, %v953
        %v1029 = vsub.f32 %v871, %v953
        %v1030 = vsub.f32 %v873, %v953
        %v1031 = vsub.f32 %v762, %v958
        %v1032 = vsub.f32 %v764, %v958
        %v1033 = vsub.f32 %v875, %v958
        %v1034 = vsub.f32 %v877, %v958
        %v1035 = vsub.f32 %v768, %v963
        %v1036 = vsub.f32 %v770, %v963
        %v1037 = vsub.f32 %v881, %v963
        %v1038 = vsub.f32 %v883, %v963
        %v1039 = vsub.f32 %v772, %v968
        %v1040 = vsub.f32 %v774, %v968
        %v1041 = vsub.f32 %v885, %v968
        %v1042 = vsub.f32 %v887, %v968
        %v1043 = vsub.f32 %v778, %v973
        %v1044 = vsub.f32 %v780, %v973
        %v1045 = vsub.f32 %v891, %v973
        %v1046 = vsub.f32 %v893, %v973
        %v1047 = vsub.f32 %v782, %v978
        %v1048 = vsub.f32 %v784, %v978
        %v1049 = vsub.f32 %v895, %v978
        %v1050 = vsub.f32 %v897, %v978
        %v1051 = vsub.f32 %v788, %v983
        %v1052 = vsub.f32 %v790, %v983
        %v1053 = vsub.f32 %v901, %v983
        %v1054 = vsub.f32 %v903, %v983
        %v1055 = vsub.f32 %v792, %v988
        %v1056 = vsub.f32 %v794, %v988
        %v1057 = vsub.f32 %v905, %v988
        %v1058 = vsub.f32 %v907, %v988
        %v1059 = vsub.f32 %v798, %v993
        %v1060 = vsub.f32 %v800, %v993
        %v1061 = vsub.f32 %v911, %v993
        %v1062 = vsub.f32 %v913, %v993
        %v1063 = vsub.f32 %v802, %v998
        %v1064 = vsub.f32 %v804, %v998
        %v1065 = vsub.f32 %v915, %v998
        %v1066 = vsub.f32 %v917, %v998
        %v1067 = vsub.f32 %v808, %v1003
        %v1068 = vsub.f32 %v810, %v1003
        %v1069 = vsub.f32 %v921, %v1003
        %v1070 = vsub.f32 %v923, %v1003
        %v1071 = vsub.f32 %v812, %v1008
        %v1072 = vsub.f32 %v814, %v1008
        %v1073 = vsub.f32 %v925, %v1008
        %v1074 = vsub.f32 %v927, %v1008
        %v1075 = vsub.f32 %v818, %v1013
        %v1076 = vsub.f32 %v820, %v1013
        %v1077 = vsub.f32 %v931, %v1013
        %v1078 = vsub.f32 %v933, %v1013
        %v1079 = vsub.f32 %v822, %v1018
        %v1080 = vsub.f32 %v824, %v1018
        %v1081 = vsub.f32 %v935, %v1018
        %v1082 = vsub.f32 %v937, %v1018
        %v1083 = vmul.f32 %v1019, 1.442695
        %v1084 = vpow.pop %v1083
        %v1085 = vmul.f32 %v1020, 1.442695
        %v1086 = vpow.pop %v1085
        %v1087 = vmul.f32 %v1021, 1.442695
        %v1088 = vpow.pop %v1087
        %v1089 = vmul.f32 %v1022, 1.442695
        %v1090 = vpow.pop %v1089
        %v1091 = vmul.f32 %v1023, 1.442695
        %v1092 = vpow.pop %v1091
        %v1093 = vmul.f32 %v1024, 1.442695
        %v1094 = vpow.pop %v1093
        %v1095 = vmul.f32 %v1025, 1.442695
        %v1096 = vpow.pop %v1095
        %v1097 = vmul.f32 %v1026, 1.442695
        %v1098 = vpow.pop %v1097
        %v1099 = vmul.f32 %v1027, 1.442695
        %v1100 = vpow.pop %v1099
        %v1101 = vmul.f32 %v1028, 1.442695
        %v1102 = vpow.pop %v1101
        %v1103 = vmul.f32 %v1029, 1.442695
        %v1104 = vpow.pop %v1103
        %v1105 = vmul.f32 %v1030, 1.442695
        %v1106 = vpow.pop %v1105
        %v1107 = vmul.f32 %v1031, 1.442695
        %v1108 = vpow.pop %v1107
        %v1109 = vmul.f32 %v1032, 1.442695
        %v1110 = vpow.pop %v1109
        %v1111 = vmul.f32 %v1033, 1.442695
        %v1112 = vpow.pop %v1111
        %v1113 = vmul.f32 %v1034, 1.442695
        %v1114 = vpow.pop %v1113
        %v1115 = vmul.f32 %v1035, 1.442695
        %v1116 = vpow.pop %v1115
        %v1117 = vmul.f32 %v1036, 1.442695
        %v1118 = vpow.pop %v1117
        %v1119 = vmul.f32 %v1037, 1.442695
        %v1120 = vpow.pop %v1119
        %v1121 = vmul.f32 %v1038, 1.442695
        %v1122 = vpow.pop %v1121
        %v1123 = vmul.f32 %v1039, 1.442695
        %v1124 = vpow.pop %v1123
        %v1125 = vmul.f32 %v1040, 1.442695
        %v1126 = vpow.pop %v1125
        %v1127 = vmul.f32 %v1041, 1.442695
        %v1128 = vpow.pop %v1127
        %v1129 = vmul.f32 %v1042, 1.442695
        %v1130 = vpow.pop %v1129
        %v1131 = vmul.f32 %v1043, 1.442695
        %v1132 = vpow.pop %v1131
        %v1133 = vmul.f32 %v1044, 1.442695
        %v1134 = vpow.pop %v1133
        %v1135 = vmul.f32 %v1045, 1.442695
        %v1136 = vpow.pop %v1135
        %v1137 = vmul.f32 %v1046, 1.442695
        %v1138 = vpow.pop %v1137
        %v1139 = vmul.f32 %v1047, 1.442695
        %v1140 = vpow.pop %v1139
        %v1141 = vmul.f32 %v1048, 1.442695
        %v1142 = vpow.pop %v1141
        %v1143 = vmul.f32 %v1049, 1.442695
        %v1144 = vpow.pop %v1143
        %v1145 = vmul.f32 %v1050, 1.442695
        %v1146 = vpow.pop %v1145
        %v1147 = vmul.f32 %v1051, 1.442695
        %v1148 = vpow.pop %v1147
        %v1149 = vmul.f32 %v1052, 1.442695
        %v1150 = vpow.pop %v1149
        %v1151 = vmul.f32 %v1053, 1.442695
        %v1152 = vpow.pop %v1151
        %v1153 = vmul.f32 %v1054, 1.442695
        %v1154 = vpow.pop %v1153
        %v1155 = vmul.f32 %v1055, 1.442695
        %v1156 = vpow.pop %v1155
        %v1157 = vmul.f32 %v1056, 1.442695
        %v1158 = vpow.pop %v1157
        %v1159 = vmul.f32 %v1057, 1.442695
        %v1160 = vpow.pop %v1159
        %v1161 = vmul.f32 %v1058, 1.442695
        %v1162 = vpow.pop %v1161
        %v1163 = vmul.f32 %v1059, 1.442695
        %v1164 = vpow.pop %v1163
        %v1165 = vmul.f32 %v1060, 1.442695
        %v1166 = vpow.pop %v1165
        %v1167 = vmul.f32 %v1061, 1.442695
        %v1168 = vpow.pop %v1167
        %v1169 = vmul.f32 %v1062, 1.442695
        %v1170 = vpow.pop %v1169
        %v1171 = vmul.f32 %v1063, 1.442695
        %v1172 = vpow.pop %v1171
        %v1173 = vmul.f32 %v1064, 1.442695
        %v1174 = vpow.pop %v1173
        %v1175 = vmul.f32 %v1065, 1.442695
        %v1176 = vpow.pop %v1175
        %v1177 = vmul.f32 %v1066, 1.442695
        %v1178 = vpow.pop %v1177
        %v1179 = vmul.f32 %v1067, 1.442695
        %v1180 = vpow.pop %v1179
        %v1181 = vmul.f32 %v1068, 1.442695
        %v1182 = vpow.pop %v1181
        %v1183 = vmul.f32 %v1069, 1.442695
        %v1184 = vpow.pop %v1183
        %v1185 = vmul.f32 %v1070, 1.442695
        %v1186 = vpow.pop %v1185
        %v1187 = vmul.f32 %v1071, 1.442695
        %v1188 = vpow.pop %v1187
        %v1189 = vmul.f32 %v1072, 1.442695
        %v1190 = vpow.pop %v1189
        %v1191 = vmul.f32 %v1073, 1.442695
        %v1192 = vpow.pop %v1191
        %v1193 = vmul.f32 %v1074, 1.442695
        %v1194 = vpow.pop %v1193
        %v1195 = vmul.f32 %v1075, 1.442695
        %v1196 = vpow.pop %v1195
        %v1197 = vmul.f32 %v1076, 1.442695
        %v1198 = vpow.pop %v1197
        %v1199 = vmul.f32 %v1077, 1.442695
        %v1200 = vpow.pop %v1199
        %v1201 = vmul.f32 %v1078, 1.442695
        %v1202 = vpow.pop %v1201
        %v1203 = vmul.f32 %v1079, 1.442695
        %v1204 = vpow.pop %v1203
        %v1205 = vmul.f32 %v1080, 1.442695
        %v1206 = vpow.pop %v1205
        %v1207 = vmul.f32 %v1081, 1.442695
        %v1208 = vpow.pop %v1207
        %v1209 = vmul.f32 %v1082, 1.442695
        %v1210 = vpow.pop %v1209
        %v1211 = vadd.f32 %v1084, %v1086
        %v1212 = vadd.f32 %v1211, %v1088
        %v1213 = vadd.f32 %v1212, %v1090
        %1214 = vadd.xlane.f32.xlu0 %v1213
        %v1215 = vpop.xlane.xlu0 %1214
        %v1216 = vadd.f32 %v1092, %v1094
        %v1217 = vadd.f32 %v1216, %v1096
        %v1218 = vadd.f32 %v1217, %v1098
        %1219 = vadd.xlane.f32.xlu0 %v1218
        %v1220 = vpop.xlane.xlu0 %1219
        %v1221 = vadd.f32 %v1100, %v1102
        %v1222 = vadd.f32 %v1221, %v1104
        %v1223 = vadd.f32 %v1222, %v1106
        %1224 = vadd.xlane.f32.xlu0 %v1223
        %v1225 = vpop.xlane.xlu0 %1224
        %v1226 = vadd.f32 %v1108, %v1110
        %v1227 = vadd.f32 %v1226, %v1112
        %v1228 = vadd.f32 %v1227, %v1114
        %1229 = vadd.xlane.f32.xlu0 %v1228
        %v1230 = vpop.xlane.xlu0 %1229
        %v1231 = vadd.f32 %v1116, %v1118
        %v1232 = vadd.f32 %v1231, %v1120
        %v1233 = vadd.f32 %v1232, %v1122
        %1234 = vadd.xlane.f32.xlu0 %v1233
        %v1235 = vpop.xlane.xlu0 %1234
        %v1236 = vadd.f32 %v1124, %v1126
        %v1237 = vadd.f32 %v1236, %v1128
        %v1238 = vadd.f32 %v1237, %v1130
        %1239 = vadd.xlane.f32.xlu0 %v1238
        %v1240 = vpop.xlane.xlu0 %1239
        %v1241 = vadd.f32 %v1132, %v1134
        %v1242 = vadd.f32 %v1241, %v1136
        %v1243 = vadd.f32 %v1242, %v1138
        %1244 = vadd.xlane.f32.xlu0 %v1243
        %v1245 = vpop.xlane.xlu0 %1244
        %v1246 = vadd.f32 %v1140, %v1142
        %v1247 = vadd.f32 %v1246, %v1144
        %v1248 = vadd.f32 %v1247, %v1146
        %1249 = vadd.xlane.f32.xlu0 %v1248
        %v1250 = vpop.xlane.xlu0 %1249
        %v1251 = vadd.f32 %v1148, %v1150
        %v1252 = vadd.f32 %v1251, %v1152
        %v1253 = vadd.f32 %v1252, %v1154
        %1254 = vadd.xlane.f32.xlu0 %v1253
        %v1255 = vpop.xlane.xlu0 %1254
        %v1256 = vadd.f32 %v1156, %v1158
        %v1257 = vadd.f32 %v1256, %v1160
        %v1258 = vadd.f32 %v1257, %v1162
        %1259 = vadd.xlane.f32.xlu0 %v1258
        %v1260 = vpop.xlane.xlu0 %1259
        %v1261 = vadd.f32 %v1164, %v1166
        %v1262 = vadd.f32 %v1261, %v1168
        %v1263 = vadd.f32 %v1262, %v1170
        %1264 = vadd.xlane.f32.xlu0 %v1263
        %v1265 = vpop.xlane.xlu0 %1264
        %v1266 = vadd.f32 %v1172, %v1174
        %v1267 = vadd.f32 %v1266, %v1176
        %v1268 = vadd.f32 %v1267, %v1178
        %1269 = vadd.xlane.f32.xlu0 %v1268
        %v1270 = vpop.xlane.xlu0 %1269
        %v1271 = vadd.f32 %v1180, %v1182
        %v1272 = vadd.f32 %v1271, %v1184
        %v1273 = vadd.f32 %v1272, %v1186
        %1274 = vadd.xlane.f32.xlu0 %v1273
        %v1275 = vpop.xlane.xlu0 %1274
        %v1276 = vadd.f32 %v1188, %v1190
        %v1277 = vadd.f32 %v1276, %v1192
        %v1278 = vadd.f32 %v1277, %v1194
        %1279 = vadd.xlane.f32.xlu0 %v1278
        %v1280 = vpop.xlane.xlu0 %1279
        %v1281 = vadd.f32 %v1196, %v1198
        %v1282 = vadd.f32 %v1281, %v1200
        %v1283 = vadd.f32 %v1282, %v1202
        %1284 = vadd.xlane.f32.xlu0 %v1283
        %v1285 = vpop.xlane.xlu0 %1284
        %v1286 = vadd.f32 %v1204, %v1206
        %v1287 = vadd.f32 %v1286, %v1208
        %v1288 = vadd.f32 %v1287, %v1210
        %1289 = vadd.xlane.f32.xlu0 %v1288
        %v1290 = vpop.xlane.xlu0 %1289
        %v1291 = vlog2.pop %v1215
        %v1292 = vmul.f32 %v1291, 0.6931472
        %v1293 = vlog2.pop %v1220
        %v1294 = vmul.f32 %v1293, 0.6931472
        %v1295 = vlog2.pop %v1225
        %v1296 = vmul.f32 %v1295, 0.6931472
        %v1297 = vlog2.pop %v1230
        %v1298 = vmul.f32 %v1297, 0.6931472
        %v1299 = vlog2.pop %v1235
        %v1300 = vmul.f32 %v1299, 0.6931472
        %v1301 = vlog2.pop %v1240
        %v1302 = vmul.f32 %v1301, 0.6931472
        %v1303 = vlog2.pop %v1245
        %v1304 = vmul.f32 %v1303, 0.6931472
        %v1305 = vlog2.pop %v1250
        %v1306 = vmul.f32 %v1305, 0.6931472
        %v1307 = vlog2.pop %v1255
        %v1308 = vmul.f32 %v1307, 0.6931472
        %v1309 = vlog2.pop %v1260
        %v1310 = vmul.f32 %v1309, 0.6931472
        %v1311 = vlog2.pop %v1265
        %v1312 = vmul.f32 %v1311, 0.6931472
        %v1313 = vlog2.pop %v1270
        %v1314 = vmul.f32 %v1313, 0.6931472
        %v1315 = vlog2.pop %v1275
        %v1316 = vmul.f32 %v1315, 0.6931472
        %v1317 = vlog2.pop %v1280
        %v1318 = vmul.f32 %v1317, 0.6931472
        %v1319 = vlog2.pop %v1285
        %v1320 = vmul.f32 %v1319, 0.6931472
        %v1321 = vlog2.pop %v1290
        %v1322 = vmul.f32 %v1321, 0.6931472
        %v1323 = vsub.f32 %v1019, %v1292
        %v1324 = vsub.f32 %v1020, %v1292
        %v1325 = vsub.f32 %v1021, %v1292
        %v1326 = vsub.f32 %v1022, %v1292
        %v1327 = vsub.f32 %v1023, %v1294
        %v1328 = vsub.f32 %v1024, %v1294
        %v1329 = vsub.f32 %v1025, %v1294
        %v1330 = vsub.f32 %v1026, %v1294
        %v1331 = vsub.f32 %v1027, %v1296
        %v1332 = vsub.f32 %v1028, %v1296
        %v1333 = vsub.f32 %v1029, %v1296
        %v1334 = vsub.f32 %v1030, %v1296
        %v1335 = vsub.f32 %v1031, %v1298
        %v1336 = vsub.f32 %v1032, %v1298
        %v1337 = vsub.f32 %v1033, %v1298
        %v1338 = vsub.f32 %v1034, %v1298
        %v1339 = vsub.f32 %v1035, %v1300
        %v1340 = vsub.f32 %v1036, %v1300
        %v1341 = vsub.f32 %v1037, %v1300
        %v1342 = vsub.f32 %v1038, %v1300
        %v1343 = vsub.f32 %v1039, %v1302
        %v1344 = vsub.f32 %v1040, %v1302
        %v1345 = vsub.f32 %v1041, %v1302
        %v1346 = vsub.f32 %v1042, %v1302
        %v1347 = vsub.f32 %v1043, %v1304
        %v1348 = vsub.f32 %v1044, %v1304
        %v1349 = vsub.f32 %v1045, %v1304
        %v1350 = vsub.f32 %v1046, %v1304
        %v1351 = vsub.f32 %v1047, %v1306
        %v1352 = vsub.f32 %v1048, %v1306
        %v1353 = vsub.f32 %v1049, %v1306
        %v1354 = vsub.f32 %v1050, %v1306
        %v1355 = vsub.f32 %v1051, %v1308
        %v1356 = vsub.f32 %v1052, %v1308
        %v1357 = vsub.f32 %v1053, %v1308
        %v1358 = vsub.f32 %v1054, %v1308
        %v1359 = vsub.f32 %v1055, %v1310
        %v1360 = vsub.f32 %v1056, %v1310
        %v1361 = vsub.f32 %v1057, %v1310
        %v1362 = vsub.f32 %v1058, %v1310
        %v1363 = vsub.f32 %v1059, %v1312
        %v1364 = vsub.f32 %v1060, %v1312
        %v1365 = vsub.f32 %v1061, %v1312
        %v1366 = vsub.f32 %v1062, %v1312
        %v1367 = vsub.f32 %v1063, %v1314
        %v1368 = vsub.f32 %v1064, %v1314
        %v1369 = vsub.f32 %v1065, %v1314
        %v1370 = vsub.f32 %v1066, %v1314
        %v1371 = vsub.f32 %v1067, %v1316
        %v1372 = vsub.f32 %v1068, %v1316
        %v1373 = vsub.f32 %v1069, %v1316
        %v1374 = vsub.f32 %v1070, %v1316
        %v1375 = vsub.f32 %v1071, %v1318
        %v1376 = vsub.f32 %v1072, %v1318
        %v1377 = vsub.f32 %v1073, %v1318
        %v1378 = vsub.f32 %v1074, %v1318
        %v1379 = vsub.f32 %v1075, %v1320
        %v1380 = vsub.f32 %v1076, %v1320
        %v1381 = vsub.f32 %v1077, %v1320
        %v1382 = vsub.f32 %v1078, %v1320
        %v1383 = vsub.f32 %v1079, %v1322
        %v1384 = vsub.f32 %v1080, %v1322
        %v1385 = vsub.f32 %v1081, %v1322
        %v1386 = vsub.f32 %v1082, %v1322
        %1387 = vst [vmem:[%s158] sm:$0xff] %v1323
        %1388 = vst [vmem:[%s158 + $0x8] sm:$0xff] %v1324
        %1389 = vst [vmem:[%s158 + $0x10] sm:$0xff] %v1325
        %1390 = vst [vmem:[%s158 + $0x18] sm:$0xff] %v1326
        %1391 = vst [vmem:[%s158 + $0x20] sm:$0xff] %v1327
        %1392 = vst [vmem:[%s158 + $0x28] sm:$0xff] %v1328
        %1393 = vst [vmem:[%s158 + $0x30] sm:$0xff] %v1329
        %1394 = vst [vmem:[%s158 + $0x38] sm:$0xff] %v1330
        %1395 = vst [vmem:[%s158 + $0x40] sm:$0xff] %v1331
        %1396 = vst [vmem:[%s158 + $0x48] sm:$0xff] %v1332
        %1397 = vst [vmem:[%s158 + $0x50] sm:$0xff] %v1333
        %1398 = vst [vmem:[%s158 + $0x58] sm:$0xff] %v1334
        %1399 = vst [vmem:[%s158 + $0x60] sm:$0xff] %v1335
        %1400 = vst [vmem:[%s158 + $0x68] sm:$0xff] %v1336
        %1401 = vst [vmem:[%s158 + $0x70] sm:$0xff] %v1337
        %1402 = vst [vmem:[%s158 + $0x78] sm:$0xff] %v1338
        %1403 = vst [vmem:[%s158 + $0x80] sm:$0xff] %v1339
        %1404 = vst [vmem:[%s158 + $0x88] sm:$0xff] %v1340
        %1405 = vst [vmem:[%s158 + $0x90] sm:$0xff] %v1341
        %1406 = vst [vmem:[%s158 + $0x98] sm:$0xff] %v1342
        %1407 = vst [vmem:[%s158 + $0xa0] sm:$0xff] %v1343
        %1408 = vst [vmem:[%s158 + $0xa8] sm:$0xff] %v1344
        %1409 = vst [vmem:[%s158 + $0xb0] sm:$0xff] %v1345
        %1410 = vst [vmem:[%s158 + $0xb8] sm:$0xff] %v1346
        %1411 = vst [vmem:[%s158 + $0xc0] sm:$0xff] %v1347
        %1412 = vst [vmem:[%s158 + $0xc8] sm:$0xff] %v1348
        %1413 = vst [vmem:[%s158 + $0xd0] sm:$0xff] %v1349
        %1414 = vst [vmem:[%s158 + $0xd8] sm:$0xff] %v1350
        %1415 = vst [vmem:[%s158 + $0xe0] sm:$0xff] %v1351
        %1416 = vst [vmem:[%s158 + $0xe8] sm:$0xff] %v1352
        %1417 = vst [vmem:[%s158 + $0xf0] sm:$0xff] %v1353
        %1418 = vst [vmem:[%s158 + $0xf8] sm:$0xff] %v1354
        %1419 = vst [vmem:[%s158 + $0x100] sm:$0xff] %v1355
        %1420 = vst [vmem:[%s158 + $0x108] sm:$0xff] %v1356
        %1421 = vst [vmem:[%s158 + $0x110] sm:$0xff] %v1357
        %1422 = vst [vmem:[%s158 + $0x118] sm:$0xff] %v1358
        %1423 = vst [vmem:[%s158 + $0x120] sm:$0xff] %v1359
        %1424 = vst [vmem:[%s158 + $0x128] sm:$0xff] %v1360
        %1425 = vst [vmem:[%s158 + $0x130] sm:$0xff] %v1361
        %1426 = vst [vmem:[%s158 + $0x138] sm:$0xff] %v1362
        %1427 = vst [vmem:[%s158 + $0x140] sm:$0xff] %v1363
        %1428 = vst [vmem:[%s158 + $0x148] sm:$0xff] %v1364
        %1429 = vst [vmem:[%s158 + $0x150] sm:$0xff] %v1365
        %1430 = vst [vmem:[%s158 + $0x158] sm:$0xff] %v1366
        %1431 = vst [vmem:[%s158 + $0x160] sm:$0xff] %v1367
        %1432 = vst [vmem:[%s158 + $0x168] sm:$0xff] %v1368
        %1433 = vst [vmem:[%s158 + $0x170] sm:$0xff] %v1369
        %1434 = vst [vmem:[%s158 + $0x178] sm:$0xff] %v1370
        %1435 = vst [vmem:[%s158 + $0x180] sm:$0xff] %v1371
        %1436 = vst [vmem:[%s158 + $0x188] sm:$0xff] %v1372
        %1437 = vst [vmem:[%s158 + $0x190] sm:$0xff] %v1373
        %1438 = vst [vmem:[%s158 + $0x198] sm:$0xff] %v1374
        %1439 = vst [vmem:[%s158 + $0x1a0] sm:$0xff] %v1375
        %1440 = vst [vmem:[%s158 + $0x1a8] sm:$0xff] %v1376
        %1441 = vst [vmem:[%s158 + $0x1b0] sm:$0xff] %v1377
        %1442 = vst [vmem:[%s158 + $0x1b8] sm:$0xff] %v1378
        %1443 = vst [vmem:[%s158 + $0x1c0] sm:$0xff] %v1379
        %1444 = vst [vmem:[%s158 + $0x1c8] sm:$0xff] %v1380
        %1445 = vst [vmem:[%s158 + $0x1d0] sm:$0xff] %v1381
        %1446 = vst [vmem:[%s158 + $0x1d8] sm:$0xff] %v1382
        %1447 = vst [vmem:[%s158 + $0x1e0] sm:$0xff] %v1383
        %1448 = vst [vmem:[%s158 + $0x1e8] sm:$0xff] %v1384
        %1449 = vst [vmem:[%s158 + $0x1f0] sm:$0xff] %v1385
        %1450 = vst [vmem:[%s158 + $0x1f8] sm:$0xff] %v1386
        %s1451 = sand.u32 %s89, 1
        %s1452 = scalar_lea.sflag [#allocation8], %s1451
        %s1453 = sand.u32 %s89, 1
        %s1454 = smul.addr %s1453, 512
        %s1455 = scalar_lea.vmem [#allocation9], %s1454
        // Predicated region
        $region55: #{tpu_custom_call.1} parent=27 // pred_check
          %p1456 = pneg %p99
        $region56: #{tpu_custom_call.1} parent=27 // pred_check_branch
          %1458 = sbr.rel (%p1456) target = $region58
        $region57: #{tpu_custom_call.1} parent=27 // pred_region
          %s1459 = smul.u32 %s27, 2
          %s1460 = sadd.s32 %s1459, %s28
          %s1461 = smul.u32 16, %s1460
          %s1463 = ssub.s32 8192, 8192
          %1464 = vsyncadd %s1452, %s1463
          %s1465 = smul.addr %s1461, 4
          %s1466 = smul.addr %s1465, 128
          %s1467 = scalar_lea.hbm %s4, %s1466
          %s1468 = sshll.u32 %s1455, 4
          %s1469 = int_to_ptr.vmem [resolvable:$true] %s1468
          %1474 = dma.vmem_to_hbm [thread:$0]  %s1469, 8192, %s1467, %s1452, 512, 512, 32
        $region58: #{tpu_custom_call.1} parent=27 // pred_fallthru
          _
      $region28: #{tpu_custom_call.1} parent=5 // pred_fallthru
        _
      %p1475 = scmp.le.s32.totalorder 2, %s18
      // Predicated region
      $region59: #{tpu_custom_call.1} parent=5 // pred_check
        %p1476 = pneg %p1475
      $region60: #{tpu_custom_call.1} parent=5 // pred_check_branch
        %1478 = sbr.rel (%p1476) target = $region62
      $region61: #{tpu_custom_call.1} parent=5 // pred_region
        %s1479 = ssub.s32 %s18, 2
        // Predicated region
        $region63: #{tpu_custom_call.1} parent=61 // pred_check
          %p1480 = pneg %p105
        $region64: #{tpu_custom_call.1} parent=61 // pred_check_branch
          %1482 = sbr.rel (%p1480) target = $region66
        $region65: #{tpu_custom_call.1} parent=61 // pred_region
          %s1483 = sand.u32 %s90, 1
          %s1484 = scalar_lea.sflag [#allocation8], %s1483
          %s1485 = sand.u32 %s90, 1
          %s1486 = smul.addr %s1485, 512
          %s1487 = scalar_lea.vmem [#allocation9], %s1486
          %1488 = dma.done %s1484, 8192
        $region66: #{tpu_custom_call.1} parent=61 // pred_fallthru
          _
      $region62: #{tpu_custom_call.1} parent=5 // pred_fallthru
        _
    $region6: #{tpu_custom_call.1} parent=1 // loop_footer
      %s22 = sadd.s32 1, %s18
    $region7: #{tpu_custom_call.1} parent=1 // loop_footer_branch
      %17 = sbr.rel target = $region3
    $region8: #{tpu_custom_call.1} parent=1 // loop_exit
      _
    %1489 = vsyncpa [#allocation7], 1
    %s1490 = scalar_lea.sflag [#allocation7], 1
    %1491 = vsyncpa %s1490, 1
    %1492 = vsyncpa [#allocation8], 1
    %s1493 = scalar_lea.sflag [#allocation8], 1
    %1494 = vsyncpa %s1493, 1
  %1495 = vsyncmov [#allocation3]
  %s1496 = vpop.sfrf %1495
  %p1497 = scmp.eq.s32.totalorder %s1496, 0
  %p1498 = pneg %p1497
  %1500 = shalt.err (%p1498)
  %s1501 = scalar_lea.sflag [#allocation3], 1
  %1502 = vsyncmov %s1501
  %s1503 = vpop.sfrf %1502
  %p1504 = scmp.eq.s32.totalorder %s1503, 0
  %p1505 = pneg %p1504
  %1507 = shalt.err (%p1505)

// kernel: tpu_custom_call.1
$region0: #{tpu_custom_call.1}
  #allocation0 [shape = 'u32[]', space=smem, size = 0x4, offset = 0x4, fixed_abs, tag = 'smem constant byte address 0x4 - core index']
  #allocation1 [shape = 'u32[144,128]{1,0:T(1,128)}', space=vmem, size = 0x12000, scoped, tag = 'internal scratch']
  #allocation2 [shape = 'f32[2,128,256]{2,1,0:T(8,128)}', space=vmem, size = 0x40000, scoped, tag = 'scratch operand']
  #allocation3 [shape = 's32[2]{0}', space=sflag, size = 0x8, scoped, tag = 'scratch operand']
  #allocation4 [shape = 's32[1]{0}', space=sflag, size = 0x4, scoped, tag = 'scoped memory for tpu_custom_call.1']
  #allocation5 [shape = 'u8[2048]{0}', space=smem, size = 0x800, scoped, tag = 'prefetched SMEM operand 0']
  #allocation10 [shape = 's32[]', space=sflag, size = 0x4, offset = 0, fixed_abs, tag = 'sflag constant byte address 0x0 - dummy sync flag']
  #allocation11 [shape = 's32[]', space=sflag, size = 0x4, offset = 0, fixed_abs, tag = 'sflag constant byte address 0x0 - dummy sync flag']
  %s0 = inlined_call_operand.hbm [shape: s32[512], index: 0, kind: input, shape index: {}]
  %s1 = inlined_call_operand.hbm [shape: f32[512,256], index: 1, kind: input, shape index: {}]
  %s2 = inlined_call_operand.hbm [shape: bf16[256,512], index: 2, kind: input, shape index: {}]
  %s3 = inlined_call_operand.vmem [shape: f32[1,512], index: 3, kind: input, shape index: {}]
  %s4 = inlined_call_operand.hbm [shape: f32[512,512], index: 4, kind: output, shape index: {}]
  %s5 = sld [smem:[#allocation0]]
  $region67: #{tpu_custom_call.1} parent=0
    _
  %s7 = ssub.s32 1, %s5
  %s8 = scalar_select 0, %s7, %s5
  %10 = dma.hbm_to_smem %s0, 64, [#allocation5], [#allocation4]
  %11 = dma.done [#allocation4], 64
  %12 = sfence
  $region1: #{tpu_custom_call.1} parent=0
    #allocation6 [shape = 'u8[262144]{0}', space=vmem, size = 0x40000, scoped, tag = 'input window, operand 2, single buffered']
    #allocation7 [shape = 's32[2]{0}', space=sflag, size = 0x8, scoped, tag = 'scoped memory for tpu_custom_call.1']
    #allocation8 [shape = 's32[2]{0}', space=sflag, size = 0x8, scoped, tag = 'scoped memory for tpu_custom_call.1']
    #allocation9 [shape = 'u8[524288]{0}', space=vmem, size = 0x80000, scoped, tag = 'output window, operand 0']
    %13 = vsyncpa [#allocation7], 0
    %14 = vsyncpa [#allocation8], 0
    %s15 = scalar_lea.sflag [#allocation8], 1
    %16 = vsyncpa %s15, 0
    loop: start=0, step=1, limit=6
    $region2: #{tpu_custom_call.1} parent=1 // loop_pre_header
      _
    $region3: #{tpu_custom_call.1} parent=1 // loop_header
      %s18 = sphi 0, %s22
      %p19 = scmp.ge.s32.totalorder %s18, 6
      %s25 = sphi 0, %s37
      %s26 = sphi 0, %s33
      %s27 = sphi 0, %s25
      %s28 = sphi 0, %s26
      %s29 = sphi 0, %s27
      %s30 = sphi 0, %s28
      %s38 = sphi 0, %s38
      %s40 = sphi 0, %s38
      %s41 = sphi 0, %s40
      %s55 = sphi 0, %s41
      %s59 = sphi 0, %s59
      %s61 = sphi 0, %s59
      %s62 = sphi 0, %s61
      %s76 = sphi 0, %s62
      %s86 = sphi 0, %s88
      %s89 = sphi 0, %s86
      %s90 = sphi 0, %s89
      %s106 = sphi 0, %s90
    $region4: #{tpu_custom_call.1} parent=1 // loop_header_branch
      %21 = sbr.rel (%p19) target = $region8
    $region5: #{tpu_custom_call.1} parent=1 // loop_body
      %s23 = ssub.s32 %s18, 1
      %s24 = ssub.s32 %s18, 2
      %s31 = sadd.s32 1, %s26
      %p32 = scmp.ge.s32.totalorder %s31, 2
      %s33 = scalar_select %p32, 0, %s31
      %s34 = sadd.s32 1, %s25
      %s35 = scalar_select %p32, %s34, %s25
      %p36 = scmp.ge.s32.totalorder %s35, 2
      %s37 = scalar_select %p36, 0, %s35
      %s39 = sadd.s32 %s38, 1
      %p42 = scmp.eq.s32.totalorder %s18, 3
      %p43 = scmp.ne.s32.totalorder %s38, %s40
      %p44 = scmp.eq.s32.totalorder %s18, 0
      %p45 = por %p43, %p44
      %p46 = scmp.ne.s32.totalorder %s38, %s40
      %p47 = scmp.eq.s32.totalorder %s23, 3
      %p48 = por %p46, %p47
      %p49 = scmp.ne.s32.totalorder %s40, %s41
      %p50 = scmp.eq.s32.totalorder %s23, 0
      %p51 = por %p49, %p50
      %p52 = scmp.ne.s32.totalorder %s40, %s41
      %p53 = scmp.eq.s32.totalorder %s24, 3
      %p54 = por %p52, %p53
      %p56 = scmp.ne.s32.totalorder %s41, %s55
      %p57 = scmp.eq.s32.totalorder %s24, 0
      %p58 = por %p56, %p57
      %s60 = sadd.s32 %s59, 1
      %p63 = scmp.eq.s32.totalorder %s18, 3
      %p64 = scmp.ne.s32.totalorder %s59, %s61
      %p65 = scmp.eq.s32.totalorder %s18, 0
      %p66 = por %p64, %p65
      %p67 = scmp.ne.s32.totalorder %s59, %s61
      %p68 = scmp.eq.s32.totalorder %s23, 3
      %p69 = por %p67, %p68
      %p70 = scmp.ne.s32.totalorder %s61, %s62
      %p71 = scmp.eq.s32.totalorder %s23, 0
      %p72 = por %p70, %p71
      %p73 = scmp.ne.s32.totalorder %s61, %s62
      %p74 = scmp.eq.s32.totalorder %s24, 3
      %p75 = por %p73, %p74
      %p77 = scmp.ne.s32.totalorder %s62, %s76
      %p78 = scmp.eq.s32.totalorder %s24, 0
      %p79 = por %p77, %p78
      %s80 = smul.u32 %s25, 2
      %s81 = sadd.s32 %s80, %s26
      %s82 = smul.u32 %s37, 2
      %s83 = sadd.s32 %s82, %s33
      %s84 = ssub.s32 %s81, %s83
      %p85 = scmp.eq.s32.totalorder %s84, 0
      %s87 = sadd.s32 %s86, 1
      %s88 = scalar_select %p85, %s86, %s87
      %p91 = pneg %p85
      %p92 = scmp.eq.s32.totalorder %s18, 3
      %p93 = por %p91, %p92
      %p94 = scmp.ne.s32.totalorder %s86, %s89
      %p95 = scmp.eq.s32.totalorder %s18, 0
      %p96 = por %p94, %p95
      %p97 = scmp.ne.s32.totalorder %s86, %s89
      %p98 = scmp.eq.s32.totalorder %s23, 3
      %p99 = por %p97, %p98
      %p100 = scmp.ne.s32.totalorder %s89, %s90
      %p101 = scmp.eq.s32.totalorder %s23, 0
      %p102 = por %p100, %p101
      %p103 = scmp.ne.s32.totalorder %s89, %s90
      %p104 = scmp.eq.s32.totalorder %s24, 3
      %p105 = por %p103, %p104
      %p107 = scmp.ne.s32.totalorder %s90, %s106
      %p108 = scmp.eq.s32.totalorder %s24, 0
      %p109 = por %p107, %p108
      %p110 = scmp.le.s32.totalorder 1, %s18
      %p111 = scmp.lt.s32.totalorder %s18, 5
      %p112 = pnand %p110, %p111
      %p113 = pneg %p112
      // Predicated region
      $region9: #{tpu_custom_call.1} parent=5 // pred_check
        _
      $region10: #{tpu_custom_call.1} parent=5 // pred_check_branch
        %115 = sbr.rel (%p112) target = $region12
      $region11: #{tpu_custom_call.1} parent=5 // pred_region
        %s116 = ssub.s32 %s18, 1
        // Predicated region
        $region13: #{tpu_custom_call.1} parent=11 // pred_check
          %p117 = pneg %p51
        $region14: #{tpu_custom_call.1} parent=11 // pred_check_branch
          %119 = sbr.rel (%p117) target = $region16
        $region15: #{tpu_custom_call.1} parent=11 // pred_region
          %s121 = ssub.s32 8192, 8192
          %122 = vsyncadd [#allocation7], %s121
          %s123 = sshll.u32 [#allocation6], 4
          %s124 = int_to_ptr.vmem [resolvable:$true] %s123
          %129 = dma.hbm_to_vmem [thread:$0]  %s2, 8192, %s124, [#allocation7], 256, 256, 16
        $region16: #{tpu_custom_call.1} parent=11 // pred_fallthru
          _
        // Predicated region
        $region17: #{tpu_custom_call.1} parent=11 // pred_check
          %p130 = pneg %p72
        $region18: #{tpu_custom_call.1} parent=11 // pred_check_branch
          %132 = sbr.rel (%p130) target = $region20
        $region19: #{tpu_custom_call.1} parent=11 // pred_region
          _
        $region20: #{tpu_custom_call.1} parent=11 // pred_fallthru
          _
      $region12: #{tpu_custom_call.1} parent=5 // pred_fallthru
        _
      %p133 = scmp.lt.s32.totalorder %s18, 4
      // Predicated region
      $region21: #{tpu_custom_call.1} parent=5 // pred_check
        %p134 = pneg %p133
      $region22: #{tpu_custom_call.1} parent=5 // pred_check_branch
        %136 = sbr.rel (%p134) target = $region24
      $region23: #{tpu_custom_call.1} parent=5 // pred_region
        _
      $region24: #{tpu_custom_call.1} parent=5 // pred_fallthru
        _
      %p137 = scmp.le.s32.totalorder 1, %s18
      %p138 = scmp.lt.s32.totalorder %s18, 5
      %p139 = pnand %p137, %p138
      %p140 = pneg %p139
      // Predicated region
      $region25: #{tpu_custom_call.1} parent=5 // pred_check
        _
      $region26: #{tpu_custom_call.1} parent=5 // pred_check_branch
        %142 = sbr.rel (%p139) target = $region28
      $region27: #{tpu_custom_call.1} parent=5 // pred_region
        %s143 = ssub.s32 %s18, 1
        // Predicated region
        $region29: #{tpu_custom_call.1} parent=27 // pred_check
          %p144 = pneg %p51
        $region30: #{tpu_custom_call.1} parent=27 // pred_check_branch
          %146 = sbr.rel (%p144) target = $region32
        $region31: #{tpu_custom_call.1} parent=27 // pred_region
          %147 = dma.done [#allocation7], 8192
        $region32: #{tpu_custom_call.1} parent=27 // pred_fallthru
          _
        %p148 = pneg %p51
        %p149 = pneg %p48
        %p150 = pneg %p72
        %p151 = pneg %p69
        %p152 = pneg %p102
        %p153 = pneg %p99
        %s154 = sand.u32 %s89, 1
        %s155 = scalar_lea.sflag [#allocation8], %s154
        %s156 = sand.u32 %s89, 1
        %s157 = smul.addr %s156, 512
        %s158 = scalar_lea.vmem [#allocation9], %s157
        %s159 = smul.u32 %s27, 2
        %s160 = sadd.s32 %s159, %s28
        %s161 = smul.u32 16, %s160
        %p162 = scmp.eq.s32.totalorder %s28, 0
        // Predicated region
        $region33: #{tpu_custom_call.1} parent=27 // pred_check
          %p163 = pneg %p162
        $region34: #{tpu_custom_call.1} parent=27 // pred_check_branch
          %165 = sbr.rel (%p163) target = $region36
        $region35: #{tpu_custom_call.1} parent=27 // pred_region
          %s166 = smul.u32 %s27, 256
          loop: start=0, step=1, limit=128
          $region37: #{tpu_custom_call.1} parent=35 // loop_pre_header
            _
          $region38: #{tpu_custom_call.1} parent=35 // loop_header
            %s168 = sphi 0, %s172
            %p169 = scmp.ge.s32.totalorder %s168, 128
          $region39: #{tpu_custom_call.1} parent=35 // loop_header_branch
            %171 = sbr.rel (%p169) target = $region43
          $region40: #{tpu_custom_call.1} parent=35 // loop_body
            %s173 = sadd.s32 %s166, %s168
            %s174 = sld [smem:[#allocation5 + %s173]]
            %s175 = sshrl.u32 %s174, 3
            %s176 = sand.u32 %s174, 7
            %s177 = smul.u32 %s175, 16
            %s178 = sadd.s32 %s176, %s177
            %s179 = smul.addr %s178, 16
            %s180 = scalar_lea.hbm %s1, %s179
            %s181 = sshrl.u32 %s168, 3
            %s182 = sand.u32 %s168, 7
            %s183 = smul.u32 %s181, 16
            %s184 = sadd.s32 %s182, %s183
            %s185 = scalar_lea.vmem [#allocation2], %s184
            %s187 = sshll.u32 %s185, 4
            %s188 = int_to_ptr.vmem [resolvable:$true] %s187
            %190 = dma.hbm_to_vmem [thread:$0]  %s180, 32, %s188, [#allocation3], 128, 128, 1
          $region41: #{tpu_custom_call.1} parent=35 // loop_footer
            %s172 = sadd.s32 1, %s168
          $region42: #{tpu_custom_call.1} parent=35 // loop_footer_branch
            %167 = sbr.rel target = $region38
          $region43: #{tpu_custom_call.1} parent=35 // loop_exit
            _
        $region36: #{tpu_custom_call.1} parent=27 // pred_fallthru
          _
        %s191 = sadd.s32 %s28, 1
        %p192 = scmp.lt.s32.totalorder %s191, 2
        // Predicated region
        $region44: #{tpu_custom_call.1} parent=27 // pred_check
          %p193 = pneg %p192
        $region45: #{tpu_custom_call.1} parent=27 // pred_check_branch
          %195 = sbr.rel (%p193) target = $region47
        $region46: #{tpu_custom_call.1} parent=27 // pred_region
          %s196 = smul.u32 %s27, 2
          %s197 = sadd.s32 %s196, %s28
          %s198 = sadd.s32 %s197, 1
          %p199 = scmp.lt.s32.totalorder %s191, 0
          %s200 = ssub.s32 0, %s191
          %s201 = scalar_select %p199, %s200, %s191
          %s202 = sand.u32 %s201, 1
          %s203 = ssub.s32 0, %s202
          %s204 = scalar_select %p199, %s203, %s202
          %p205 = scmp.ne.s32.totalorder %s204, 0
          %p206 = scmp.lt.s32.totalorder %s204, 0
          %p207 = pnand %p206, %p205
          %p208 = pneg %p207
          %s209 = sadd.s32 %s204, 2
          %s210 = scalar_select %p208, %s209, %s204
          %s211 = smul.u32 %s198, 128
          loop: start=0, step=1, limit=128
          $region48: #{tpu_custom_call.1} parent=46 // loop_pre_header
            _
          $region49: #{tpu_custom_call.1} parent=46 // loop_header
            %s213 = sphi 0, %s217
            %p214 = scmp.ge.s32.totalorder %s213, 128
          $region50: #{tpu_custom_call.1} parent=46 // loop_header_branch
            %216 = sbr.rel (%p214) target = $region54
          $region51: #{tpu_custom_call.1} parent=46 // loop_body
            %s218 = sadd.s32 %s211, %s213
            %s219 = sld [smem:[#allocation5 + %s218]]
            %s220 = sshrl.u32 %s219, 3
            %s221 = sand.u32 %s219, 7
            %s222 = smul.u32 %s220, 16
            %s223 = sadd.s32 %s221, %s222
            %s224 = smul.addr %s223, 16
            %s225 = scalar_lea.hbm %s1, %s224
            %s226 = sshrl.u32 %s213, 3
            %s227 = sand.u32 %s213, 7
            %s228 = smul.u32 %s226, 16
            %s229 = sadd.s32 %s227, %s228
            %s230 = smul.u32 %s210, 256
            %s231 = sadd.s32 %s229, %s230
            %s232 = scalar_lea.vmem [#allocation2], %s231
            %s233 = scalar_lea.sflag [#allocation3], %s210
            %s235 = sshll.u32 %s232, 4
            %s236 = int_to_ptr.vmem [resolvable:$true] %s235
            %238 = dma.hbm_to_vmem [thread:$0]  %s225, 32, %s236, %s233, 128, 128, 1
          $region52: #{tpu_custom_call.1} parent=46 // loop_footer
            %s217 = sadd.s32 1, %s213
          $region53: #{tpu_custom_call.1} parent=46 // loop_footer_branch
            %212 = sbr.rel target = $region49
          $region54: #{tpu_custom_call.1} parent=46 // loop_exit
            _
        $region47: #{tpu_custom_call.1} parent=27 // pred_fallthru
          _
        %p239 = scmp.lt.s32.totalorder %s28, 0
        %s240 = ssub.s32 0, %s28
        %s241 = scalar_select %p239, %s240, %s28
        %s242 = sand.u32 %s241, 1
        %s243 = ssub.s32 0, %s242
        %s244 = scalar_select %p239, %s243, %s242
        %p245 = scmp.ne.s32.totalorder %s244, 0
        %p246 = scmp.lt.s32.totalorder %s244, 0
        %p247 = pnand %p246, %p245
        %p248 = pneg %p247
        %s249 = sadd.s32 %s244, 2
        %s250 = scalar_select %p248, %s249, %s244
        %s251 = smul.u32 %s250, 32
        %s252 = smul.addr %s251, 8
        %s253 = scalar_lea.vmem [#allocation2], %s252
        %s254 = scalar_lea.sflag [#allocation3], %s250
        %s255 = smul.u32 8, 16
        %s256 = smul.u32 %s255, 2
        %s257 = sshll.u32 %s256, 4
        %258 = dma.done %s254, %s257
        %v259 = vld [vmem:[%s253] sm:$0xff]
        %v260 = vld [vmem:[%s253 + $0x8] sm:$0xff]
        %v261 = vld [vmem:[%s253 + $0x10] sm:$0xff]
        %v262 = vld [vmem:[%s253 + $0x18] sm:$0xff]
        %v263 = vld [vmem:[%s253 + $0x20] sm:$0xff]
        %v264 = vld [vmem:[%s253 + $0x28] sm:$0xff]
        %v265 = vld [vmem:[%s253 + $0x30] sm:$0xff]
        %v266 = vld [vmem:[%s253 + $0x38] sm:$0xff]
        %v267 = vld [vmem:[%s253 + $0x40] sm:$0xff]
        %v268 = vld [vmem:[%s253 + $0x48] sm:$0xff]
        %v269 = vld [vmem:[%s253 + $0x50] sm:$0xff]
        %v270 = vld [vmem:[%s253 + $0x58] sm:$0xff]
        %v271 = vld [vmem:[%s253 + $0x60] sm:$0xff]
        %v272 = vld [vmem:[%s253 + $0x68] sm:$0xff]
        %v273 = vld [vmem:[%s253 + $0x70] sm:$0xff]
        %v274 = vld [vmem:[%s253 + $0x78] sm:$0xff]
        %v275 = vld [vmem:[%s253 + $0x80] sm:$0xff]
        %v276 = vld [vmem:[%s253 + $0x88] sm:$0xff]
        %v277 = vld [vmem:[%s253 + $0x90] sm:$0xff]
        %v278 = vld [vmem:[%s253 + $0x98] sm:$0xff]
        %v279 = vld [vmem:[%s253 + $0xa0] sm:$0xff]
        %v280 = vld [vmem:[%s253 + $0xa8] sm:$0xff]
        %v281 = vld [vmem:[%s253 + $0xb0] sm:$0xff]
        %v282 = vld [vmem:[%s253 + $0xb8] sm:$0xff]
        %v283 = vld [vmem:[%s253 + $0xc0] sm:$0xff]
        %v284 = vld [vmem:[%s253 + $0xc8] sm:$0xff]
        %v285 = vld [vmem:[%s253 + $0xd0] sm:$0xff]
        %v286 = vld [vmem:[%s253 + $0xd8] sm:$0xff]
        %v287 = vld [vmem:[%s253 + $0xe0] sm:$0xff]
        %v288 = vld [vmem:[%s253 + $0xe8] sm:$0xff]
        %v289 = vld [vmem:[%s253 + $0xf0] sm:$0xff]
        %v290 = vld [vmem:[%s253 + $0xf8] sm:$0xff]
        %v291 = vpack.c.bf16 %v261, %v259
        %v292 = vpack.c.bf16 %v262, %v260
        %v293 = vpack.c.bf16 %v265, %v263
        %v294 = vpack.c.bf16 %v266, %v264
        %v295 = vpack.c.bf16 %v269, %v267
        %v296 = vpack.c.bf16 %v270, %v268
        %v297 = vpack.c.bf16 %v273, %v271
        %v298 = vpack.c.bf16 %v274, %v272
        %v299 = vpack.c.bf16 %v277, %v275
        %v300 = vpack.c.bf16 %v278, %v276
        %v301 = vpack.c.bf16 %v281, %v279
        %v302 = vpack.c.bf16 %v282, %v280
        %v303 = vpack.c.bf16 %v285, %v283
        %v304 = vpack.c.bf16 %v286, %v284
        %v305 = vpack.c.bf16 %v289, %v287
        %v306 = vpack.c.bf16 %v290, %v288
        %v307 = vld [vmem:[#allocation6] sm:$0xff]
        %v308 = vld [vmem:[#allocation6 + $0x8] sm:$0xff]
        %v309 = vld [vmem:[#allocation6 + $0x10] sm:$0xff]
        %v310 = vld [vmem:[#allocation6 + $0x18] sm:$0xff]
        %v311 = vld [vmem:[#allocation6 + $0x20] sm:$0xff]
        %v312 = vld [vmem:[#allocation6 + $0x28] sm:$0xff]
        %v313 = vld [vmem:[#allocation6 + $0x30] sm:$0xff]
        %v314 = vld [vmem:[#allocation6 + $0x38] sm:$0xff]
        %v315 = vld [vmem:[#allocation6 + $0x40] sm:$0xff]
        %v316 = vld [vmem:[#allocation6 + $0x48] sm:$0xff]
        %v317 = vld [vmem:[#allocation6 + $0x50] sm:$0xff]
        %v318 = vld [vmem:[#allocation6 + $0x58] sm:$0xff]
        %v319 = vld [vmem:[#allocation6 + $0x60] sm:$0xff]
        %v320 = vld [vmem:[#allocation6 + $0x68] sm:$0xff]
        %v321 = vld [vmem:[#allocation6 + $0x70] sm:$0xff]
        %v322 = vld [vmem:[#allocation6 + $0x78] sm:$0xff]
        %v323 = vld [vmem:[#allocation6 + $0x80] sm:$0xff]
        %v324 = vld [vmem:[#allocation6 + $0x88] sm:$0xff]
        %v325 = vld [vmem:[#allocation6 + $0x90] sm:$0xff]
        %v326 = vld [vmem:[#allocation6 + $0x98] sm:$0xff]
        %v327 = vld [vmem:[#allocation6 + $0xa0] sm:$0xff]
        %v328 = vld [vmem:[#allocation6 + $0xa8] sm:$0xff]
        %v329 = vld [vmem:[#allocation6 + $0xb0] sm:$0xff]
        %v330 = vld [vmem:[#allocation6 + $0xb8] sm:$0xff]
        %v331 = vld [vmem:[#allocation6 + $0xc0] sm:$0xff]
        %v332 = vld [vmem:[#allocation6 + $0xc8] sm:$0xff]
        %v333 = vld [vmem:[#allocation6 + $0xd0] sm:$0xff]
        %v334 = vld [vmem:[#allocation6 + $0xd8] sm:$0xff]
        %v335 = vld [vmem:[#allocation6 + $0xe0] sm:$0xff]
        %v336 = vld [vmem:[#allocation6 + $0xe8] sm:$0xff]
        %v337 = vld [vmem:[#allocation6 + $0xf0] sm:$0xff]
        %v338 = vld [vmem:[#allocation6 + $0xf8] sm:$0xff]
        %v339 = vld [vmem:[#allocation6 + $0x100] sm:$0xff]
        %v340 = vld [vmem:[#allocation6 + $0x108] sm:$0xff]
        %v341 = vld [vmem:[#allocation6 + $0x110] sm:$0xff]
        %v342 = vld [vmem:[#allocation6 + $0x118] sm:$0xff]
        %v343 = vld [vmem:[#allocation6 + $0x120] sm:$0xff]
        %v344 = vld [vmem:[#allocation6 + $0x128] sm:$0xff]
        %v345 = vld [vmem:[#allocation6 + $0x130] sm:$0xff]
        %v346 = vld [vmem:[#allocation6 + $0x138] sm:$0xff]
        %v347 = vld [vmem:[#allocation6 + $0x140] sm:$0xff]
        %v348 = vld [vmem:[#allocation6 + $0x148] sm:$0xff]
        %v349 = vld [vmem:[#allocation6 + $0x150] sm:$0xff]
        %v350 = vld [vmem:[#allocation6 + $0x158] sm:$0xff]
        %v351 = vld [vmem:[#allocation6 + $0x160] sm:$0xff]
        %v352 = vld [vmem:[#allocation6 + $0x168] sm:$0xff]
        %v353 = vld [vmem:[#allocation6 + $0x170] sm:$0xff]
        %v354 = vld [vmem:[#allocation6 + $0x178] sm:$0xff]
        %v355 = vld [vmem:[#allocation6 + $0x180] sm:$0xff]
        %v356 = vld [vmem:[#allocation6 + $0x188] sm:$0xff]
        %v357 = vld [vmem:[#allocation6 + $0x190] sm:$0xff]
        %v358 = vld [vmem:[#allocation6 + $0x198] sm:$0xff]
        %v359 = vld [vmem:[#allocation6 + $0x1a0] sm:$0xff]
        %v360 = vld [vmem:[#allocation6 + $0x1a8] sm:$0xff]
        %v361 = vld [vmem:[#allocation6 + $0x1b0] sm:$0xff]
        %v362 = vld [vmem:[#allocation6 + $0x1b8] sm:$0xff]
        %v363 = vld [vmem:[#allocation6 + $0x1c0] sm:$0xff]
        %v364 = vld [vmem:[#allocation6 + $0x1c8] sm:$0xff]
        %v365 = vld [vmem:[#allocation6 + $0x1d0] sm:$0xff]
        %v366 = vld [vmem:[#allocation6 + $0x1d8] sm:$0xff]
        %v367 = vld [vmem:[#allocation6 + $0x1e0] sm:$0xff]
        %v368 = vld [vmem:[#allocation6 + $0x1e8] sm:$0xff]
        %v369 = vld [vmem:[#allocation6 + $0x1f0] sm:$0xff]
        %v370 = vld [vmem:[#allocation6 + $0x1f8] sm:$0xff]
        %v371 = vld [vmem:[%s3] sm:$0xf]
        %v373 = vlaneseq
        %v374 = vshrl.u32 %v373, 7
        %v375 = vsub.s32 0, %v374
        %v376 = vrot.slane %v371, %v375
        %v377 = vlaneseq
        %v378 = vshrl.u32 %v377, 7
        %v379 = vsub.s32 1, %v378
        %v380 = vrot.slane %v371, %v379
        %v381 = vlaneseq
        %v382 = vshrl.u32 %v381, 7
        %v383 = vsub.s32 2, %v382
        %v384 = vrot.slane %v371, %v383
        %v385 = vlaneseq
        %v386 = vshrl.u32 %v385, 7
        %v387 = vsub.s32 3, %v386
        %v388 = vrot.slane %v371, %v387
        %v457 = vunpack.c.l.b16 %v307
        %v458 = vunpack.c.h.b16 %v307
        %v459 = vunpack.c.l.b16 %v308
        %v460 = vunpack.c.h.b16 %v308
        %v461 = vunpack.c.l.b16 %v309
        %v462 = vunpack.c.h.b16 %v309
        %v463 = vunpack.c.l.b16 %v310
        %v464 = vunpack.c.h.b16 %v310
        %v465 = vunpack.c.l.b16 %v311
        %v466 = vunpack.c.h.b16 %v311
        %v467 = vunpack.c.l.b16 %v312
        %v468 = vunpack.c.h.b16 %v312
        %v469 = vunpack.c.l.b16 %v313
        %v470 = vunpack.c.h.b16 %v313
        %v471 = vunpack.c.l.b16 %v314
        %v472 = vunpack.c.h.b16 %v314
        %v473 = vunpack.c.l.b16 %v315
        %v474 = vunpack.c.h.b16 %v315
        %v475 = vunpack.c.l.b16 %v316
        %v476 = vunpack.c.h.b16 %v316
        %v477 = vunpack.c.l.b16 %v317
        %v478 = vunpack.c.h.b16 %v317
        %v479 = vunpack.c.l.b16 %v318
        %v480 = vunpack.c.h.b16 %v318
        %v481 = vunpack.c.l.b16 %v319
        %v482 = vunpack.c.h.b16 %v319
        %v483 = vunpack.c.l.b16 %v320
        %v484 = vunpack.c.h.b16 %v320
        %v485 = vunpack.c.l.b16 %v321
        %v486 = vunpack.c.h.b16 %v321
        %v487 = vunpack.c.l.b16 %v322
        %v488 = vunpack.c.h.b16 %v322
        %v489 = vunpack.c.l.b16 %v323
        %v490 = vunpack.c.h.b16 %v323
        %v491 = vunpack.c.l.b16 %v324
        %v492 = vunpack.c.h.b16 %v324
        %v493 = vunpack.c.l.b16 %v325
        %v494 = vunpack.c.h.b16 %v325
        %v495 = vunpack.c.l.b16 %v326
        %v496 = vunpack.c.h.b16 %v326
        %v497 = vunpack.c.l.b16 %v327
        %v498 = vunpack.c.h.b16 %v327
        %v499 = vunpack.c.l.b16 %v328
        %v500 = vunpack.c.h.b16 %v328
        %v501 = vunpack.c.l.b16 %v329
        %v502 = vunpack.c.h.b16 %v329
        %v503 = vunpack.c.l.b16 %v330
        %v504 = vunpack.c.h.b16 %v330
        %v505 = vunpack.c.l.b16 %v331
        %v506 = vunpack.c.h.b16 %v331
        %v507 = vunpack.c.l.b16 %v332
        %v508 = vunpack.c.h.b16 %v332
        %v509 = vunpack.c.l.b16 %v333
        %v510 = vunpack.c.h.b16 %v333
        %v511 = vunpack.c.l.b16 %v334
        %v512 = vunpack.c.h.b16 %v334
        %v513 = vunpack.c.l.b16 %v335
        %v514 = vunpack.c.h.b16 %v335
        %v515 = vunpack.c.l.b16 %v336
        %v516 = vunpack.c.h.b16 %v336
        %v517 = vunpack.c.l.b16 %v337
        %v518 = vunpack.c.h.b16 %v337
        %v519 = vunpack.c.l.b16 %v338
        %v520 = vunpack.c.h.b16 %v338
        %v521 = vunpack.c.l.b16 %v339
        %v522 = vunpack.c.h.b16 %v339
        %v523 = vunpack.c.l.b16 %v340
        %v524 = vunpack.c.h.b16 %v340
        %v525 = vunpack.c.l.b16 %v341
        %v526 = vunpack.c.h.b16 %v341
        %v527 = vunpack.c.l.b16 %v342
        %v528 = vunpack.c.h.b16 %v342
        %v529 = vunpack.c.l.b16 %v343
        %v530 = vunpack.c.h.b16 %v343
        %v531 = vunpack.c.l.b16 %v344
        %v532 = vunpack.c.h.b16 %v344
        %v533 = vunpack.c.l.b16 %v345
        %v534 = vunpack.c.h.b16 %v345
        %v535 = vunpack.c.l.b16 %v346
        %v536 = vunpack.c.h.b16 %v346
        %v537 = vunpack.c.l.b16 %v347
        %v538 = vunpack.c.h.b16 %v347
        %v539 = vunpack.c.l.b16 %v348
        %v540 = vunpack.c.h.b16 %v348
        %v541 = vunpack.c.l.b16 %v349
        %v542 = vunpack.c.h.b16 %v349
        %v543 = vunpack.c.l.b16 %v350
        %v544 = vunpack.c.h.b16 %v350
        %v545 = vunpack.c.l.b16 %v351
        %v546 = vunpack.c.h.b16 %v351
        %v547 = vunpack.c.l.b16 %v352
        %v548 = vunpack.c.h.b16 %v352
        %v549 = vunpack.c.l.b16 %v353
        %v550 = vunpack.c.h.b16 %v353
        %v551 = vunpack.c.l.b16 %v354
        %v552 = vunpack.c.h.b16 %v354
        %v553 = vunpack.c.l.b16 %v355
        %v554 = vunpack.c.h.b16 %v355
        %v555 = vunpack.c.l.b16 %v356
        %v556 = vunpack.c.h.b16 %v356
        %v557 = vunpack.c.l.b16 %v357
        %v558 = vunpack.c.h.b16 %v357
        %v559 = vunpack.c.l.b16 %v358
        %v560 = vunpack.c.h.b16 %v358
        %v561 = vunpack.c.l.b16 %v359
        %v562 = vunpack.c.h.b16 %v359
        %v563 = vunpack.c.l.b16 %v360
        %v564 = vunpack.c.h.b16 %v360
        %v565 = vunpack.c.l.b16 %v361
        %v566 = vunpack.c.h.b16 %v361
        %v567 = vunpack.c.l.b16 %v362
        %v568 = vunpack.c.h.b16 %v362
        %v569 = vunpack.c.l.b16 %v363
        %v570 = vunpack.c.h.b16 %v363
        %v571 = vunpack.c.l.b16 %v364
        %v572 = vunpack.c.h.b16 %v364
        %v573 = vunpack.c.l.b16 %v365
        %v574 = vunpack.c.h.b16 %v365
        %v575 = vunpack.c.l.b16 %v366
        %v576 = vunpack.c.h.b16 %v366
        %v577 = vunpack.c.l.b16 %v367
        %v578 = vunpack.c.h.b16 %v367
        %v579 = vunpack.c.l.b16 %v368
        %v580 = vunpack.c.h.b16 %v368
        %v581 = vunpack.c.l.b16 %v369
        %v582 = vunpack.c.h.b16 %v369
        %v583 = vunpack.c.l.b16 %v370
        %v584 = vunpack.c.h.b16 %v370
        %v585 = vpack.c.b16 %v461, %v457
        %v586 = vpack.c.b16 %v462, %v458
        %v587 = vpack.c.b16 %v463, %v459
        %v588 = vpack.c.b16 %v464, %v460
        %v589 = vpack.c.b16 %v469, %v465
        %v590 = vpack.c.b16 %v470, %v466
        %v591 = vpack.c.b16 %v471, %v467
        %v592 = vpack.c.b16 %v472, %v468
        %v593 = vpack.c.b16 %v477, %v473
        %v594 = vpack.c.b16 %v478, %v474
        %v595 = vpack.c.b16 %v479, %v475
        %v596 = vpack.c.b16 %v480, %v476
        %v597 = vpack.c.b16 %v485, %v481
        %v598 = vpack.c.b16 %v486, %v482
        %v599 = vpack.c.b16 %v487, %v483
        %v600 = vpack.c.b16 %v488, %v484
        %v601 = vpack.c.b16 %v493, %v489
        %v602 = vpack.c.b16 %v494, %v490
        %v603 = vpack.c.b16 %v495, %v491
        %v604 = vpack.c.b16 %v496, %v492
        %v605 = vpack.c.b16 %v501, %v497
        %v606 = vpack.c.b16 %v502, %v498
        %v607 = vpack.c.b16 %v503, %v499
        %v608 = vpack.c.b16 %v504, %v500
        %v609 = vpack.c.b16 %v509, %v505
        %v610 = vpack.c.b16 %v510, %v506
        %v611 = vpack.c.b16 %v511, %v507
        %v612 = vpack.c.b16 %v512, %v508
        %v613 = vpack.c.b16 %v517, %v513
        %v614 = vpack.c.b16 %v518, %v514
        %v615 = vpack.c.b16 %v519, %v515
        %v616 = vpack.c.b16 %v520, %v516
        %v617 = vpack.c.b16 %v525, %v521
        %v618 = vpack.c.b16 %v526, %v522
        %v619 = vpack.c.b16 %v527, %v523
        %v620 = vpack.c.b16 %v528, %v524
        %v621 = vpack.c.b16 %v533, %v529
        %v622 = vpack.c.b16 %v534, %v530
        %v623 = vpack.c.b16 %v535, %v531
        %v624 = vpack.c.b16 %v536, %v532
        %v625 = vpack.c.b16 %v541, %v537
        %v626 = vpack.c.b16 %v542, %v538
        %v627 = vpack.c.b16 %v543, %v539
        %v628 = vpack.c.b16 %v544, %v540
        %v629 = vpack.c.b16 %v549, %v545
        %v630 = vpack.c.b16 %v550, %v546
        %v631 = vpack.c.b16 %v551, %v547
        %v632 = vpack.c.b16 %v552, %v548
        %v633 = vpack.c.b16 %v557, %v553
        %v634 = vpack.c.b16 %v558, %v554
        %v635 = vpack.c.b16 %v559, %v555
        %v636 = vpack.c.b16 %v560, %v556
        %v637 = vpack.c.b16 %v565, %v561
        %v638 = vpack.c.b16 %v566, %v562
        %v639 = vpack.c.b16 %v567, %v563
        %v640 = vpack.c.b16 %v568, %v564
        %v641 = vpack.c.b16 %v573, %v569
        %v642 = vpack.c.b16 %v574, %v570
        %v643 = vpack.c.b16 %v575, %v571
        %v644 = vpack.c.b16 %v576, %v572
        %v645 = vpack.c.b16 %v581, %v577
        %v646 = vpack.c.b16 %v582, %v578
        %v647 = vpack.c.b16 %v583, %v579
        %v648 = vpack.c.b16 %v584, %v580
        %713 = vmatprep.subr.bf16.mxu0 %v586
        %714 = vmatpush1.bf16.msra.mxu0 %v585
        %715 = vmatprep.subr.bf16.mxu0 %v590
        %716 = vmatpush1.bf16.msra.mxu0 %v589
        %717 = vmatprep.subr.bf16.mxu0 %v594
        %718 = vmatpush1.bf16.msra.mxu0 %v593
        %719 = vmatprep.subr.bf16.mxu0 %v598
        %720 = vmatpush1.bf16.msra.mxu0 %v597
        %721 = vmatprep.subr.bf16.mxu0 %v602
        %722 = vmatpush1.bf16.msra.mxu0 %v601
        %723 = vmatprep.subr.bf16.mxu0 %v606
        %724 = vmatpush1.bf16.msra.mxu0 %v605
        %725 = vmatprep.subr.bf16.mxu0 %v610
        %726 = vmatpush1.bf16.msra.mxu0 %v609
        %727 = vmatprep.subr.bf16.mxu0 %v614
        %728 = vmatpush1.bf16.msra.mxu0 %v613
        %729 = vmatprep.subr.bf16.mxu0 %v618
        %730 = vmatpush1.bf16.msra.mxu0 %v617
        %731 = vmatprep.subr.bf16.mxu0 %v622
        %732 = vmatpush1.bf16.msra.mxu0 %v621
        %733 = vmatprep.subr.bf16.mxu0 %v626
        %734 = vmatpush1.bf16.msra.mxu0 %v625
        %735 = vmatprep.subr.bf16.mxu0 %v630
        %736 = vmatpush1.bf16.msra.mxu0 %v629
        %737 = vmatprep.subr.bf16.mxu0 %v634
        %738 = vmatpush1.bf16.msra.mxu0 %v633
        %739 = vmatprep.subr.bf16.mxu0 %v638
        %740 = vmatpush1.bf16.msra.mxu0 %v637
        %741 = vmatprep.subr.bf16.mxu0 %v642
        %742 = vmatpush1.bf16.msra.mxu0 %v641
        %743 = vmatprep.subr.bf16.mxu0 %v646
        %744 = vmatpush1.bf16.msra.mxu0 %v645
        %745 = vmatprep.mubr.bf16.mxu0 %v292
        %746 = vmatmul.mubr.bf16.gmra.mrb[0].mxu0 %v291
        %v747 = vpop.f32.mrb[0].mxu0
        %v748 = vadd.f32 %v376, %v747
        %v749 = vpop.f32.mrb[0].mxu0
        %v750 = vadd.f32 %v380, %v749
        %v751 = vpop.f32.mrb[0].mxu0
        %v752 = vadd.f32 %v376, %v751
        %v753 = vpop.f32.mrb[0].mxu0
        %v754 = vadd.f32 %v380, %v753
        %755 = vmatprep.mubr.bf16.mxu0 %v294
        %756 = vmatmul.mubr.bf16.gmra.mrb[0].mxu0 %v293
        %v757 = vpop.f32.mrb[0].mxu0
        %v758 = vadd.f32 %v376, %v757
        %v759 = vpop.f32.mrb[0].mxu0
        %v760 = vadd.f32 %v380, %v759
        %v761 = vpop.f32.mrb[0].mxu0
        %v762 = vadd.f32 %v376, %v761
        %v763 = vpop.f32.mrb[0].mxu0
        %v764 = vadd.f32 %v380, %v763
        %765 = vmatprep.mubr.bf16.mxu0 %v296
        %766 = vmatmul.mubr.bf16.gmra.mrb[0].mxu0 %v295
        %v767 = vpop.f32.mrb[0].mxu0
        %v768 = vadd.f32 %v376, %v767
        %v769 = vpop.f32.mrb[0].mxu0
        %v770 = vadd.f32 %v380, %v769
        %v771 = vpop.f32.mrb[0].mxu0
        %v772 = vadd.f32 %v376, %v771
        %v773 = vpop.f32.mrb[0].mxu0
        %v774 = vadd.f32 %v380, %v773
        %775 = vmatprep.mubr.bf16.mxu0 %v298
        %776 = vmatmul.mubr.bf16.gmra.mrb[0].mxu0 %v297
        %v777 = vpop.f32.mrb[0].mxu0
        %v778 = vadd.f32 %v376, %v777
        %v779 = vpop.f32.mrb[0].mxu0
        %v780 = vadd.f32 %v380, %v779
        %v781 = vpop.f32.mrb[0].mxu0
        %v782 = vadd.f32 %v376, %v781
        %v783 = vpop.f32.mrb[0].mxu0
        %v784 = vadd.f32 %v380, %v783
        %785 = vmatprep.mubr.bf16.mxu0 %v300
        %786 = vmatmul.mubr.bf16.gmra.mrb[0].mxu0 %v299
        %v787 = vpop.f32.mrb[0].mxu0
        %v788 = vadd.f32 %v376, %v787
        %v789 = vpop.f32.mrb[0].mxu0
        %v790 = vadd.f32 %v380, %v789
        %v791 = vpop.f32.mrb[0].mxu0
        %v792 = vadd.f32 %v376, %v791
        %v793 = vpop.f32.mrb[0].mxu0
        %v794 = vadd.f32 %v380, %v793
        %795 = vmatprep.mubr.bf16.mxu0 %v302
        %796 = vmatmul.mubr.bf16.gmra.mrb[0].mxu0 %v301
        %v797 = vpop.f32.mrb[0].mxu0
        %v798 = vadd.f32 %v376, %v797
        %v799 = vpop.f32.mrb[0].mxu0
        %v800 = vadd.f32 %v380, %v799
        %v801 = vpop.f32.mrb[0].mxu0
        %v802 = vadd.f32 %v376, %v801
        %v803 = vpop.f32.mrb[0].mxu0
        %v804 = vadd.f32 %v380, %v803
        %805 = vmatprep.mubr.bf16.mxu0 %v304
        %806 = vmatmul.mubr.bf16.gmra.mrb[0].mxu0 %v303
        %v807 = vpop.f32.mrb[0].mxu0
        %v808 = vadd.f32 %v376, %v807
        %v809 = vpop.f32.mrb[0].mxu0
        %v810 = vadd.f32 %v380, %v809
        %v811 = vpop.f32.mrb[0].mxu0
        %v812 = vadd.f32 %v376, %v811
        %v813 = vpop.f32.mrb[0].mxu0
        %v814 = vadd.f32 %v380, %v813
        %815 = vmatprep.mubr.bf16.mxu0 %v306
        %816 = vmatmul.mubr.bf16.gmra.mrb[0].mxu0 %v305
        %v817 = vpop.f32.mrb[0].mxu0
        %v818 = vadd.f32 %v376, %v817
        %v819 = vpop.f32.mrb[0].mxu0
        %v820 = vadd.f32 %v380, %v819
        %v821 = vpop.f32.mrb[0].mxu0
        %v822 = vadd.f32 %v376, %v821
        %v823 = vpop.f32.mrb[0].mxu0
        %v824 = vadd.f32 %v380, %v823
        %825 = vdwg.mxu0
        %826 = vmatprep.subr.bf16.mxu0 %v588
        %827 = vmatpush1.bf16.msra.mxu0 %v587
        %828 = vmatprep.subr.bf16.mxu0 %v592
        %829 = vmatpush1.bf16.msra.mxu0 %v591
        %830 = vmatprep.subr.bf16.mxu0 %v596
        %831 = vmatpush1.bf16.msra.mxu0 %v595
        %832 = vmatprep.subr.bf16.mxu0 %v600
        %833 = vmatpush1.bf16.msra.mxu0 %v599
        %834 = vmatprep.subr.bf16.mxu0 %v604
        %835 = vmatpush1.bf16.msra.mxu0 %v603
        %836 = vmatprep.subr.bf16.mxu0 %v608
        %837 = vmatpush1.bf16.msra.mxu0 %v607
        %838 = vmatprep.subr.bf16.mxu0 %v612
        %839 = vmatpush1.bf16.msra.mxu0 %v611
        %840 = vmatprep.subr.bf16.mxu0 %v616
        %841 = vmatpush1.bf16.msra.mxu0 %v615
        %842 = vmatprep.subr.bf16.mxu0 %v620
        %843 = vmatpush1.bf16.msra.mxu0 %v619
        %844 = vmatprep.subr.bf16.mxu0 %v624
        %845 = vmatpush1.bf16.msra.mxu0 %v623
        %846 = vmatprep.subr.bf16.mxu0 %v628
        %847 = vmatpush1.bf16.msra.mxu0 %v627
        %848 = vmatprep.subr.bf16.mxu0 %v632
        %849 = vmatpush1.bf16.msra.mxu0 %v631
        %850 = vmatprep.subr.bf16.mxu0 %v636
        %851 = vmatpush1.bf16.msra.mxu0 %v635
        %852 = vmatprep.subr.bf16.mxu0 %v640
        %853 = vmatpush1.bf16.msra.mxu0 %v639
        %854 = vmatprep.subr.bf16.mxu0 %v644
        %855 = vmatpush1.bf16.msra.mxu0 %v643
        %856 = vmatprep.subr.bf16.mxu0 %v648
        %857 = vmatpush1.bf16.msra.mxu0 %v647
        %858 = vmatprep.mubr.bf16.mxu0 %v292
        %859 = vmatmul.mubr.bf16.gmra.mrb[0].mxu0 %v291
        %v860 = vpop.f32.mrb[0].mxu0
        %v861 = vadd.f32 %v384, %v860
        %v862 = vpop.f32.mrb[0].mxu0
        %v863 = vadd.f32 %v388, %v862
        %v864 = vpop.f32.mrb[0].mxu0
        %v865 = vadd.f32 %v384, %v864
        %v866 = vpop.f32.mrb[0].mxu0
        %v867 = vadd.f32 %v388, %v866
        %868 = vmatprep.mubr.bf16.mxu0 %v294
        %869 = vmatmul.mubr.bf16.gmra.mrb[0].mxu0 %v293
        %v870 = vpop.f32.mrb[0].mxu0
        %v871 = vadd.f32 %v384, %v870
        %v872 = vpop.f32.mrb[0].mxu0
        %v873 = vadd.f32 %v388, %v872
        %v874 = vpop.f32.mrb[0].mxu0
        %v875 = vadd.f32 %v384, %v874
        %v876 = vpop.f32.mrb[0].mxu0
        %v877 = vadd.f32 %v388, %v876
        %878 = vmatprep.mubr.bf16.mxu0 %v296
        %879 = vmatmul.mubr.bf16.gmra.mrb[0].mxu0 %v295
        %v880 = vpop.f32.mrb[0].mxu0
        %v881 = vadd.f32 %v384, %v880
        %v882 = vpop.f32.mrb[0].mxu0
        %v883 = vadd.f32 %v388, %v882
        %v884 = vpop.f32.mrb[0].mxu0
        %v885 = vadd.f32 %v384, %v884
        %v886 = vpop.f32.mrb[0].mxu0
        %v887 = vadd.f32 %v388, %v886
        %888 = vmatprep.mubr.bf16.mxu0 %v298
        %889 = vmatmul.mubr.bf16.gmra.mrb[0].mxu0 %v297
        %v890 = vpop.f32.mrb[0].mxu0
        %v891 = vadd.f32 %v384, %v890
        %v892 = vpop.f32.mrb[0].mxu0
        %v893 = vadd.f32 %v388, %v892
        %v894 = vpop.f32.mrb[0].mxu0
        %v895 = vadd.f32 %v384, %v894
        %v896 = vpop.f32.mrb[0].mxu0
        %v897 = vadd.f32 %v388, %v896
        %898 = vmatprep.mubr.bf16.mxu0 %v300
        %899 = vmatmul.mubr.bf16.gmra.mrb[0].mxu0 %v299
        %v900 = vpop.f32.mrb[0].mxu0
        %v901 = vadd.f32 %v384, %v900
        %v902 = vpop.f32.mrb[0].mxu0
        %v903 = vadd.f32 %v388, %v902
        %v904 = vpop.f32.mrb[0].mxu0
        %v905 = vadd.f32 %v384, %v904
        %v906 = vpop.f32.mrb[0].mxu0
        %v907 = vadd.f32 %v388, %v906
        %908 = vmatprep.mubr.bf16.mxu0 %v302
        %909 = vmatmul.mubr.bf16.gmra.mrb[0].mxu0 %v301
        %v910 = vpop.f32.mrb[0].mxu0
        %v911 = vadd.f32 %v384, %v910
        %v912 = vpop.f32.mrb[0].mxu0
        %v913 = vadd.f32 %v388, %v912
        %v914 = vpop.f32.mrb[0].mxu0
        %v915 = vadd.f32 %v384, %v914
        %v916 = vpop.f32.mrb[0].mxu0
        %v917 = vadd.f32 %v388, %v916
        %918 = vmatprep.mubr.bf16.mxu0 %v304
        %919 = vmatmul.mubr.bf16.gmra.mrb[0].mxu0 %v303
        %v920 = vpop.f32.mrb[0].mxu0
        %v921 = vadd.f32 %v384, %v920
        %v922 = vpop.f32.mrb[0].mxu0
        %v923 = vadd.f32 %v388, %v922
        %v924 = vpop.f32.mrb[0].mxu0
        %v925 = vadd.f32 %v384, %v924
        %v926 = vpop.f32.mrb[0].mxu0
        %v927 = vadd.f32 %v388, %v926
        %928 = vmatprep.mubr.bf16.mxu0 %v306
        %929 = vmatmul.mubr.bf16.gmra.mrb[0].mxu0 %v305
        %v930 = vpop.f32.mrb[0].mxu0
        %v931 = vadd.f32 %v384, %v930
        %v932 = vpop.f32.mrb[0].mxu0
        %v933 = vadd.f32 %v388, %v932
        %v934 = vpop.f32.mrb[0].mxu0
        %v935 = vadd.f32 %v384, %v934
        %v936 = vpop.f32.mrb[0].mxu0
        %v937 = vadd.f32 %v388, %v936
        %938 = vdwg.mxu0
        %v939 = vmax.f32 %v748, %v750
        %v940 = vmax.f32 %v939, %v861
        %v941 = vmax.f32 %v940, %v863
        %942 = vmax.xlane.f32.xlu0 %v941
        %v943 = vpop.xlane.xlu0 %942
        %v944 = vmax.f32 %v752, %v754
        %v945 = vmax.f32 %v944, %v865
        %v946 = vmax.f32 %v945, %v867
        %947 = vmax.xlane.f32.xlu0 %v946
        %v948 = vpop.xlane.xlu0 %947
        %v949 = vmax.f32 %v758, %v760
        %v950 = vmax.f32 %v949, %v871
        %v951 = vmax.f32 %v950, %v873
        %952 = vmax.xlane.f32.xlu0 %v951
        %v953 = vpop.xlane.xlu0 %952
        %v954 = vmax.f32 %v762, %v764
        %v955 = vmax.f32 %v954, %v875
        %v956 = vmax.f32 %v955, %v877
        %957 = vmax.xlane.f32.xlu0 %v956
        %v958 = vpop.xlane.xlu0 %957
        %v959 = vmax.f32 %v768, %v770
        %v960 = vmax.f32 %v959, %v881
        %v961 = vmax.f32 %v960, %v883
        %962 = vmax.xlane.f32.xlu0 %v961
        %v963 = vpop.xlane.xlu0 %962
        %v964 = vmax.f32 %v772, %v774
        %v965 = vmax.f32 %v964, %v885
        %v966 = vmax.f32 %v965, %v887
        %967 = vmax.xlane.f32.xlu0 %v966
        %v968 = vpop.xlane.xlu0 %967
        %v969 = vmax.f32 %v778, %v780
        %v970 = vmax.f32 %v969, %v891
        %v971 = vmax.f32 %v970, %v893
        %972 = vmax.xlane.f32.xlu0 %v971
        %v973 = vpop.xlane.xlu0 %972
        %v974 = vmax.f32 %v782, %v784
        %v975 = vmax.f32 %v974, %v895
        %v976 = vmax.f32 %v975, %v897
        %977 = vmax.xlane.f32.xlu0 %v976
        %v978 = vpop.xlane.xlu0 %977
        %v979 = vmax.f32 %v788, %v790
        %v980 = vmax.f32 %v979, %v901
        %v981 = vmax.f32 %v980, %v903
        %982 = vmax.xlane.f32.xlu0 %v981
        %v983 = vpop.xlane.xlu0 %982
        %v984 = vmax.f32 %v792, %v794
        %v985 = vmax.f32 %v984, %v905
        %v986 = vmax.f32 %v985, %v907
        %987 = vmax.xlane.f32.xlu0 %v986
        %v988 = vpop.xlane.xlu0 %987
        %v989 = vmax.f32 %v798, %v800
        %v990 = vmax.f32 %v989, %v911
        %v991 = vmax.f32 %v990, %v913
        %992 = vmax.xlane.f32.xlu0 %v991
        %v993 = vpop.xlane.xlu0 %992
        %v994 = vmax.f32 %v802, %v804
        %v995 = vmax.f32 %v994, %v915
        %v996 = vmax.f32 %v995, %v917
        %997 = vmax.xlane.f32.xlu0 %v996
        %v998 = vpop.xlane.xlu0 %997
        %v999 = vmax.f32 %v808, %v810
        %v1000 = vmax.f32 %v999, %v921
        %v1001 = vmax.f32 %v1000, %v923
        %1002 = vmax.xlane.f32.xlu0 %v1001
        %v1003 = vpop.xlane.xlu0 %1002
        %v1004 = vmax.f32 %v812, %v814
        %v1005 = vmax.f32 %v1004, %v925
        %v1006 = vmax.f32 %v1005, %v927
        %1007 = vmax.xlane.f32.xlu0 %v1006
        %v1008 = vpop.xlane.xlu0 %1007
        %v1009 = vmax.f32 %v818, %v820
        %v1010 = vmax.f32 %v1009, %v931
        %v1011 = vmax.f32 %v1010, %v933
        %1012 = vmax.xlane.f32.xlu0 %v1011
        %v1013 = vpop.xlane.xlu0 %1012
        %v1014 = vmax.f32 %v822, %v824
        %v1015 = vmax.f32 %v1014, %v935
        %v1016 = vmax.f32 %v1015, %v937
        %1017 = vmax.xlane.f32.xlu0 %v1016
        %v1018 = vpop.xlane.xlu0 %1017
        %v1019 = vsub.f32 %v748, %v943
        %v1020 = vsub.f32 %v750, %v943
        %v1021 = vsub.f32 %v861, %v943
        %v1022 = vsub.f32 %v863, %v943
        %v1023 = vsub.f32 %v752, %v948
        %v1024 = vsub.f32 %v754, %v948
        %v1025 = vsub.f32 %v865, %v948
        %v1026 = vsub.f32 %v867, %v948
        %v1027 = vsub.f32 %v758, %v953
        %v1028 = vsub.f32 %v760, %v953
        %v1029 = vsub.f32 %v871, %v953
        %v1030 = vsub.f32 %v873, %v953
        %v1031 = vsub.f32 %v762, %v958
        %v1032 = vsub.f32 %v764, %v958
        %v1033 = vsub.f32 %v875, %v958
        %v1034 = vsub.f32 %v877, %v958
        %v1035 = vsub.f32 %v768, %v963
        %v1036 = vsub.f32 %v770, %v963
        %v1037 = vsub.f32 %v881, %v963
        %v1038 = vsub.f32 %v883, %v963
        %v1039 = vsub.f32 %v772, %v968
        %v1040 = vsub.f32 %v774, %v968
        %v1041 = vsub.f32 %v885, %v968
        %v1042 = vsub.f32 %v887, %v968
        %v1043 = vsub.f32 %v778, %v973
        %v1044 = vsub.f32 %v780, %v973
        %v1045 = vsub.f32 %v891, %v973
        %v1046 = vsub.f32 %v893, %v973
        %v1047 = vsub.f32 %v782, %v978
        %v1048 = vsub.f32 %v784, %v978
        %v1049 = vsub.f32 %v895, %v978
        %v1050 = vsub.f32 %v897, %v978
        %v1051 = vsub.f32 %v788, %v983
        %v1052 = vsub.f32 %v790, %v983
        %v1053 = vsub.f32 %v901, %v983
        %v1054 = vsub.f32 %v903, %v983
        %v1055 = vsub.f32 %v792, %v988
        %v1056 = vsub.f32 %v794, %v988
        %v1057 = vsub.f32 %v905, %v988
        %v1058 = vsub.f32 %v907, %v988
        %v1059 = vsub.f32 %v798, %v993
        %v1060 = vsub.f32 %v800, %v993
        %v1061 = vsub.f32 %v911, %v993
        %v1062 = vsub.f32 %v913, %v993
        %v1063 = vsub.f32 %v802, %v998
        %v1064 = vsub.f32 %v804, %v998
        %v1065 = vsub.f32 %v915, %v998
        %v1066 = vsub.f32 %v917, %v998
        %v1067 = vsub.f32 %v808, %v1003
        %v1068 = vsub.f32 %v810, %v1003
        %v1069 = vsub.f32 %v921, %v1003
        %v1070 = vsub.f32 %v923, %v1003
        %v1071 = vsub.f32 %v812, %v1008
        %v1072 = vsub.f32 %v814, %v1008
        %v1073 = vsub.f32 %v925, %v1008
        %v1074 = vsub.f32 %v927, %v1008
        %v1075 = vsub.f32 %v818, %v1013
        %v1076 = vsub.f32 %v820, %v1013
        %v1077 = vsub.f32 %v931, %v1013
        %v1078 = vsub.f32 %v933, %v1013
        %v1079 = vsub.f32 %v822, %v1018
        %v1080 = vsub.f32 %v824, %v1018
        %v1081 = vsub.f32 %v935, %v1018
        %v1082 = vsub.f32 %v937, %v1018
        %v1083 = vmul.f32 %v1019, 1.442695
        %v1084 = vpow.pop %v1083
        %v1085 = vmul.f32 %v1020, 1.442695
        %v1086 = vpow.pop %v1085
        %v1087 = vmul.f32 %v1021, 1.442695
        %v1088 = vpow.pop %v1087
        %v1089 = vmul.f32 %v1022, 1.442695
        %v1090 = vpow.pop %v1089
        %v1091 = vmul.f32 %v1023, 1.442695
        %v1092 = vpow.pop %v1091
        %v1093 = vmul.f32 %v1024, 1.442695
        %v1094 = vpow.pop %v1093
        %v1095 = vmul.f32 %v1025, 1.442695
        %v1096 = vpow.pop %v1095
        %v1097 = vmul.f32 %v1026, 1.442695
        %v1098 = vpow.pop %v1097
        %v1099 = vmul.f32 %v1027, 1.442695
        %v1100 = vpow.pop %v1099
        %v1101 = vmul.f32 %v1028, 1.442695
        %v1102 = vpow.pop %v1101
        %v1103 = vmul.f32 %v1029, 1.442695
        %v1104 = vpow.pop %v1103
        %v1105 = vmul.f32 %v1030, 1.442695
        %v1106 = vpow.pop %v1105
        %v1107 = vmul.f32 %v1031, 1.442695
        %v1108 = vpow.pop %v1107
        %v1109 = vmul.f32 %v1032, 1.442695
        %v1110 = vpow.pop %v1109
        %v1111 = vmul.f32 %v1033, 1.442695
        %v1112 = vpow.pop %v1111
        %v1113 = vmul.f32 %v1034, 1.442695
        %v1114 = vpow.pop %v1113
        %v1115 = vmul.f32 %v1035, 1.442695
        %v1116 = vpow.pop %v1115
        %v1117 = vmul.f32 %v1036, 1.442695
        %v1118 = vpow.pop %v1117
        %v1119 = vmul.f32 %v1037, 1.442695
        %v1120 = vpow.pop %v1119
        %v1121 = vmul.f32 %v1038, 1.442695
        %v1122 = vpow.pop %v1121
        %v1123 = vmul.f32 %v1039, 1.442695
        %v1124 = vpow.pop %v1123
        %v1125 = vmul.f32 %v1040, 1.442695
        %v1126 = vpow.pop %v1125
        %v1127 = vmul.f32 %v1041, 1.442695
        %v1128 = vpow.pop %v1127
        %v1129 = vmul.f32 %v1042, 1.442695
        %v1130 = vpow.pop %v1129
        %v1131 = vmul.f32 %v1043, 1.442695
        %v1132 = vpow.pop %v1131
        %v1133 = vmul.f32 %v1044, 1.442695
        %v1134 = vpow.pop %v1133
        %v1135 = vmul.f32 %v1045, 1.442695
        %v1136 = vpow.pop %v1135
        %v1137 = vmul.f32 %v1046, 1.442695
        %v1138 = vpow.pop %v1137
        %v1139 = vmul.f32 %v1047, 1.442695
        %v1140 = vpow.pop %v1139
        %v1141 = vmul.f32 %v1048, 1.442695
        %v1142 = vpow.pop %v1141
        %v1143 = vmul.f32 %v1049, 1.442695
        %v1144 = vpow.pop %v1143
        %v1145 = vmul.f32 %v1050, 1.442695
        %v1146 = vpow.pop %v1145
        %v1147 = vmul.f32 %v1051, 1.442695
        %v1148 = vpow.pop %v1147
        %v1149 = vmul.f32 %v1052, 1.442695
        %v1150 = vpow.pop %v1149
        %v1151 = vmul.f32 %v1053, 1.442695
        %v1152 = vpow.pop %v1151
        %v1153 = vmul.f32 %v1054, 1.442695
        %v1154 = vpow.pop %v1153
        %v1155 = vmul.f32 %v1055, 1.442695
        %v1156 = vpow.pop %v1155
        %v1157 = vmul.f32 %v1056, 1.442695
        %v1158 = vpow.pop %v1157
        %v1159 = vmul.f32 %v1057, 1.442695
        %v1160 = vpow.pop %v1159
        %v1161 = vmul.f32 %v1058, 1.442695
        %v1162 = vpow.pop %v1161
        %v1163 = vmul.f32 %v1059, 1.442695
        %v1164 = vpow.pop %v1163
        %v1165 = vmul.f32 %v1060, 1.442695
        %v1166 = vpow.pop %v1165
        %v1167 = vmul.f32 %v1061, 1.442695
        %v1168 = vpow.pop %v1167
        %v1169 = vmul.f32 %v1062, 1.442695
        %v1170 = vpow.pop %v1169
        %v1171 = vmul.f32 %v1063, 1.442695
        %v1172 = vpow.pop %v1171
        %v1173 = vmul.f32 %v1064, 1.442695
        %v1174 = vpow.pop %v1173
        %v1175 = vmul.f32 %v1065, 1.442695
        %v1176 = vpow.pop %v1175
        %v1177 = vmul.f32 %v1066, 1.442695
        %v1178 = vpow.pop %v1177
        %v1179 = vmul.f32 %v1067, 1.442695
        %v1180 = vpow.pop %v1179
        %v1181 = vmul.f32 %v1068, 1.442695
        %v1182 = vpow.pop %v1181
        %v1183 = vmul.f32 %v1069, 1.442695
        %v1184 = vpow.pop %v1183
        %v1185 = vmul.f32 %v1070, 1.442695
        %v1186 = vpow.pop %v1185
        %v1187 = vmul.f32 %v1071, 1.442695
        %v1188 = vpow.pop %v1187
        %v1189 = vmul.f32 %v1072, 1.442695
        %v1190 = vpow.pop %v1189
        %v1191 = vmul.f32 %v1073, 1.442695
        %v1192 = vpow.pop %v1191
        %v1193 = vmul.f32 %v1074, 1.442695
        %v1194 = vpow.pop %v1193
        %v1195 = vmul.f32 %v1075, 1.442695
        %v1196 = vpow.pop %v1195
        %v1197 = vmul.f32 %v1076, 1.442695
        %v1198 = vpow.pop %v1197
        %v1199 = vmul.f32 %v1077, 1.442695
        %v1200 = vpow.pop %v1199
        %v1201 = vmul.f32 %v1078, 1.442695
        %v1202 = vpow.pop %v1201
        %v1203 = vmul.f32 %v1079, 1.442695
        %v1204 = vpow.pop %v1203
        %v1205 = vmul.f32 %v1080, 1.442695
        %v1206 = vpow.pop %v1205
        %v1207 = vmul.f32 %v1081, 1.442695
        %v1208 = vpow.pop %v1207
        %v1209 = vmul.f32 %v1082, 1.442695
        %v1210 = vpow.pop %v1209
        %v1211 = vadd.f32 %v1084, %v1086
        %v1212 = vadd.f32 %v1211, %v1088
        %v1213 = vadd.f32 %v1212, %v1090
        %1214 = vadd.xlane.f32.xlu0 %v1213
        %v1215 = vpop.xlane.xlu0 %1214
        %v1216 = vadd.f32 %v1092, %v1094
        %v1217 = vadd.f32 %v1216, %v1096
        %v1218 = vadd.f32 %v1217, %v1098
        %1219 = vadd.xlane.f32.xlu0 %v1218
        %v1220 = vpop.xlane.xlu0 %1219
        %v1221 = vadd.f32 %v1100, %v1102
        %v1222 = vadd.f32 %v1221, %v1104
        %v1223 = vadd.f32 %v1222, %v1106
        %1224 = vadd.xlane.f32.xlu0 %v1223
        %v1225 = vpop.xlane.xlu0 %1224
        %v1226 = vadd.f32 %v1108, %v1110
        %v1227 = vadd.f32 %v1226, %v1112
        %v1228 = vadd.f32 %v1227, %v1114
        %1229 = vadd.xlane.f32.xlu0 %v1228
        %v1230 = vpop.xlane.xlu0 %1229
        %v1231 = vadd.f32 %v1116, %v1118
        %v1232 = vadd.f32 %v1231, %v1120
        %v1233 = vadd.f32 %v1232, %v1122
        %1234 = vadd.xlane.f32.xlu0 %v1233
        %v1235 = vpop.xlane.xlu0 %1234
        %v1236 = vadd.f32 %v1124, %v1126
        %v1237 = vadd.f32 %v1236, %v1128
        %v1238 = vadd.f32 %v1237, %v1130
        %1239 = vadd.xlane.f32.xlu0 %v1238
        %v1240 = vpop.xlane.xlu0 %1239
        %v1241 = vadd.f32 %v1132, %v1134
        %v1242 = vadd.f32 %v1241, %v1136
        %v1243 = vadd.f32 %v1242, %v1138
        %1244 = vadd.xlane.f32.xlu0 %v1243
        %v1245 = vpop.xlane.xlu0 %1244
        %v1246 = vadd.f32 %v1140, %v1142
        %v1247 = vadd.f32 %v1246, %v1144
        %v1248 = vadd.f32 %v1247, %v1146
        %1249 = vadd.xlane.f32.xlu0 %v1248
        %v1250 = vpop.xlane.xlu0 %1249
        %v1251 = vadd.f32 %v1148, %v1150
        %v1252 = vadd.f32 %v1251, %v1152
        %v1253 = vadd.f32 %v1252, %v1154
        %1254 = vadd.xlane.f32.xlu0 %v1253
        %v1255 = vpop.xlane.xlu0 %1254
        %v1256 = vadd.f32 %v1156, %v1158
        %v1257 = vadd.f32 %v1256, %v1160
        %v1258 = vadd.f32 %v1257, %v1162
        %1259 = vadd.xlane.f32.xlu0 %v1258
        %v1260 = vpop.xlane.xlu0 %1259
        %v1261 = vadd.f32 %v1164, %v1166
        %v1262 = vadd.f32 %v1261, %v1168
        %v1263 = vadd.f32 %v1262, %v1170
        %1264 = vadd.xlane.f32.xlu0 %v1263
        %v1265 = vpop.xlane.xlu0 %1264
        %v1266 = vadd.f32 %v1172, %v1174
        %v1267 = vadd.f32 %v1266, %v1176
        %v1268 = vadd.f32 %v1267, %v1178
        %1269 = vadd.xlane.f32.xlu0 %v1268
        %v1270 = vpop.xlane.xlu0 %1269
        %v1271 = vadd.f32 %v1180, %v1182
        %v1272 = vadd.f32 %v1271, %v1184
        %v1273 = vadd.f32 %v1272, %v1186
        %1274 = vadd.xlane.f32.xlu0 %v1273
        %v1275 = vpop.xlane.xlu0 %1274
        %v1276 = vadd.f32 %v1188, %v1190
        %v1277 = vadd.f32 %v1276, %v1192
        %v1278 = vadd.f32 %v1277, %v1194
        %1279 = vadd.xlane.f32.xlu0 %v1278
        %v1280 = vpop.xlane.xlu0 %1279
        %v1281 = vadd.f32 %v1196, %v1198
        %v1282 = vadd.f32 %v1281, %v1200
        %v1283 = vadd.f32 %v1282, %v1202
        %1284 = vadd.xlane.f32.xlu0 %v1283
        %v1285 = vpop.xlane.xlu0 %1284
        %v1286 = vadd.f32 %v1204, %v1206
        %v1287 = vadd.f32 %v1286, %v1208
        %v1288 = vadd.f32 %v1287, %v1210
        %1289 = vadd.xlane.f32.xlu0 %v1288
        %v1290 = vpop.xlane.xlu0 %1289
        %v1291 = vlog2.pop %v1215
        %v1292 = vmul.f32 %v1291, 0.6931472
        %v1293 = vlog2.pop %v1220
        %v1294 = vmul.f32 %v1293, 0.6931472
        %v1295 = vlog2.pop %v1225
        %v1296 = vmul.f32 %v1295, 0.6931472
        %v1297 = vlog2.pop %v1230
        %v1298 = vmul.f32 %v1297, 0.6931472
        %v1299 = vlog2.pop %v1235
        %v1300 = vmul.f32 %v1299, 0.6931472
        %v1301 = vlog2.pop %v1240
        %v1302 = vmul.f32 %v1301, 0.6931472
        %v1303 = vlog2.pop %v1245
        %v1304 = vmul.f32 %v1303, 0.6931472
        %v1305 = vlog2.pop %v1250
        %v1306 = vmul.f32 %v1305, 0.6931472
        %v1307 = vlog2.pop %v1255
        %v1308 = vmul.f32 %v1307, 0.6931472
        %v1309 = vlog2.pop %v1260
        %v1310 = vmul.f32 %v1309, 0.6931472
        %v1311 = vlog2.pop %v1265
        %v1312 = vmul.f32 %v1311, 0.6931472
        %v1313 = vlog2.pop %v1270
        %v1314 = vmul.f32 %v1313, 0.6931472
        %v1315 = vlog2.pop %v1275
        %v1316 = vmul.f32 %v1315, 0.6931472
        %v1317 = vlog2.pop %v1280
        %v1318 = vmul.f32 %v1317, 0.6931472
        %v1319 = vlog2.pop %v1285
        %v1320 = vmul.f32 %v1319, 0.6931472
        %v1321 = vlog2.pop %v1290
        %v1322 = vmul.f32 %v1321, 0.6931472
        %v1323 = vsub.f32 %v1019, %v1292
        %v1324 = vsub.f32 %v1020, %v1292
        %v1325 = vsub.f32 %v1021, %v1292
        %v1326 = vsub.f32 %v1022, %v1292
        %v1327 = vsub.f32 %v1023, %v1294
        %v1328 = vsub.f32 %v1024, %v1294
        %v1329 = vsub.f32 %v1025, %v1294
        %v1330 = vsub.f32 %v1026, %v1294
        %v1331 = vsub.f32 %v1027, %v1296
        %v1332 = vsub.f32 %v1028, %v1296
        %v1333 = vsub.f32 %v1029, %v1296
        %v1334 = vsub.f32 %v1030, %v1296
        %v1335 = vsub.f32 %v1031, %v1298
        %v1336 = vsub.f32 %v1032, %v1298
        %v1337 = vsub.f32 %v1033, %v1298
        %v1338 = vsub.f32 %v1034, %v1298
        %v1339 = vsub.f32 %v1035, %v1300
        %v1340 = vsub.f32 %v1036, %v1300
        %v1341 = vsub.f32 %v1037, %v1300
        %v1342 = vsub.f32 %v1038, %v1300
        %v1343 = vsub.f32 %v1039, %v1302
        %v1344 = vsub.f32 %v1040, %v1302
        %v1345 = vsub.f32 %v1041, %v1302
        %v1346 = vsub.f32 %v1042, %v1302
        %v1347 = vsub.f32 %v1043, %v1304
        %v1348 = vsub.f32 %v1044, %v1304
        %v1349 = vsub.f32 %v1045, %v1304
        %v1350 = vsub.f32 %v1046, %v1304
        %v1351 = vsub.f32 %v1047, %v1306
        %v1352 = vsub.f32 %v1048, %v1306
        %v1353 = vsub.f32 %v1049, %v1306
        %v1354 = vsub.f32 %v1050, %v1306
        %v1355 = vsub.f32 %v1051, %v1308
        %v1356 = vsub.f32 %v1052, %v1308
        %v1357 = vsub.f32 %v1053, %v1308
        %v1358 = vsub.f32 %v1054, %v1308
        %v1359 = vsub.f32 %v1055, %v1310
        %v1360 = vsub.f32 %v1056, %v1310
        %v1361 = vsub.f32 %v1057, %v1310
        %v1362 = vsub.f32 %v1058, %v1310
        %v1363 = vsub.f32 %v1059, %v1312
        %v1364 = vsub.f32 %v1060, %v1312
        %v1365 = vsub.f32 %v1061, %v1312
        %v1366 = vsub.f32 %v1062, %v1312
        %v1367 = vsub.f32 %v1063, %v1314
        %v1368 = vsub.f32 %v1064, %v1314
        %v1369 = vsub.f32 %v1065, %v1314
        %v1370 = vsub.f32 %v1066, %v1314
        %v1371 = vsub.f32 %v1067, %v1316
        %v1372 = vsub.f32 %v1068, %v1316
        %v1373 = vsub.f32 %v1069, %v1316
        %v1374 = vsub.f32 %v1070, %v1316
        %v1375 = vsub.f32 %v1071, %v1318
        %v1376 = vsub.f32 %v1072, %v1318
        %v1377 = vsub.f32 %v1073, %v1318
        %v1378 = vsub.f32 %v1074, %v1318
        %v1379 = vsub.f32 %v1075, %v1320
        %v1380 = vsub.f32 %v1076, %v1320
        %v1381 = vsub.f32 %v1077, %v1320
        %v1382 = vsub.f32 %v1078, %v1320
        %v1383 = vsub.f32 %v1079, %v1322
        %v1384 = vsub.f32 %v1080, %v1322
        %v1385 = vsub.f32 %v1081, %v1322
        %v1386 = vsub.f32 %v1082, %v1322
        %1387 = vst [vmem:[%s158] sm:$0xff] %v1323
        %1388 = vst [vmem:[%s158 + $0x8] sm:$0xff] %v1324
        %1389 = vst [vmem:[%s158 + $0x10] sm:$0xff] %v1325
        %1390 = vst [vmem:[%s158 + $0x18] sm:$0xff] %v1326
        %1391 = vst [vmem:[%s158 + $0x20] sm:$0xff] %v1327
        %1392 = vst [vmem:[%s158 + $0x28] sm:$0xff] %v1328
        %1393 = vst [vmem:[%s158 + $0x30] sm:$0xff] %v1329
        %1394 = vst [vmem:[%s158 + $0x38] sm:$0xff] %v1330
        %1395 = vst [vmem:[%s158 + $0x40] sm:$0xff] %v1331
        %1396 = vst [vmem:[%s158 + $0x48] sm:$0xff] %v1332
        %1397 = vst [vmem:[%s158 + $0x50] sm:$0xff] %v1333
        %1398 = vst [vmem:[%s158 + $0x58] sm:$0xff] %v1334
        %1399 = vst [vmem:[%s158 + $0x60] sm:$0xff] %v1335
        %1400 = vst [vmem:[%s158 + $0x68] sm:$0xff] %v1336
        %1401 = vst [vmem:[%s158 + $0x70] sm:$0xff] %v1337
        %1402 = vst [vmem:[%s158 + $0x78] sm:$0xff] %v1338
        %1403 = vst [vmem:[%s158 + $0x80] sm:$0xff] %v1339
        %1404 = vst [vmem:[%s158 + $0x88] sm:$0xff] %v1340
        %1405 = vst [vmem:[%s158 + $0x90] sm:$0xff] %v1341
        %1406 = vst [vmem:[%s158 + $0x98] sm:$0xff] %v1342
        %1407 = vst [vmem:[%s158 + $0xa0] sm:$0xff] %v1343
        %1408 = vst [vmem:[%s158 + $0xa8] sm:$0xff] %v1344
        %1409 = vst [vmem:[%s158 + $0xb0] sm:$0xff] %v1345
        %1410 = vst [vmem:[%s158 + $0xb8] sm:$0xff] %v1346
        %1411 = vst [vmem:[%s158 + $0xc0] sm:$0xff] %v1347
        %1412 = vst [vmem:[%s158 + $0xc8] sm:$0xff] %v1348
        %1413 = vst [vmem:[%s158 + $0xd0] sm:$0xff] %v1349
        %1414 = vst [vmem:[%s158 + $0xd8] sm:$0xff] %v1350
        %1415 = vst [vmem:[%s158 + $0xe0] sm:$0xff] %v1351
        %1416 = vst [vmem:[%s158 + $0xe8] sm:$0xff] %v1352
        %1417 = vst [vmem:[%s158 + $0xf0] sm:$0xff] %v1353
        %1418 = vst [vmem:[%s158 + $0xf8] sm:$0xff] %v1354
        %1419 = vst [vmem:[%s158 + $0x100] sm:$0xff] %v1355
        %1420 = vst [vmem:[%s158 + $0x108] sm:$0xff] %v1356
        %1421 = vst [vmem:[%s158 + $0x110] sm:$0xff] %v1357
        %1422 = vst [vmem:[%s158 + $0x118] sm:$0xff] %v1358
        %1423 = vst [vmem:[%s158 + $0x120] sm:$0xff] %v1359
        %1424 = vst [vmem:[%s158 + $0x128] sm:$0xff] %v1360
        %1425 = vst [vmem:[%s158 + $0x130] sm:$0xff] %v1361
        %1426 = vst [vmem:[%s158 + $0x138] sm:$0xff] %v1362
        %1427 = vst [vmem:[%s158 + $0x140] sm:$0xff] %v1363
        %1428 = vst [vmem:[%s158 + $0x148] sm:$0xff] %v1364
        %1429 = vst [vmem:[%s158 + $0x150] sm:$0xff] %v1365
        %1430 = vst [vmem:[%s158 + $0x158] sm:$0xff] %v1366
        %1431 = vst [vmem:[%s158 + $0x160] sm:$0xff] %v1367
        %1432 = vst [vmem:[%s158 + $0x168] sm:$0xff] %v1368
        %1433 = vst [vmem:[%s158 + $0x170] sm:$0xff] %v1369
        %1434 = vst [vmem:[%s158 + $0x178] sm:$0xff] %v1370
        %1435 = vst [vmem:[%s158 + $0x180] sm:$0xff] %v1371
        %1436 = vst [vmem:[%s158 + $0x188] sm:$0xff] %v1372
        %1437 = vst [vmem:[%s158 + $0x190] sm:$0xff] %v1373
        %1438 = vst [vmem:[%s158 + $0x198] sm:$0xff] %v1374
        %1439 = vst [vmem:[%s158 + $0x1a0] sm:$0xff] %v1375
        %1440 = vst [vmem:[%s158 + $0x1a8] sm:$0xff] %v1376
        %1441 = vst [vmem:[%s158 + $0x1b0] sm:$0xff] %v1377
        %1442 = vst [vmem:[%s158 + $0x1b8] sm:$0xff] %v1378
        %1443 = vst [vmem:[%s158 + $0x1c0] sm:$0xff] %v1379
        %1444 = vst [vmem:[%s158 + $0x1c8] sm:$0xff] %v1380
        %1445 = vst [vmem:[%s158 + $0x1d0] sm:$0xff] %v1381
        %1446 = vst [vmem:[%s158 + $0x1d8] sm:$0xff] %v1382
        %1447 = vst [vmem:[%s158 + $0x1e0] sm:$0xff] %v1383
        %1448 = vst [vmem:[%s158 + $0x1e8] sm:$0xff] %v1384
        %1449 = vst [vmem:[%s158 + $0x1f0] sm:$0xff] %v1385
        %1450 = vst [vmem:[%s158 + $0x1f8] sm:$0xff] %v1386
        %s1451 = sand.u32 %s89, 1
        %s1452 = scalar_lea.sflag [#allocation8], %s1451
        %s1453 = sand.u32 %s89, 1
        %s1454 = smul.addr %s1453, 512
        %s1455 = scalar_lea.vmem [#allocation9], %s1454
        // Predicated region
        $region55: #{tpu_custom_call.1} parent=27 // pred_check
          %p1456 = pneg %p99
        $region56: #{tpu_custom_call.1} parent=27 // pred_check_branch
          %1458 = sbr.rel (%p1456) target = $region58
        $region57: #{tpu_custom_call.1} parent=27 // pred_region
          %s1459 = smul.u32 %s27, 2
          %s1460 = sadd.s32 %s1459, %s28
          %s1461 = smul.u32 16, %s1460
          %s1463 = ssub.s32 8192, 8192
          %1464 = vsyncadd %s1452, %s1463
          %s1465 = smul.addr %s1461, 4
          %s1466 = smul.addr %s1465, 128
          %s1467 = scalar_lea.hbm %s4, %s1466
          %s1468 = sshll.u32 %s1455, 4
          %s1469 = int_to_ptr.vmem [resolvable:$true] %s1468
          %1474 = dma.vmem_to_hbm [thread:$0]  %s1469, 8192, %s1467, %s1452, 512, 512, 32
        $region58: #{tpu_custom_call.1} parent=27 // pred_fallthru
          _
      $region28: #{tpu_custom_call.1} parent=5 // pred_fallthru
        _
      %p1475 = scmp.le.s32.totalorder 2, %s18
      // Predicated region
      $region59: #{tpu_custom_call.1} parent=5 // pred_check
        %p1476 = pneg %p1475
      $region60: #{tpu_custom_call.1} parent=5 // pred_check_branch
        %1478 = sbr.rel (%p1476) target = $region62
      $region61: #{tpu_custom_call.1} parent=5 // pred_region
        %s1479 = ssub.s32 %s18, 2
        // Predicated region
        $region63: #{tpu_custom_call.1} parent=61 // pred_check
          %p1480 = pneg %p105
        $region64: #{tpu_custom_call.1} parent=61 // pred_check_branch
          %1482 = sbr.rel (%p1480) target = $region66
        $region65: #{tpu_custom_call.1} parent=61 // pred_region
          %s1483 = sand.u32 %s90, 1
          %s1484 = scalar_lea.sflag [#allocation8], %s1483
          %s1485 = sand.u32 %s90, 1
          %s1486 = smul.addr %s1485, 512
          %s1487 = scalar_lea.vmem [#allocation9], %s1486
          %1488 = dma.done %s1484, 8192
        $region66: #{tpu_custom_call.1} parent=61 // pred_fallthru
          _
      $region62: #{tpu_custom_call.1} parent=5 // pred_fallthru
        _
    $region6: #{tpu_custom_call.1} parent=1 // loop_footer
      %s22 = sadd.s32 1, %s18
    $region7: #{tpu_custom_call.1} parent=1 // loop_footer_branch
      %17 = sbr.rel target = $region3
    $region8: #{tpu_custom_call.1} parent=1 // loop_exit
      _
    %1489 = vsyncpa [#allocation7], 1
    %s1490 = scalar_lea.sflag [#allocation7], 1
    %1491 = vsyncpa %s1490, 1
    %1492 = vsyncpa [#allocation8], 1
    %s1493 = scalar_lea.sflag [#allocation8], 1
    %1494 = vsyncpa %s1493, 1
  %1495 = vsyncmov [#allocation3]
  %s1496 = vpop.sfrf %1495
  %p1497 = scmp.eq.s32.totalorder %s1496, 0
  %p1498 = pneg %p1497
  %1500 = shalt.err (%p1498)
  %s1501 = scalar_lea.sflag [#allocation3], 1
  %1502 = vsyncmov %s1501
  %s1503 = vpop.sfrf %1502
  %p1504 = scmp.eq.s32.totalorder %s1503, 0
  %p1505 = pneg %p1504
  %1507 = shalt.err (%p1505)

</llo_original>
